<compile_context>
chip_gen: v7x
topology: tpu7x:2x2x1
jax: 0.10.0
libtpu: 0.0.40
codegen_flags: <defaults>
</compile_context>

<pallas_src>
import functools

import jax
import jax.numpy as jnp
from jax.experimental import pallas as pl
from jax.experimental.pallas import tpu as pltpu


# -----------------------------------------------------------------------------
# Recurrent kernel: one grid step = `tc` time steps for one batch tile.
# -----------------------------------------------------------------------------
def _lstm_recurrent_kernel(xp_ref, whh_ref, h0_ref, c0_ref,
                           out_ref, hn_ref, cn_ref,
                           h_s, c_s, *, hidden, tc):
    t_chunk = pl.program_id(1)

    # Load initial state at the first time chunk of this batch tile.
    @pl.when(t_chunk == 0)
    def _():
        h_s[...] = h0_ref[...].astype(jnp.float32)
        c_s[...] = c0_ref[...].astype(jnp.float32)

    wdt = whh_ref.dtype          # feed the MXU in the weight dtype (bf16-capable)
    H = hidden

    def step(t, carry):
        h_prev = h_s[...].astype(wdt)                                  # (bb, H)
        gates = xp_ref[t].astype(jnp.float32) + jnp.dot(
            h_prev, whh_ref[...], preferred_element_type=jnp.float32)  # (bb, 4H) f32
        # Gate order after weight prep: [i, f, o, g]
        sig = jax.nn.sigmoid(gates[:, 0:3 * H])                        # one EUP dispatch
        i_g = sig[:, 0:H]
        f_g = sig[:, H:2 * H]
        o_g = sig[:, 2 * H:3 * H]
        g_g = jnp.tanh(gates[:, 3 * H:4 * H])
        c_t = f_g * c_s[...] + i_g * g_g
        h_t = o_g * jnp.tanh(c_t)
        c_s[...] = c_t
        h_s[...] = h_t
        out_ref[t] = h_t.astype(out_ref.dtype)
        return carry

    jax.lax.fori_loop(0, tc, step, 0, unroll=(tc <= 32))

    # Emit final (h_T, c_T) for this batch tile.
    @pl.when(t_chunk == pl.num_programs(1) - 1)
    def _():
        hn_ref[...] = h_s[...].astype(hn_ref.dtype)
        cn_ref[...] = c_s[...].astype(cn_ref.dtype)


# -----------------------------------------------------------------------------
# One-time weight preparation (cache outside the per-call hot path).
# -----------------------------------------------------------------------------
def _reorder_gates(w, H):
    """PyTorch LSTM gate order (i, f, g, o) -> (i, f, o, g) along the 4H axis."""
    w4 = w.reshape((4, H) + w.shape[1:])
    return w4[jnp.array([0, 1, 3, 2])].reshape(w.shape)


def prepare_layer_params(w_ih, w_hh, b_ih, b_hh, *, weight_dtype=None):
    """Returns (wih_t [K,4H], whh_t [H,4H], bias [4H]) with gates reordered and
    weights cast to `weight_dtype` (e.g. jnp.bfloat16 to halve HBM/VMEM)."""
    H = w_hh.shape[1]
    wdt = weight_dtype or w_ih.dtype
    wih_t = _reorder_gates(w_ih, H).T.astype(wdt)
    whh_t = _reorder_gates(w_hh, H).T.astype(wdt)
    bias = _reorder_gates(b_ih + b_hh, H).astype(jnp.float32)
    return wih_t, whh_t, bias


# -----------------------------------------------------------------------------
# Tiling heuristics.
# -----------------------------------------------------------------------------
def _pick_time_chunk(T, cap=32):
    tc = 1
    for d in range(1, min(T, cap) + 1):
        if T % d == 0:
            tc = d
    return tc


def _pick_batch_tile(B):
    if B % 8 != 0:
        return B                       # full-dim block (correct, rows padded on HW)
    bb = min(B, 256)
    if bb == B and B >= 16:
        half = B // 2                  # give the parallel axis >=2 programs (v7x megacore)
        if half % 8 == 0:
            bb = half
    return bb


# -----------------------------------------------------------------------------
# Single LSTM layer.
# -----------------------------------------------------------------------------
def lstm_layer(X, h0, c0, wih_t, whh_t, bias, *, bb=None, tc=None):
    """X: [T, B, K]; h0,c0: [B, H]; wih_t: [K,4H]; whh_t: [H,4H]; bias: [4H].
    Returns (lstm_out [T,B,H], h_n [B,H], c_n [B,H])."""
    T, B, K = X.shape
    H = whh_t.shape[0]
    wdt = whh_t.dtype
    if bb is None:
        bb = _pick_batch_tile(B)
    if tc is None:
        tc = _pick_time_chunk(T)
    assert B % bb == 0 and (bb == B or bb % 8 == 0), "batch tile must be 8-aligned"
    assert T % tc == 0, "time chunk must divide T"

    # --- Hoisted input projection: one big GEMM over all T*B rows (f32 accumulate).
    xp = jnp.dot(X.reshape(T * B, K).astype(wdt), wih_t,
                 preferred_element_type=jnp.float32) + bias
    xp = xp.reshape(T, B, 4 * H)

    # --- VMEM budget from actual footprint (double-buffered tiles + resident W_hh^T).
    fp32 = 4
    wbytes = jnp.dtype(wdt).itemsize
    xbytes = jnp.dtype(X.dtype).itemsize
    footprint = (H * 4 * H * wbytes * 2           # W_hh^T (resident, 2 bufs)
                 + tc * bb * 4 * H * fp32 * 2     # xproj tile
                 + tc * bb * H * xbytes * 2       # out tile
                 + 4 * bb * H * xbytes * 2        # h0/c0 in + h_n/c_n out
                 + 2 * bb * H * fp32)             # f32 state scratch
    vmem_limit = int(min(56 * 1024 * 1024,
                         max(footprint * 3 // 2 + (2 << 20), 4 << 20)))

    kernel = functools.partial(_lstm_recurrent_kernel, hidden=H, tc=tc)

    out_shapes = (
        jax.ShapeDtypeStruct((T, B, H), X.dtype),    # lstm_out
        jax.ShapeDtypeStruct((B, H), X.dtype),       # h_n
        jax.ShapeDtypeStruct((B, H), X.dtype),       # c_n
    )

    return pl.pallas_call(
        kernel,
        out_shape=out_shapes,
        grid=(B // bb, T // tc),
        in_specs=[
            pl.BlockSpec((tc, bb, 4 * H), lambda b_, t_: (t_, b_, 0)),   # xproj tile
            pl.BlockSpec((H, 4 * H), lambda b_, t_: (0, 0)),             # W_hh^T (resident)
            pl.BlockSpec((bb, H), lambda b_, t_: (b_, 0)),               # h0 tile
            pl.BlockSpec((bb, H), lambda b_, t_: (b_, 0)),               # c0 tile
        ],
        out_specs=(
            pl.BlockSpec((tc, bb, H), lambda b_, t_: (t_, b_, 0)),       # lstm_out tile
            pl.BlockSpec((bb, H), lambda b_, t_: (b_, 0)),               # h_n tile
            pl.BlockSpec((bb, H), lambda b_, t_: (b_, 0)),               # c_n tile
        ),
        scratch_shapes=[
            pltpu.VMEM((bb, H), jnp.float32),        # h_t carry
            pltpu.VMEM((bb, H), jnp.float32),        # c_t carry
        ],
        compiler_params=pltpu.CompilerParams(
            dimension_semantics=("parallel", "arbitrary"),   # batch || cores, time sequential
            vmem_limit_bytes=vmem_limit,
        ),
    )(xp, whh_t, h0, c0)


# -----------------------------------------------------------------------------
# Encoder.forward equivalent: returns (lstm_out, (h_n, c_n)).
# -----------------------------------------------------------------------------
def encoder_forward(X, hidden_state, prepared_params, **kw):
    """X: [T, B, input_dim]; hidden_state = (h0, c0) each [num_layers, B, H];
    prepared_params: list of prepare_layer_params(...) tuples per layer."""
    h0_all, c0_all = hidden_state
    layer_in = X
    h_finals, c_finals = [], []
    for l, (wih_t, whh_t, bias) in enumerate(prepared_params):
        layer_in, h_n, c_n = lstm_layer(layer_in, h0_all[l], c0_all[l],
                                        wih_t, whh_t, bias, **kw)
        h_finals.append(h_n)
        c_finals.append(c_n)
    return layer_in, (jnp.stack(h_finals), jnp.stack(c_finals))


# -----------------------------------------------------------------------------
# Pure-JAX reference (lax.scan) with PyTorch LSTM semantics (multi-layer).
# -----------------------------------------------------------------------------
def _lstm_ref(X, h0_all, c0_all, raw_params):
    layer_in = X
    hs, cs = [], []
    for l, (w_ih, w_hh, b_ih, b_hh) in enumerate(raw_params):
        H = w_hh.shape[1]

        def step(carry, x_t, w_ih=w_ih, w_hh=w_hh, b_ih=b_ih, b_hh=b_hh, H=H):
            h, c = carry
            gates = x_t @ w_ih.T + b_ih + h @ w_hh.T + b_hh
            i = jax.nn.sigmoid(gates[:, 0:H])
            f = jax.nn.sigmoid(gates[:, H:2 * H])
            g = jnp.tanh(gates[:, 2 * H:3 * H])
            o = jax.nn.sigmoid(gates[:, 3 * H:4 * H])
            c = f * c + i * g
            h = o * jnp.tanh(c)
            return (h, c), h

        (hT, cT), layer_in = jax.lax.scan(step, (h0_all[l], c0_all[l]), layer_in)
        hs.append(hT)
        cs.append(cT)
    return layer_in, jnp.stack(hs), jnp.stack(cs)


if __name__ == "__main__":
    key = jax.random.PRNGKey(0)

    # Small shapes consistent with the module: seq=16, batch=16, input_dim=64,
    # hidden=128 (multiple of 128 keeps gate slices lane-aligned), 2 layers.
    T, B, input_dim, output_dim, num_layers = 16, 16, 64, 128, 2

    keys = jax.random.split(key, 3 + 4 * num_layers)
    X = jax.random.normal(keys[0], (T, B, input_dim), dtype=jnp.float32)
    h0 = jax.random.normal(keys[1], (num_layers, B, output_dim), dtype=jnp.float32) * 0.1
    c0 = jax.random.normal(keys[2], (num_layers, B, output_dim), dtype=jnp.float32) * 0.1

    # PyTorch-style LSTM init: U(-1/sqrt(H), 1/sqrt(H))
    bound = 1.0 / (output_dim ** 0.5)
    raw_params = []
    for l in range(num_layers):
        K_l = input_dim if l == 0 else output_dim
        kw_, kh_, kbi_, kbh_ = keys[3 + 4 * l: 7 + 4 * l]
        w_ih = jax.random.uniform(kw_, (4 * output_dim, K_l), jnp.float32, -bound, bound)
        w_hh = jax.random.uniform(kh_, (4 * output_dim, output_dim), jnp.float32, -bound, bound)
        b_ih = jax.random.uniform(kbi_, (4 * output_dim,), jnp.float32, -bound, bound)
        b_hh = jax.random.uniform(kbh_, (4 * output_dim,), jnp.float32, -bound, bound)
        raw_params.append((w_ih, w_hh, b_ih, b_hh))

    ref_out, ref_h, ref_c = _lstm_ref(X, h0, c0, raw_params)

    # ---- f32 weight path (matches PyTorch f32 semantics closely).
    #      tc=8 forces 2 time chunks (exercises cross-chunk state carry);
    #      default bb=8 gives 2 programs on the parallel batch axis.
    prep_f32 = [prepare_layer_params(*p) for p in raw_params]
    lstm_out, (h_n, c_n) = encoder_forward(X, (h0, c0), prep_f32, tc=8)
    lstm_out = jax.block_until_ready(lstm_out)
    h_n = jax.block_until_ready(h_n)
    c_n = jax.block_until_ready(c_n)

    assert lstm_out.shape == (T, B, output_dim)
    assert h_n.shape == (num_layers, B, output_dim)
    assert c_n.shape == (num_layers, B, output_dim)
    assert jnp.allclose(lstm_out, ref_out, atol=5e-3, rtol=5e-3), "lstm_out mismatch (f32)"
    assert jnp.allclose(h_n, ref_h, atol=5e-3, rtol=5e-3), "h_n mismatch (f32)"
    assert jnp.allclose(c_n, ref_c, atol=5e-3, rtol=5e-3), "c_n mismatch (f32)"

    # ---- bf16 weight path (main throughput / VMEM lever); looser tolerance since
    #      rounding compounds over the sequence relative to PyTorch's f32 LSTM.
    prep_bf16 = [prepare_layer_params(*p, weight_dtype=jnp.bfloat16) for p in raw_params]
    out_bf, (h_bf, c_bf) = encoder_forward(X, (h0, c0), prep_bf16)
    out_bf = jax.block_until_ready(out_bf)
    assert jnp.allclose(out_bf, ref_out, atol=7e-2, rtol=7e-2), "lstm_out mismatch (bf16)"
    assert jnp.allclose(jax.block_until_ready(h_bf), ref_h, atol=7e-2, rtol=7e-2), "h_n mismatch (bf16)"

    print("KERNEL_OK")
</pallas_src>

<mosaic_0001>
module attributes {stable_mosaic.version = 11 : i64} {
  func.func @_lstm_recurrent_kernel(%arg0: i32, %arg1: i32, %arg2: memref<8x8x512xf32, #tpu.memory_space<vmem>>, %arg3: memref<128x512xf32, #tpu.memory_space<vmem>>, %arg4: memref<8x128xf32, #tpu.memory_space<vmem>>, %arg5: memref<8x128xf32, #tpu.memory_space<vmem>>, %arg6: memref<8x8x128xf32, #tpu.memory_space<vmem>>, %arg7: memref<8x128xf32, #tpu.memory_space<vmem>>, %arg8: memref<8x128xf32, #tpu.memory_space<vmem>>, %arg9: memref<8x128xf32, #tpu.memory_space<vmem>>, %arg10: memref<8x128xf32, #tpu.memory_space<vmem>>) attributes {dimension_semantics = [#tpu.dimension_semantics<parallel>, #tpu.dimension_semantics<arbitrary>], iteration_bounds = array<i64: 2, 2>, scalar_prefetch = 0 : i64, scratch_operands = 2 : i64, tpu.core_type = #tpu.core_type<tc>, window_params = [{transform_indices = @transform_0, window_bounds = array<i64: 8, 8, 512>}, {pipeline_mode = #tpu.pipeline_mode<synchronous>, transform_indices = @transform_1, window_bounds = array<i64: 128, 512>}, {transform_indices = @transform_2, window_bounds = array<i64: 8, 128>}, {transform_indices = @transform_3, window_bounds = array<i64: 8, 128>}, {transform_indices = @transform_4, window_bounds = array<i64: 8, 8, 128>}, {transform_indices = @transform_5, window_bounds = array<i64: 8, 128>}, {transform_indices = @transform_6, window_bounds = array<i64: 8, 128>}]} {
    %c0_i32 = arith.constant 0 : i32
    %0 = arith.cmpi eq, %arg1, %c0_i32 : i32
    %1 = arith.extui %0 : i1 to i32
    %c0_i32_0 = arith.constant 0 : i32
    %2 = arith.cmpi ne, %1, %c0_i32_0 : i32
    scf.if %2 {
      %c0_130 = arith.constant 0 : index
      %c0_131 = arith.constant 0 : index
      %246 = vector.load %arg4[%c0_130, %c0_131] : memref<8x128xf32, #tpu.memory_space<vmem>>, vector<8x128xf32>
      %c0_132 = arith.constant 0 : index
      %c0_133 = arith.constant 0 : index
      %247 = vector.load %arg9[%c0_132, %c0_133] : memref<8x128xf32, #tpu.memory_space<vmem>>, vector<8x128xf32>
      tpu.vector_store %arg9[%c0_132, %c0_133], %246 {strides = array<i32>} : memref<8x128xf32, #tpu.memory_space<vmem>>, vector<8x128xf32>,
      %c0_134 = arith.constant 0 : index
      %c0_135 = arith.constant 0 : index
      %248 = vector.load %arg5[%c0_134, %c0_135] : memref<8x128xf32, #tpu.memory_space<vmem>>, vector<8x128xf32>
      %c0_136 = arith.constant 0 : index
      %c0_137 = arith.constant 0 : index
      %249 = vector.load %arg10[%c0_136, %c0_137] : memref<8x128xf32, #tpu.memory_space<vmem>>, vector<8x128xf32>
      tpu.vector_store %arg10[%c0_136, %c0_137], %248 {strides = array<i32>} : memref<8x128xf32, #tpu.memory_space<vmem>>, vector<8x128xf32>,
    } else {
    }
    %c0_i32_1 = arith.constant 0 : i32
    %c0 = arith.constant 0 : index
    %c0_2 = arith.constant 0 : index
    %3 = vector.load %arg9[%c0, %c0_2] : memref<8x128xf32, #tpu.memory_space<vmem>>, vector<8x128xf32>
    %4 = arith.index_cast %c0_i32_1 : i32 to index
    %c0_3 = arith.constant 0 : index
    %c0_4 = arith.constant 0 : index
    %5 = vector.load %arg2[%4, %c0_3, %c0_4] : memref<8x8x512xf32, #tpu.memory_space<vmem>>, vector<1x8x512xf32>
    %6 = vector.shape_cast %5 : vector<1x8x512xf32> to vector<8x512xf32>
    %c0_5 = arith.constant 0 : index
    %c0_6 = arith.constant 0 : index
    %7 = vector.load %arg3[%c0_5, %c0_6] : memref<128x512xf32, #tpu.memory_space<vmem>>, vector<128x512xf32>
    %cst = arith.constant dense<0.000000e+00> : vector<8x512xf32>
    %8 = tpu.matmul %3, %7, %cst {dimension_numbers = #tpu.dot_dimension_numbers<[1], [0], [0], [1], [0, 0, 1, 1], [], []>} : vector<8x128xf32>, vector<128x512xf32>, vector<8x512xf32> -> vector<8x512xf32>
    %9 = arith.addf %6, %8 : vector<8x512xf32>
    %10 = vector.extract_strided_slice %9 {offsets = [0, 0], sizes = [8, 384], strides = [1, 1]} : vector<8x512xf32> to vector<8x384xf32>
    %11 = arith.negf %10 : vector<8x384xf32>
    %12 = math.exp %11 : vector<8x384xf32>
    %cst_7 = arith.constant 1.000000e+00 : f32
    %13 = vector.broadcast %cst_7 : f32 to vector<8x384xf32>
    %14 = arith.addf %13, %12 : vector<8x384xf32>
    %15 = arith.divf %13, %14 : vector<8x384xf32>
    %16 = vector.extract_strided_slice %15 {offsets = [0, 0], sizes = [8, 128], strides = [1, 1]} : vector<8x384xf32> to vector<8x128xf32>
    %17 = vector.extract_strided_slice %15 {offsets = [0, 128], sizes = [8, 128], strides = [1, 1]} : vector<8x384xf32> to vector<8x128xf32>
    %18 = vector.extract_strided_slice %15 {offsets = [0, 256], sizes = [8, 128], strides = [1, 1]} : vector<8x384xf32> to vector<8x128xf32>
    %19 = vector.extract_strided_slice %9 {offsets = [0, 384], sizes = [8, 128], strides = [1, 1]} : vector<8x512xf32> to vector<8x128xf32>
    %20 = math.tanh %19 : vector<8x128xf32>
    %c0_8 = arith.constant 0 : index
    %c0_9 = arith.constant 0 : index
    %21 = vector.load %arg10[%c0_8, %c0_9] : memref<8x128xf32, #tpu.memory_space<vmem>>, vector<8x128xf32>
    %22 = arith.mulf %17, %21 : vector<8x128xf32>
    %23 = arith.mulf %16, %20 : vector<8x128xf32>
    %24 = arith.addf %22, %23 : vector<8x128xf32>
    %25 = math.tanh %24 : vector<8x128xf32>
    %26 = arith.mulf %18, %25 : vector<8x128xf32>
    %c0_10 = arith.constant 0 : index
    %c0_11 = arith.constant 0 : index
    %27 = vector.load %arg10[%c0_10, %c0_11] : memref<8x128xf32, #tpu.memory_space<vmem>>, vector<8x128xf32>
    tpu.vector_store %arg10[%c0_10, %c0_11], %24 {strides = array<i32>} : memref<8x128xf32, #tpu.memory_space<vmem>>, vector<8x128xf32>,
    %c0_12 = arith.constant 0 : index
    %c0_13 = arith.constant 0 : index
    %28 = vector.load %arg9[%c0_12, %c0_13] : memref<8x128xf32, #tpu.memory_space<vmem>>, vector<8x128xf32>
    tpu.vector_store %arg9[%c0_12, %c0_13], %26 {strides = array<i32>} : memref<8x128xf32, #tpu.memory_space<vmem>>, vector<8x128xf32>,
    %29 = arith.index_cast %c0_i32_1 : i32 to index
    %c0_14 = arith.constant 0 : index
    %c0_15 = arith.constant 0 : index
    %30 = vector.load %arg6[%29, %c0_14, %c0_15] : memref<8x8x128xf32, #tpu.memory_space<vmem>>, vector<1x8x128xf32>
    %31 = vector.shape_cast %30 : vector<1x8x128xf32> to vector<8x128xf32>
    %32 = vector.shape_cast %26 : vector<8x128xf32> to vector<1x8x128xf32>
    tpu.vector_store %arg6[%29, %c0_14, %c0_15], %32 {strides = array<i32>} : memref<8x8x128xf32, #tpu.memory_space<vmem>>, vector<1x8x128xf32>,
    %c1_i32 = arith.constant 1 : i32
    %c0_16 = arith.constant 0 : index
    %c0_17 = arith.constant 0 : index
    %33 = vector.load %arg9[%c0_16, %c0_17] : memref<8x128xf32, #tpu.memory_space<vmem>>, vector<8x128xf32>
    %34 = arith.index_cast %c1_i32 : i32 to index
    %c0_18 = arith.constant 0 : index
    %c0_19 = arith.constant 0 : index
    %35 = vector.load %arg2[%34, %c0_18, %c0_19] : memref<8x8x512xf32, #tpu.memory_space<vmem>>, vector<1x8x512xf32>
    %36 = vector.shape_cast %35 : vector<1x8x512xf32> to vector<8x512xf32>
    %c0_20 = arith.constant 0 : index
    %c0_21 = arith.constant 0 : index
    %37 = vector.load %arg3[%c0_20, %c0_21] : memref<128x512xf32, #tpu.memory_space<vmem>>, vector<128x512xf32>
    %cst_22 = arith.constant dense<0.000000e+00> : vector<8x512xf32>
    %38 = tpu.matmul %33, %37, %cst_22 {dimension_numbers = #tpu.dot_dimension_numbers<[1], [0], [0], [1], [0, 0, 1, 1], [], []>} : vector<8x128xf32>, vector<128x512xf32>, vector<8x512xf32> -> vector<8x512xf32>
    %39 = arith.addf %36, %38 : vector<8x512xf32>
    %40 = vector.extract_strided_slice %39 {offsets = [0, 0], sizes = [8, 384], strides = [1, 1]} : vector<8x512xf32> to vector<8x384xf32>
    %41 = arith.negf %40 : vector<8x384xf32>
    %42 = math.exp %41 : vector<8x384xf32>
    %cst_23 = arith.constant 1.000000e+00 : f32
    %43 = vector.broadcast %cst_23 : f32 to vector<8x384xf32>
    %44 = arith.addf %43, %42 : vector<8x384xf32>
    %45 = arith.divf %43, %44 : vector<8x384xf32>
    %46 = vector.extract_strided_slice %45 {offsets = [0, 0], sizes = [8, 128], strides = [1, 1]} : vector<8x384xf32> to vector<8x128xf32>
    %47 = vector.extract_strided_slice %45 {offsets = [0, 128], sizes = [8, 128], strides = [1, 1]} : vector<8x384xf32> to vector<8x128xf32>
    %48 = vector.extract_strided_slice %45 {offsets = [0, 256], sizes = [8, 128], strides = [1, 1]} : vector<8x384xf32> to vector<8x128xf32>
    %49 = vector.extract_strided_slice %39 {offsets = [0, 384], sizes = [8, 128], strides = [1, 1]} : vector<8x512xf32> to vector<8x128xf32>
    %50 = math.tanh %49 : vector<8x128xf32>
    %c0_24 = arith.constant 0 : index
    %c0_25 = arith.constant 0 : index
    %51 = vector.load %arg10[%c0_24, %c0_25] : memref<8x128xf32, #tpu.memory_space<vmem>>, vector<8x128xf32>
    %52 = arith.mulf %47, %51 : vector<8x128xf32>
    %53 = arith.mulf %46, %50 : vector<8x128xf32>
    %54 = arith.addf %52, %53 : vector<8x128xf32>
    %55 = math.tanh %54 : vector<8x128xf32>
    %56 = arith.mulf %48, %55 : vector<8x128xf32>
    %c0_26 = arith.constant 0 : index
    %c0_27 = arith.constant 0 : index
    %57 = vector.load %arg10[%c0_26, %c0_27] : memref<8x128xf32, #tpu.memory_space<vmem>>, vector<8x128xf32>
    tpu.vector_store %arg10[%c0_26, %c0_27], %54 {strides = array<i32>} : memref<8x128xf32, #tpu.memory_space<vmem>>, vector<8x128xf32>,
    %c0_28 = arith.constant 0 : index
    %c0_29 = arith.constant 0 : index
    %58 = vector.load %arg9[%c0_28, %c0_29] : memref<8x128xf32, #tpu.memory_space<vmem>>, vector<8x128xf32>
    tpu.vector_store %arg9[%c0_28, %c0_29], %56 {strides = array<i32>} : memref<8x128xf32, #tpu.memory_space<vmem>>, vector<8x128xf32>,
    %59 = arith.index_cast %c1_i32 : i32 to index
    %c0_30 = arith.constant 0 : index
    %c0_31 = arith.constant 0 : index
    %60 = vector.load %arg6[%59, %c0_30, %c0_31] : memref<8x8x128xf32, #tpu.memory_space<vmem>>, vector<1x8x128xf32>
    %61 = vector.shape_cast %60 : vector<1x8x128xf32> to vector<8x128xf32>
    %62 = vector.shape_cast %56 : vector<8x128xf32> to vector<1x8x128xf32>
    tpu.vector_store %arg6[%59, %c0_30, %c0_31], %62 {strides = array<i32>} : memref<8x8x128xf32, #tpu.memory_space<vmem>>, vector<1x8x128xf32>,
    %c2_i32 = arith.constant 2 : i32
    %c0_32 = arith.constant 0 : index
    %c0_33 = arith.constant 0 : index
    %63 = vector.load %arg9[%c0_32, %c0_33] : memref<8x128xf32, #tpu.memory_space<vmem>>, vector<8x128xf32>
    %64 = arith.index_cast %c2_i32 : i32 to index
    %c0_34 = arith.constant 0 : index
    %c0_35 = arith.constant 0 : index
    %65 = vector.load %arg2[%64, %c0_34, %c0_35] : memref<8x8x512xf32, #tpu.memory_space<vmem>>, vector<1x8x512xf32>
    %66 = vector.shape_cast %65 : vector<1x8x512xf32> to vector<8x512xf32>
    %c0_36 = arith.constant 0 : index
    %c0_37 = arith.constant 0 : index
    %67 = vector.load %arg3[%c0_36, %c0_37] : memref<128x512xf32, #tpu.memory_space<vmem>>, vector<128x512xf32>
    %cst_38 = arith.constant dense<0.000000e+00> : vector<8x512xf32>
    %68 = tpu.matmul %63, %67, %cst_38 {dimension_numbers = #tpu.dot_dimension_numbers<[1], [0], [0], [1], [0, 0, 1, 1], [], []>} : vector<8x128xf32>, vector<128x512xf32>, vector<8x512xf32> -> vector<8x512xf32>
    %69 = arith.addf %66, %68 : vector<8x512xf32>
    %70 = vector.extract_strided_slice %69 {offsets = [0, 0], sizes = [8, 384], strides = [1, 1]} : vector<8x512xf32> to vector<8x384xf32>
    %71 = arith.negf %70 : vector<8x384xf32>
    %72 = math.exp %71 : vector<8x384xf32>
    %cst_39 = arith.constant 1.000000e+00 : f32
    %73 = vector.broadcast %cst_39 : f32 to vector<8x384xf32>
    %74 = arith.addf %73, %72 : vector<8x384xf32>
    %75 = arith.divf %73, %74 : vector<8x384xf32>
    %76 = vector.extract_strided_slice %75 {offsets = [0, 0], sizes = [8, 128], strides = [1, 1]} : vector<8x384xf32> to vector<8x128xf32>
    %77 = vector.extract_strided_slice %75 {offsets = [0, 128], sizes = [8, 128], strides = [1, 1]} : vector<8x384xf32> to vector<8x128xf32>
    %78 = vector.extract_strided_slice %75 {offsets = [0, 256], sizes = [8, 128], strides = [1, 1]} : vector<8x384xf32> to vector<8x128xf32>
    %79 = vector.extract_strided_slice %69 {offsets = [0, 384], sizes = [8, 128], strides = [1, 1]} : vector<8x512xf32> to vector<8x128xf32>
    %80 = math.tanh %79 : vector<8x128xf32>
    %c0_40 = arith.constant 0 : index
    %c0_41 = arith.constant 0 : index
    %81 = vector.load %arg10[%c0_40, %c0_41] : memref<8x128xf32, #tpu.memory_space<vmem>>, vector<8x128xf32>
    %82 = arith.mulf %77, %81 : vector<8x128xf32>
    %83 = arith.mulf %76, %80 : vector<8x128xf32>
    %84 = arith.addf %82, %83 : vector<8x128xf32>
    %85 = math.tanh %84 : vector<8x128xf32>
    %86 = arith.mulf %78, %85 : vector<8x128xf32>
    %c0_42 = arith.constant 0 : index
    %c0_43 = arith.constant 0 : index
    %87 = vector.load %arg10[%c0_42, %c0_43] : memref<8x128xf32, #tpu.memory_space<vmem>>, vector<8x128xf32>
    tpu.vector_store %arg10[%c0_42, %c0_43], %84 {strides = array<i32>} : memref<8x128xf32, #tpu.memory_space<vmem>>, vector<8x128xf32>,
    %c0_44 = arith.constant 0 : index
    %c0_45 = arith.constant 0 : index
    %88 = vector.load %arg9[%c0_44, %c0_45] : memref<8x128xf32, #tpu.memory_space<vmem>>, vector<8x128xf32>
    tpu.vector_store %arg9[%c0_44, %c0_45], %86 {strides = array<i32>} : memref<8x128xf32, #tpu.memory_space<vmem>>, vector<8x128xf32>,
    %89 = arith.index_cast %c2_i32 : i32 to index
    %c0_46 = arith.constant 0 : index
    %c0_47 = arith.constant 0 : index
    %90 = vector.load %arg6[%89, %c0_46, %c0_47] : memref<8x8x128xf32, #tpu.memory_space<vmem>>, vector<1x8x128xf32>
    %91 = vector.shape_cast %90 : vector<1x8x128xf32> to vector<8x128xf32>
    %92 = vector.shape_cast %86 : vector<8x128xf32> to vector<1x8x128xf32>
    tpu.vector_store %arg6[%89, %c0_46, %c0_47], %92 {strides = array<i32>} : memref<8x8x128xf32, #tpu.memory_space<vmem>>, vector<1x8x128xf32>,
    %c3_i32 = arith.constant 3 : i32
    %c0_48 = arith.constant 0 : index
    %c0_49 = arith.constant 0 : index
    %93 = vector.load %arg9[%c0_48, %c0_49] : memref<8x128xf32, #tpu.memory_space<vmem>>, vector<8x128xf32>
    %94 = arith.index_cast %c3_i32 : i32 to index
    %c0_50 = arith.constant 0 : index
    %c0_51 = arith.constant 0 : index
    %95 = vector.load %arg2[%94, %c0_50, %c0_51] : memref<8x8x512xf32, #tpu.memory_space<vmem>>, vector<1x8x512xf32>
    %96 = vector.shape_cast %95 : vector<1x8x512xf32> to vector<8x512xf32>
    %c0_52 = arith.constant 0 : index
    %c0_53 = arith.constant 0 : index
    %97 = vector.load %arg3[%c0_52, %c0_53] : memref<128x512xf32, #tpu.memory_space<vmem>>, vector<128x512xf32>
    %cst_54 = arith.constant dense<0.000000e+00> : vector<8x512xf32>
    %98 = tpu.matmul %93, %97, %cst_54 {dimension_numbers = #tpu.dot_dimension_numbers<[1], [0], [0], [1], [0, 0, 1, 1], [], []>} : vector<8x128xf32>, vector<128x512xf32>, vector<8x512xf32> -> vector<8x512xf32>
    %99 = arith.addf %96, %98 : vector<8x512xf32>
    %100 = vector.extract_strided_slice %99 {offsets = [0, 0], sizes = [8, 384], strides = [1, 1]} : vector<8x512xf32> to vector<8x384xf32>
    %101 = arith.negf %100 : vector<8x384xf32>
    %102 = math.exp %101 : vector<8x384xf32>
    %cst_55 = arith.constant 1.000000e+00 : f32
    %103 = vector.broadcast %cst_55 : f32 to vector<8x384xf32>
    %104 = arith.addf %103, %102 : vector<8x384xf32>
    %105 = arith.divf %103, %104 : vector<8x384xf32>
    %106 = vector.extract_strided_slice %105 {offsets = [0, 0], sizes = [8, 128], strides = [1, 1]} : vector<8x384xf32> to vector<8x128xf32>
    %107 = vector.extract_strided_slice %105 {offsets = [0, 128], sizes = [8, 128], strides = [1, 1]} : vector<8x384xf32> to vector<8x128xf32>
    %108 = vector.extract_strided_slice %105 {offsets = [0, 256], sizes = [8, 128], strides = [1, 1]} : vector<8x384xf32> to vector<8x128xf32>
    %109 = vector.extract_strided_slice %99 {offsets = [0, 384], sizes = [8, 128], strides = [1, 1]} : vector<8x512xf32> to vector<8x128xf32>
    %110 = math.tanh %109 : vector<8x128xf32>
    %c0_56 = arith.constant 0 : index
    %c0_57 = arith.constant 0 : index
    %111 = vector.load %arg10[%c0_56, %c0_57] : memref<8x128xf32, #tpu.memory_space<vmem>>, vector<8x128xf32>
    %112 = arith.mulf %107, %111 : vector<8x128xf32>
    %113 = arith.mulf %106, %110 : vector<8x128xf32>
    %114 = arith.addf %112, %113 : vector<8x128xf32>
    %115 = math.tanh %114 : vector<8x128xf32>
    %116 = arith.mulf %108, %115 : vector<8x128xf32>
    %c0_58 = arith.constant 0 : index
    %c0_59 = arith.constant 0 : index
    %117 = vector.load %arg10[%c0_58, %c0_59] : memref<8x128xf32, #tpu.memory_space<vmem>>, vector<8x128xf32>
    tpu.vector_store %arg10[%c0_58, %c0_59], %114 {strides = array<i32>} : memref<8x128xf32, #tpu.memory_space<vmem>>, vector<8x128xf32>,
    %c0_60 = arith.constant 0 : index
    %c0_61 = arith.constant 0 : index
    %118 = vector.load %arg9[%c0_60, %c0_61] : memref<8x128xf32, #tpu.memory_space<vmem>>, vector<8x128xf32>
    tpu.vector_store %arg9[%c0_60, %c0_61], %116 {strides = array<i32>} : memref<8x128xf32, #tpu.memory_space<vmem>>, vector<8x128xf32>,
    %119 = arith.index_cast %c3_i32 : i32 to index
    %c0_62 = arith.constant 0 : index
    %c0_63 = arith.constant 0 : index
    %120 = vector.load %arg6[%119, %c0_62, %c0_63] : memref<8x8x128xf32, #tpu.memory_space<vmem>>, vector<1x8x128xf32>
    %121 = vector.shape_cast %120 : vector<1x8x128xf32> to vector<8x128xf32>
    %122 = vector.shape_cast %116 : vector<8x128xf32> to vector<1x8x128xf32>
    tpu.vector_store %arg6[%119, %c0_62, %c0_63], %122 {strides = array<i32>} : memref<8x8x128xf32, #tpu.memory_space<vmem>>, vector<1x8x128xf32>,
    %c4_i32 = arith.constant 4 : i32
    %c0_64 = arith.constant 0 : index
    %c0_65 = arith.constant 0 : index
    %123 = vector.load %arg9[%c0_64, %c0_65] : memref<8x128xf32, #tpu.memory_space<vmem>>, vector<8x128xf32>
    %124 = arith.index_cast %c4_i32 : i32 to index
    %c0_66 = arith.constant 0 : index
    %c0_67 = arith.constant 0 : index
    %125 = vector.load %arg2[%124, %c0_66, %c0_67] : memref<8x8x512xf32, #tpu.memory_space<vmem>>, vector<1x8x512xf32>
    %126 = vector.shape_cast %125 : vector<1x8x512xf32> to vector<8x512xf32>
    %c0_68 = arith.constant 0 : index
    %c0_69 = arith.constant 0 : index
    %127 = vector.load %arg3[%c0_68, %c0_69] : memref<128x512xf32, #tpu.memory_space<vmem>>, vector<128x512xf32>
    %cst_70 = arith.constant dense<0.000000e+00> : vector<8x512xf32>
    %128 = tpu.matmul %123, %127, %cst_70 {dimension_numbers = #tpu.dot_dimension_numbers<[1], [0], [0], [1], [0, 0, 1, 1], [], []>} : vector<8x128xf32>, vector<128x512xf32>, vector<8x512xf32> -> vector<8x512xf32>
    %129 = arith.addf %126, %128 : vector<8x512xf32>
    %130 = vector.extract_strided_slice %129 {offsets = [0, 0], sizes = [8, 384], strides = [1, 1]} : vector<8x512xf32> to vector<8x384xf32>
    %131 = arith.negf %130 : vector<8x384xf32>
    %132 = math.exp %131 : vector<8x384xf32>
    %cst_71 = arith.constant 1.000000e+00 : f32
    %133 = vector.broadcast %cst_71 : f32 to vector<8x384xf32>
    %134 = arith.addf %133, %132 : vector<8x384xf32>
    %135 = arith.divf %133, %134 : vector<8x384xf32>
    %136 = vector.extract_strided_slice %135 {offsets = [0, 0], sizes = [8, 128], strides = [1, 1]} : vector<8x384xf32> to vector<8x128xf32>
    %137 = vector.extract_strided_slice %135 {offsets = [0, 128], sizes = [8, 128], strides = [1, 1]} : vector<8x384xf32> to vector<8x128xf32>
    %138 = vector.extract_strided_slice %135 {offsets = [0, 256], sizes = [8, 128], strides = [1, 1]} : vector<8x384xf32> to vector<8x128xf32>
    %139 = vector.extract_strided_slice %129 {offsets = [0, 384], sizes = [8, 128], strides = [1, 1]} : vector<8x512xf32> to vector<8x128xf32>
    %140 = math.tanh %139 : vector<8x128xf32>
    %c0_72 = arith.constant 0 : index
    %c0_73 = arith.constant 0 : index
    %141 = vector.load %arg10[%c0_72, %c0_73] : memref<8x128xf32, #tpu.memory_space<vmem>>, vector<8x128xf32>
    %142 = arith.mulf %137, %141 : vector<8x128xf32>
    %143 = arith.mulf %136, %140 : vector<8x128xf32>
    %144 = arith.addf %142, %143 : vector<8x128xf32>
    %145 = math.tanh %144 : vector<8x128xf32>
    %146 = arith.mulf %138, %145 : vector<8x128xf32>
    %c0_74 = arith.constant 0 : index
    %c0_75 = arith.constant 0 : index
    %147 = vector.load %arg10[%c0_74, %c0_75] : memref<8x128xf32, #tpu.memory_space<vmem>>, vector<8x128xf32>
    tpu.vector_store %arg10[%c0_74, %c0_75], %144 {strides = array<i32>} : memref<8x128xf32, #tpu.memory_space<vmem>>, vector<8x128xf32>,
    %c0_76 = arith.constant 0 : index
    %c0_77 = arith.constant 0 : index
    %148 = vector.load %arg9[%c0_76, %c0_77] : memref<8x128xf32, #tpu.memory_space<vmem>>, vector<8x128xf32>
    tpu.vector_store %arg9[%c0_76, %c0_77], %146 {strides = array<i32>} : memref<8x128xf32, #tpu.memory_space<vmem>>, vector<8x128xf32>,
    %149 = arith.index_cast %c4_i32 : i32 to index
    %c0_78 = arith.constant 0 : index
    %c0_79 = arith.constant 0 : index
    %150 = vector.load %arg6[%149, %c0_78, %c0_79] : memref<8x8x128xf32, #tpu.memory_space<vmem>>, vector<1x8x128xf32>
    %151 = vector.shape_cast %150 : vector<1x8x128xf32> to vector<8x128xf32>
    %152 = vector.shape_cast %146 : vector<8x128xf32> to vector<1x8x128xf32>
    tpu.vector_store %arg6[%149, %c0_78, %c0_79], %152 {strides = array<i32>} : memref<8x8x128xf32, #tpu.memory_space<vmem>>, vector<1x8x128xf32>,
    %c5_i32 = arith.constant 5 : i32
    %c0_80 = arith.constant 0 : index
    %c0_81 = arith.constant 0 : index
    %153 = vector.load %arg9[%c0_80, %c0_81] : memref<8x128xf32, #tpu.memory_space<vmem>>, vector<8x128xf32>
    %154 = arith.index_cast %c5_i32 : i32 to index
    %c0_82 = arith.constant 0 : index
    %c0_83 = arith.constant 0 : index
    %155 = vector.load %arg2[%154, %c0_82, %c0_83] : memref<8x8x512xf32, #tpu.memory_space<vmem>>, vector<1x8x512xf32>
    %156 = vector.shape_cast %155 : vector<1x8x512xf32> to vector<8x512xf32>
    %c0_84 = arith.constant 0 : index
    %c0_85 = arith.constant 0 : index
    %157 = vector.load %arg3[%c0_84, %c0_85] : memref<128x512xf32, #tpu.memory_space<vmem>>, vector<128x512xf32>
    %cst_86 = arith.constant dense<0.000000e+00> : vector<8x512xf32>
    %158 = tpu.matmul %153, %157, %cst_86 {dimension_numbers = #tpu.dot_dimension_numbers<[1], [0], [0], [1], [0, 0, 1, 1], [], []>} : vector<8x128xf32>, vector<128x512xf32>, vector<8x512xf32> -> vector<8x512xf32>
    %159 = arith.addf %156, %158 : vector<8x512xf32>
    %160 = vector.extract_strided_slice %159 {offsets = [0, 0], sizes = [8, 384], strides = [1, 1]} : vector<8x512xf32> to vector<8x384xf32>
    %161 = arith.negf %160 : vector<8x384xf32>
    %162 = math.exp %161 : vector<8x384xf32>
    %cst_87 = arith.constant 1.000000e+00 : f32
    %163 = vector.broadcast %cst_87 : f32 to vector<8x384xf32>
    %164 = arith.addf %163, %162 : vector<8x384xf32>
    %165 = arith.divf %163, %164 : vector<8x384xf32>
    %166 = vector.extract_strided_slice %165 {offsets = [0, 0], sizes = [8, 128], strides = [1, 1]} : vector<8x384xf32> to vector<8x128xf32>
    %167 = vector.extract_strided_slice %165 {offsets = [0, 128], sizes = [8, 128], strides = [1, 1]} : vector<8x384xf32> to vector<8x128xf32>
    %168 = vector.extract_strided_slice %165 {offsets = [0, 256], sizes = [8, 128], strides = [1, 1]} : vector<8x384xf32> to vector<8x128xf32>
    %169 = vector.extract_strided_slice %159 {offsets = [0, 384], sizes = [8, 128], strides = [1, 1]} : vector<8x512xf32> to vector<8x128xf32>
    %170 = math.tanh %169 : vector<8x128xf32>
    %c0_88 = arith.constant 0 : index
    %c0_89 = arith.constant 0 : index
    %171 = vector.load %arg10[%c0_88, %c0_89] : memref<8x128xf32, #tpu.memory_space<vmem>>, vector<8x128xf32>
    %172 = arith.mulf %167, %171 : vector<8x128xf32>
    %173 = arith.mulf %166, %170 : vector<8x128xf32>
    %174 = arith.addf %172, %173 : vector<8x128xf32>
    %175 = math.tanh %174 : vector<8x128xf32>
    %176 = arith.mulf %168, %175 : vector<8x128xf32>
    %c0_90 = arith.constant 0 : index
    %c0_91 = arith.constant 0 : index
    %177 = vector.load %arg10[%c0_90, %c0_91] : memref<8x128xf32, #tpu.memory_space<vmem>>, vector<8x128xf32>
    tpu.vector_store %arg10[%c0_90, %c0_91], %174 {strides = array<i32>} : memref<8x128xf32, #tpu.memory_space<vmem>>, vector<8x128xf32>,
    %c0_92 = arith.constant 0 : index
    %c0_93 = arith.constant 0 : index
    %178 = vector.load %arg9[%c0_92, %c0_93] : memref<8x128xf32, #tpu.memory_space<vmem>>, vector<8x128xf32>
    tpu.vector_store %arg9[%c0_92, %c0_93], %176 {strides = array<i32>} : memref<8x128xf32, #tpu.memory_space<vmem>>, vector<8x128xf32>,
    %179 = arith.index_cast %c5_i32 : i32 to index
    %c0_94 = arith.constant 0 : index
    %c0_95 = arith.constant 0 : index
    %180 = vector.load %arg6[%179, %c0_94, %c0_95] : memref<8x8x128xf32, #tpu.memory_space<vmem>>, vector<1x8x128xf32>
    %181 = vector.shape_cast %180 : vector<1x8x128xf32> to vector<8x128xf32>
    %182 = vector.shape_cast %176 : vector<8x128xf32> to vector<1x8x128xf32>
    tpu.vector_store %arg6[%179, %c0_94, %c0_95], %182 {strides = array<i32>} : memref<8x8x128xf32, #tpu.memory_space<vmem>>, vector<1x8x128xf32>,
    %c6_i32 = arith.constant 6 : i32
    %c0_96 = arith.constant 0 : index
    %c0_97 = arith.constant 0 : index
    %183 = vector.load %arg9[%c0_96, %c0_97] : memref<8x128xf32, #tpu.memory_space<vmem>>, vector<8x128xf32>
    %184 = arith.index_cast %c6_i32 : i32 to index
    %c0_98 = arith.constant 0 : index
    %c0_99 = arith.constant 0 : index
    %185 = vector.load %arg2[%184, %c0_98, %c0_99] : memref<8x8x512xf32, #tpu.memory_space<vmem>>, vector<1x8x512xf32>
    %186 = vector.shape_cast %185 : vector<1x8x512xf32> to vector<8x512xf32>
    %c0_100 = arith.constant 0 : index
    %c0_101 = arith.constant 0 : index
    %187 = vector.load %arg3[%c0_100, %c0_101] : memref<128x512xf32, #tpu.memory_space<vmem>>, vector<128x512xf32>
    %cst_102 = arith.constant dense<0.000000e+00> : vector<8x512xf32>
    %188 = tpu.matmul %183, %187, %cst_102 {dimension_numbers = #tpu.dot_dimension_numbers<[1], [0], [0], [1], [0, 0, 1, 1], [], []>} : vector<8x128xf32>, vector<128x512xf32>, vector<8x512xf32> -> vector<8x512xf32>
    %189 = arith.addf %186, %188 : vector<8x512xf32>
    %190 = vector.extract_strided_slice %189 {offsets = [0, 0], sizes = [8, 384], strides = [1, 1]} : vector<8x512xf32> to vector<8x384xf32>
    %191 = arith.negf %190 : vector<8x384xf32>
    %192 = math.exp %191 : vector<8x384xf32>
    %cst_103 = arith.constant 1.000000e+00 : f32
    %193 = vector.broadcast %cst_103 : f32 to vector<8x384xf32>
    %194 = arith.addf %193, %192 : vector<8x384xf32>
    %195 = arith.divf %193, %194 : vector<8x384xf32>
    %196 = vector.extract_strided_slice %195 {offsets = [0, 0], sizes = [8, 128], strides = [1, 1]} : vector<8x384xf32> to vector<8x128xf32>
    %197 = vector.extract_strided_slice %195 {offsets = [0, 128], sizes = [8, 128], strides = [1, 1]} : vector<8x384xf32> to vector<8x128xf32>
    %198 = vector.extract_strided_slice %195 {offsets = [0, 256], sizes = [8, 128], strides = [1, 1]} : vector<8x384xf32> to vector<8x128xf32>
    %199 = vector.extract_strided_slice %189 {offsets = [0, 384], sizes = [8, 128], strides = [1, 1]} : vector<8x512xf32> to vector<8x128xf32>
    %200 = math.tanh %199 : vector<8x128xf32>
    %c0_104 = arith.constant 0 : index
    %c0_105 = arith.constant 0 : index
    %201 = vector.load %arg10[%c0_104, %c0_105] : memref<8x128xf32, #tpu.memory_space<vmem>>, vector<8x128xf32>
    %202 = arith.mulf %197, %201 : vector<8x128xf32>
    %203 = arith.mulf %196, %200 : vector<8x128xf32>
    %204 = arith.addf %202, %203 : vector<8x128xf32>
    %205 = math.tanh %204 : vector<8x128xf32>
    %206 = arith.mulf %198, %205 : vector<8x128xf32>
    %c0_106 = arith.constant 0 : index
    %c0_107 = arith.constant 0 : index
    %207 = vector.load %arg10[%c0_106, %c0_107] : memref<8x128xf32, #tpu.memory_space<vmem>>, vector<8x128xf32>
    tpu.vector_store %arg10[%c0_106, %c0_107], %204 {strides = array<i32>} : memref<8x128xf32, #tpu.memory_space<vmem>>, vector<8x128xf32>,
    %c0_108 = arith.constant 0 : index
    %c0_109 = arith.constant 0 : index
    %208 = vector.load %arg9[%c0_108, %c0_109] : memref<8x128xf32, #tpu.memory_space<vmem>>, vector<8x128xf32>
    tpu.vector_store %arg9[%c0_108, %c0_109], %206 {strides = array<i32>} : memref<8x128xf32, #tpu.memory_space<vmem>>, vector<8x128xf32>,
    %209 = arith.index_cast %c6_i32 : i32 to index
    %c0_110 = arith.constant 0 : index
    %c0_111 = arith.constant 0 : index
    %210 = vector.load %arg6[%209, %c0_110, %c0_111] : memref<8x8x128xf32, #tpu.memory_space<vmem>>, vector<1x8x128xf32>
    %211 = vector.shape_cast %210 : vector<1x8x128xf32> to vector<8x128xf32>
    %212 = vector.shape_cast %206 : vector<8x128xf32> to vector<1x8x128xf32>
    tpu.vector_store %arg6[%209, %c0_110, %c0_111], %212 {strides = array<i32>} : memref<8x8x128xf32, #tpu.memory_space<vmem>>, vector<1x8x128xf32>,
    %c7_i32 = arith.constant 7 : i32
    %c0_112 = arith.constant 0 : index
    %c0_113 = arith.constant 0 : index
    %213 = vector.load %arg9[%c0_112, %c0_113] : memref<8x128xf32, #tpu.memory_space<vmem>>, vector<8x128xf32>
    %214 = arith.index_cast %c7_i32 : i32 to index
    %c0_114 = arith.constant 0 : index
    %c0_115 = arith.constant 0 : index
    %215 = vector.load %arg2[%214, %c0_114, %c0_115] : memref<8x8x512xf32, #tpu.memory_space<vmem>>, vector<1x8x512xf32>
    %216 = vector.shape_cast %215 : vector<1x8x512xf32> to vector<8x512xf32>
    %c0_116 = arith.constant 0 : index
    %c0_117 = arith.constant 0 : index
    %217 = vector.load %arg3[%c0_116, %c0_117] : memref<128x512xf32, #tpu.memory_space<vmem>>, vector<128x512xf32>
    %cst_118 = arith.constant dense<0.000000e+00> : vector<8x512xf32>
    %218 = tpu.matmul %213, %217, %cst_118 {dimension_numbers = #tpu.dot_dimension_numbers<[1], [0], [0], [1], [0, 0, 1, 1], [], []>} : vector<8x128xf32>, vector<128x512xf32>, vector<8x512xf32> -> vector<8x512xf32>
    %219 = arith.addf %216, %218 : vector<8x512xf32>
    %220 = vector.extract_strided_slice %219 {offsets = [0, 0], sizes = [8, 384], strides = [1, 1]} : vector<8x512xf32> to vector<8x384xf32>
    %221 = arith.negf %220 : vector<8x384xf32>
    %222 = math.exp %221 : vector<8x384xf32>
    %cst_119 = arith.constant 1.000000e+00 : f32
    %223 = vector.broadcast %cst_119 : f32 to vector<8x384xf32>
    %224 = arith.addf %223, %222 : vector<8x384xf32>
    %225 = arith.divf %223, %224 : vector<8x384xf32>
    %226 = vector.extract_strided_slice %225 {offsets = [0, 0], sizes = [8, 128], strides = [1, 1]} : vector<8x384xf32> to vector<8x128xf32>
    %227 = vector.extract_strided_slice %225 {offsets = [0, 128], sizes = [8, 128], strides = [1, 1]} : vector<8x384xf32> to vector<8x128xf32>
    %228 = vector.extract_strided_slice %225 {offsets = [0, 256], sizes = [8, 128], strides = [1, 1]} : vector<8x384xf32> to vector<8x128xf32>
    %229 = vector.extract_strided_slice %219 {offsets = [0, 384], sizes = [8, 128], strides = [1, 1]} : vector<8x512xf32> to vector<8x128xf32>
    %230 = math.tanh %229 : vector<8x128xf32>
    %c0_120 = arith.constant 0 : index
    %c0_121 = arith.constant 0 : index
    %231 = vector.load %arg10[%c0_120, %c0_121] : memref<8x128xf32, #tpu.memory_space<vmem>>, vector<8x128xf32>
    %232 = arith.mulf %227, %231 : vector<8x128xf32>
    %233 = arith.mulf %226, %230 : vector<8x128xf32>
    %234 = arith.addf %232, %233 : vector<8x128xf32>
    %235 = math.tanh %234 : vector<8x128xf32>
    %236 = arith.mulf %228, %235 : vector<8x128xf32>
    %c0_122 = arith.constant 0 : index
    %c0_123 = arith.constant 0 : index
    %237 = vector.load %arg10[%c0_122, %c0_123] : memref<8x128xf32, #tpu.memory_space<vmem>>, vector<8x128xf32>
    tpu.vector_store %arg10[%c0_122, %c0_123], %234 {strides = array<i32>} : memref<8x128xf32, #tpu.memory_space<vmem>>, vector<8x128xf32>,
    %c0_124 = arith.constant 0 : index
    %c0_125 = arith.constant 0 : index
    %238 = vector.load %arg9[%c0_124, %c0_125] : memref<8x128xf32, #tpu.memory_space<vmem>>, vector<8x128xf32>
    tpu.vector_store %arg9[%c0_124, %c0_125], %236 {strides = array<i32>} : memref<8x128xf32, #tpu.memory_space<vmem>>, vector<8x128xf32>,
    %239 = arith.index_cast %c7_i32 : i32 to index
    %c0_126 = arith.constant 0 : index
    %c0_127 = arith.constant 0 : index
    %240 = vector.load %arg6[%239, %c0_126, %c0_127] : memref<8x8x128xf32, #tpu.memory_space<vmem>>, vector<1x8x128xf32>
    %241 = vector.shape_cast %240 : vector<1x8x128xf32> to vector<8x128xf32>
    %242 = vector.shape_cast %236 : vector<8x128xf32> to vector<1x8x128xf32>
    tpu.vector_store %arg6[%239, %c0_126, %c0_127], %242 {strides = array<i32>} : memref<8x8x128xf32, #tpu.memory_space<vmem>>, vector<1x8x128xf32>,
    %c8_i32 = arith.constant 8 : i32
    %c1_i32_128 = arith.constant 1 : i32
    %243 = arith.cmpi eq, %arg1, %c1_i32_128 : i32
    %244 = arith.extui %243 : i1 to i32
    %c0_i32_129 = arith.constant 0 : i32
    %245 = arith.cmpi ne, %244, %c0_i32_129 : i32
    scf.if %245 {
      %c0_130 = arith.constant 0 : index
      %c0_131 = arith.constant 0 : index
      %246 = vector.load %arg9[%c0_130, %c0_131] : memref<8x128xf32, #tpu.memory_space<vmem>>, vector<8x128xf32>
      %c0_132 = arith.constant 0 : index
      %c0_133 = arith.constant 0 : index
      %247 = vector.load %arg7[%c0_132, %c0_133] : memref<8x128xf32, #tpu.memory_space<vmem>>, vector<8x128xf32>
      tpu.vector_store %arg7[%c0_132, %c0_133], %246 {strides = array<i32>} : memref<8x128xf32, #tpu.memory_space<vmem>>, vector<8x128xf32>,
      %c0_134 = arith.constant 0 : index
      %c0_135 = arith.constant 0 : index
      %248 = vector.load %arg10[%c0_134, %c0_135] : memref<8x128xf32, #tpu.memory_space<vmem>>, vector<8x128xf32>
      %c0_136 = arith.constant 0 : index
      %c0_137 = arith.constant 0 : index
      %249 = vector.load %arg8[%c0_136, %c0_137] : memref<8x128xf32, #tpu.memory_space<vmem>>, vector<8x128xf32>
      tpu.vector_store %arg8[%c0_136, %c0_137], %248 {strides = array<i32>} : memref<8x128xf32, #tpu.memory_space<vmem>>, vector<8x128xf32>,
    } else {
    }
    return
  }
  func.func @transform_0(%arg0: i32, %arg1: i32) -> (i32, i32, i32) {
    %c0_i32 = arith.constant 0 : i32
    %c0_i32_0 = arith.constant 0 : i32
    return %arg1, %arg0, %c0_i32 : i32, i32, i32
  }
  func.func @transform_1(%arg0: i32, %arg1: i32) -> (i32, i32) {
    %c0_i32 = arith.constant 0 : i32
    %c0_i32_0 = arith.constant 0 : i32
    %c0_i32_1 = arith.constant 0 : i32
    return %c0_i32, %c0_i32_0 : i32, i32
  }
  func.func @transform_2(%arg0: i32, %arg1: i32) -> (i32, i32) {
    %c0_i32 = arith.constant 0 : i32
    %c0_i32_0 = arith.constant 0 : i32
    return %arg0, %c0_i32 : i32, i32
  }
  func.func @transform_3(%arg0: i32, %arg1: i32) -> (i32, i32) {
    %c0_i32 = arith.constant 0 : i32
    %c0_i32_0 = arith.constant 0 : i32
    return %arg0, %c0_i32 : i32, i32
  }
  func.func @transform_4(%arg0: i32, %arg1: i32) -> (i32, i32, i32) {
    %c0_i32 = arith.constant 0 : i32
    %c0_i32_0 = arith.constant 0 : i32
    return %arg1, %arg0, %c0_i32 : i32, i32, i32
  }
  func.func @transform_5(%arg0: i32, %arg1: i32) -> (i32, i32) {
    %c0_i32 = arith.constant 0 : i32
    %c0_i32_0 = arith.constant 0 : i32
    return %arg0, %c0_i32 : i32, i32
  }
  func.func @transform_6(%arg0: i32, %arg1: i32) -> (i32, i32) {
    %c0_i32 = arith.constant 0 : i32
    %c0_i32_0 = arith.constant 0 : i32
    return %arg0, %c0_i32 : i32, i32
  }
}

</mosaic_0001>

<llo_original>
// kernel: tpu_custom_call.1
$region0: #{tpu_custom_call.1}
  #allocation0 [shape = 'u32[]', space=smem, size = 0x4, offset = 0x4, fixed_abs, tag = 'smem constant byte address 0x4 - core index']
  #allocation1 [shape = 'u32[144,128]{1,0:T(1,128)}', space=vmem, size = 0x12000, scoped, tag = 'internal scratch']
  #allocation2 [shape = 'f32[8,128]{1,0:T(8,128)}', space=vmem, size = 0x1000, scoped, tag = 'scratch operand']
  #allocation3 [shape = 'f32[8,128]{1,0:T(8,128)}', space=vmem, size = 0x1000, scoped, tag = 'scratch operand']
  %s0 = inlined_call_operand.hbm [shape: f32[16,16,512], index: 0, kind: input, shape index: {}]
  %s1 = inlined_call_operand.hbm [shape: f32[128,512], index: 1, kind: input, shape index: {}]
  %s2 = inlined_call_operand.hbm [shape: f32[16,128], index: 2, kind: input, shape index: {}]
  %s3 = inlined_call_operand.hbm [shape: f32[16,128], index: 3, kind: input, shape index: {}]
  %s4 = inlined_call_operand.hbm [shape: f32[16,16,128], index: 4, kind: output, shape index: {0}]
  %s5 = inlined_call_operand.hbm [shape: f32[16,128], index: 5, kind: output, shape index: {1}]
  %s6 = inlined_call_operand.hbm [shape: f32[16,128], index: 6, kind: output, shape index: {2}]
  %7 = xla_tuple %s4, %s5, %s6
  %s8 = sld [smem:[#allocation0]]
  $region89: #{tpu_custom_call.1} parent=0
    _
  %s10 = ssub.s32 1, %s8
  %s11 = scalar_select 0, %s10, %s8
  $region1: #{tpu_custom_call.1} parent=0
    #allocation4 [shape = 'u8[262144]{0}', space=vmem, size = 0x40000, scoped, tag = 'input window, operand 0']
    #allocation5 [shape = 's32[2]{0}', space=sflag, size = 0x8, scoped, tag = 'scoped memory for tpu_custom_call.1']
    #allocation6 [shape = 's32[2]{0}', space=sflag, size = 0x8, scoped, tag = 'scoped memory for tpu_custom_call.1']
    #allocation7 [shape = 'u8[262144]{0}', space=vmem, size = 0x40000, scoped, tag = 'input window, operand 1, single buffered']
    #allocation8 [shape = 's32[1]{0}', space=sflag, size = 0x4, scoped, tag = 'scoped memory for tpu_custom_call.1']
    #allocation9 [shape = 'u8[8192]{0}', space=vmem, size = 0x2000, scoped, tag = 'input window, operand 2']
    #allocation10 [shape = 'u8[8192]{0}', space=vmem, size = 0x2000, scoped, tag = 'input window, operand 3']
    #allocation11 [shape = 'u8[65536]{0}', space=vmem, size = 0x10000, scoped, tag = 'output window, operand 0']
    #allocation12 [shape = 'u8[8192]{0}', space=vmem, size = 0x2000, scoped, tag = 'output window, operand 1']
    #allocation13 [shape = 's32[2]{0}', space=sflag, size = 0x8, scoped, tag = 'scoped memory for tpu_custom_call.1']
    #allocation14 [shape = 'u8[8192]{0}', space=vmem, size = 0x2000, scoped, tag = 'output window, operand 2']
    %12 = vsyncpa [#allocation5], 0
    %s13 = scalar_lea.sflag [#allocation5], 1
    %14 = vsyncpa %s13, 0
    %15 = vsyncpa [#allocation8], 0
    %16 = vsyncpa [#allocation6], 0
    %s17 = scalar_lea.sflag [#allocation6], 1
    %18 = vsyncpa %s17, 0
    %19 = vsyncpa [#allocation13], 0
    %s20 = scalar_lea.sflag [#allocation13], 1
    %21 = vsyncpa %s20, 0
    loop: start=0, step=1, limit=6
    $region2: #{tpu_custom_call.1} parent=1 // loop_pre_header
      _
    $region3: #{tpu_custom_call.1} parent=1 // loop_header
      %s23 = sphi 0, %s27
      %p24 = scmp.ge.s32.totalorder %s23, 6
      %s30 = sphi 0, %s42
      %s31 = sphi 0, %s38
      %s32 = sphi 0, %s30
      %s33 = sphi 0, %s31
      %s34 = sphi 0, %s32
      %s35 = sphi 0, %s33
      %s47 = sphi 0, %s49
      %s50 = sphi 0, %s47
      %s51 = sphi 0, %s50
      %s67 = sphi 0, %s51
      %s71 = sphi 0, %s71
      %s73 = sphi 0, %s71
      %s74 = sphi 0, %s73
      %s88 = sphi 0, %s74
      %s94 = sphi 0, %s96
      %s97 = sphi 0, %s94
      %s98 = sphi 0, %s97
      %s114 = sphi 0, %s98
      %s120 = sphi 0, %s122
      %s123 = sphi 0, %s120
      %s124 = sphi 0, %s123
      %s140 = sphi 0, %s124
      %s148 = sphi 0, %s150
      %s151 = sphi 0, %s148
      %s152 = sphi 0, %s151
      %s168 = sphi 0, %s152
      %s174 = sphi 0, %s176
      %s177 = sphi 0, %s174
      %s178 = sphi 0, %s177
      %s194 = sphi 0, %s178
      %s200 = sphi 0, %s202
      %s203 = sphi 0, %s200
      %s204 = sphi 0, %s203
      %s220 = sphi 0, %s204
    $region4: #{tpu_custom_call.1} parent=1 // loop_header_branch
      %26 = sbr.rel (%p24) target = $region8
    $region5: #{tpu_custom_call.1} parent=1 // loop_body
      %s28 = ssub.s32 %s23, 1
      %s29 = ssub.s32 %s23, 2
      %s36 = sadd.s32 1, %s31
      %p37 = scmp.ge.s32.totalorder %s36, 2
      %s38 = scalar_select %p37, 0, %s36
      %s39 = sadd.s32 1, %s30
      %s40 = scalar_select %p37, %s39, %s30
      %p41 = scmp.ge.s32.totalorder %s40, 2
      %s42 = scalar_select %p41, 0, %s40
      %s43 = ssub.s32 %s31, %s38
      %s44 = ssub.s32 %s30, %s42
      %s45 = sor.u32 %s43, %s44
      %p46 = scmp.eq.s32.totalorder %s45, 0
      %s48 = sadd.s32 %s47, 1
      %s49 = scalar_select %p46, %s47, %s48
      %p52 = pneg %p46
      %p53 = scmp.eq.s32.totalorder %s23, 3
      %p54 = por %p52, %p53
      %p55 = scmp.ne.s32.totalorder %s47, %s50
      %p56 = scmp.eq.s32.totalorder %s23, 0
      %p57 = por %p55, %p56
      %p58 = scmp.ne.s32.totalorder %s47, %s50
      %p59 = scmp.eq.s32.totalorder %s28, 3
      %p60 = por %p58, %p59
      %p61 = scmp.ne.s32.totalorder %s50, %s51
      %p62 = scmp.eq.s32.totalorder %s28, 0
      %p63 = por %p61, %p62
      %p64 = scmp.ne.s32.totalorder %s50, %s51
      %p65 = scmp.eq.s32.totalorder %s29, 3
      %p66 = por %p64, %p65
      %p68 = scmp.ne.s32.totalorder %s51, %s67
      %p69 = scmp.eq.s32.totalorder %s29, 0
      %p70 = por %p68, %p69
      %s72 = sadd.s32 %s71, 1
      %p75 = scmp.eq.s32.totalorder %s23, 3
      %p76 = scmp.ne.s32.totalorder %s71, %s73
      %p77 = scmp.eq.s32.totalorder %s23, 0
      %p78 = por %p76, %p77
      %p79 = scmp.ne.s32.totalorder %s71, %s73
      %p80 = scmp.eq.s32.totalorder %s28, 3
      %p81 = por %p79, %p80
      %p82 = scmp.ne.s32.totalorder %s73, %s74
      %p83 = scmp.eq.s32.totalorder %s28, 0
      %p84 = por %p82, %p83
      %p85 = scmp.ne.s32.totalorder %s73, %s74
      %p86 = scmp.eq.s32.totalorder %s29, 3
      %p87 = por %p85, %p86
      %p89 = scmp.ne.s32.totalorder %s74, %s88
      %p90 = scmp.eq.s32.totalorder %s29, 0
      %p91 = por %p89, %p90
      %s92 = ssub.s32 %s30, %s42
      %p93 = scmp.eq.s32.totalorder %s92, 0
      %s95 = sadd.s32 %s94, 1
      %s96 = scalar_select %p93, %s94, %s95
      %p99 = pneg %p93
      %p100 = scmp.eq.s32.totalorder %s23, 3
      %p101 = por %p99, %p100
      %p102 = scmp.ne.s32.totalorder %s94, %s97
      %p103 = scmp.eq.s32.totalorder %s23, 0
      %p104 = por %p102, %p103
      %p105 = scmp.ne.s32.totalorder %s94, %s97
      %p106 = scmp.eq.s32.totalorder %s28, 3
      %p107 = por %p105, %p106
      %p108 = scmp.ne.s32.totalorder %s97, %s98
      %p109 = scmp.eq.s32.totalorder %s28, 0
      %p110 = por %p108, %p109
      %p111 = scmp.ne.s32.totalorder %s97, %s98
      %p112 = scmp.eq.s32.totalorder %s29, 3
      %p113 = por %p111, %p112
      %p115 = scmp.ne.s32.totalorder %s98, %s114
      %p116 = scmp.eq.s32.totalorder %s29, 0
      %p117 = por %p115, %p116
      %s118 = ssub.s32 %s30, %s42
      %p119 = scmp.eq.s32.totalorder %s118, 0
      %s121 = sadd.s32 %s120, 1
      %s122 = scalar_select %p119, %s120, %s121
      %p125 = pneg %p119
      %p126 = scmp.eq.s32.totalorder %s23, 3
      %p127 = por %p125, %p126
      %p128 = scmp.ne.s32.totalorder %s120, %s123
      %p129 = scmp.eq.s32.totalorder %s23, 0
      %p130 = por %p128, %p129
      %p131 = scmp.ne.s32.totalorder %s120, %s123
      %p132 = scmp.eq.s32.totalorder %s28, 3
      %p133 = por %p131, %p132
      %p134 = scmp.ne.s32.totalorder %s123, %s124
      %p135 = scmp.eq.s32.totalorder %s28, 0
      %p136 = por %p134, %p135
      %p137 = scmp.ne.s32.totalorder %s123, %s124
      %p138 = scmp.eq.s32.totalorder %s29, 3
      %p139 = por %p137, %p138
      %p141 = scmp.ne.s32.totalorder %s124, %s140
      %p142 = scmp.eq.s32.totalorder %s29, 0
      %p143 = por %p141, %p142
      %s144 = ssub.s32 %s31, %s38
      %s145 = ssub.s32 %s30, %s42
      %s146 = sor.u32 %s144, %s145
      %p147 = scmp.eq.s32.totalorder %s146, 0
      %s149 = sadd.s32 %s148, 1
      %s150 = scalar_select %p147, %s148, %s149
      %p153 = pneg %p147
      %p154 = scmp.eq.s32.totalorder %s23, 3
      %p155 = por %p153, %p154
      %p156 = scmp.ne.s32.totalorder %s148, %s151
      %p157 = scmp.eq.s32.totalorder %s23, 0
      %p158 = por %p156, %p157
      %p159 = scmp.ne.s32.totalorder %s148, %s151
      %p160 = scmp.eq.s32.totalorder %s28, 3
      %p161 = por %p159, %p160
      %p162 = scmp.ne.s32.totalorder %s151, %s152
      %p163 = scmp.eq.s32.totalorder %s28, 0
      %p164 = por %p162, %p163
      %p165 = scmp.ne.s32.totalorder %s151, %s152
      %p166 = scmp.eq.s32.totalorder %s29, 3
      %p167 = por %p165, %p166
      %p169 = scmp.ne.s32.totalorder %s152, %s168
      %p170 = scmp.eq.s32.totalorder %s29, 0
      %p171 = por %p169, %p170
      %s172 = ssub.s32 %s30, %s42
      %p173 = scmp.eq.s32.totalorder %s172, 0
      %s175 = sadd.s32 %s174, 1
      %s176 = scalar_select %p173, %s174, %s175
      %p179 = pneg %p173
      %p180 = scmp.eq.s32.totalorder %s23, 3
      %p181 = por %p179, %p180
      %p182 = scmp.ne.s32.totalorder %s174, %s177
      %p183 = scmp.eq.s32.totalorder %s23, 0
      %p184 = por %p182, %p183
      %p185 = scmp.ne.s32.totalorder %s174, %s177
      %p186 = scmp.eq.s32.totalorder %s28, 3
      %p187 = por %p185, %p186
      %p188 = scmp.ne.s32.totalorder %s177, %s178
      %p189 = scmp.eq.s32.totalorder %s28, 0
      %p190 = por %p188, %p189
      %p191 = scmp.ne.s32.totalorder %s177, %s178
      %p192 = scmp.eq.s32.totalorder %s29, 3
      %p193 = por %p191, %p192
      %p195 = scmp.ne.s32.totalorder %s178, %s194
      %p196 = scmp.eq.s32.totalorder %s29, 0
      %p197 = por %p195, %p196
      %s198 = ssub.s32 %s30, %s42
      %p199 = scmp.eq.s32.totalorder %s198, 0
      %s201 = sadd.s32 %s200, 1
      %s202 = scalar_select %p199, %s200, %s201
      %p205 = pneg %p199
      %p206 = scmp.eq.s32.totalorder %s23, 3
      %p207 = por %p205, %p206
      %p208 = scmp.ne.s32.totalorder %s200, %s203
      %p209 = scmp.eq.s32.totalorder %s23, 0
      %p210 = por %p208, %p209
      %p211 = scmp.ne.s32.totalorder %s200, %s203
      %p212 = scmp.eq.s32.totalorder %s28, 3
      %p213 = por %p211, %p212
      %p214 = scmp.ne.s32.totalorder %s203, %s204
      %p215 = scmp.eq.s32.totalorder %s28, 0
      %p216 = por %p214, %p215
      %p217 = scmp.ne.s32.totalorder %s203, %s204
      %p218 = scmp.eq.s32.totalorder %s29, 3
      %p219 = por %p217, %p218
      %p221 = scmp.ne.s32.totalorder %s204, %s220
      %p222 = scmp.eq.s32.totalorder %s29, 0
      %p223 = por %p221, %p222
      %p224 = scmp.le.s32.totalorder 1, %s23
      %p225 = scmp.lt.s32.totalorder %s23, 5
      %p226 = pnand %p224, %p225
      %p227 = pneg %p226
      // Predicated region
      $region9: #{tpu_custom_call.1} parent=5 // pred_check
        _
      $region10: #{tpu_custom_call.1} parent=5 // pred_check_branch
        %229 = sbr.rel (%p226) target = $region12
      $region11: #{tpu_custom_call.1} parent=5 // pred_region
        %s230 = ssub.s32 %s23, 1
        // Predicated region
        $region13: #{tpu_custom_call.1} parent=11 // pred_check
          %p231 = pneg %p84
        $region14: #{tpu_custom_call.1} parent=11 // pred_check_branch
          %233 = sbr.rel (%p231) target = $region16
        $region15: #{tpu_custom_call.1} parent=11 // pred_region
          %s235 = ssub.s32 8192, 8192
          %236 = vsyncadd [#allocation8], %s235
          %s237 = sshll.u32 [#allocation7], 4
          %s238 = int_to_ptr.vmem [resolvable:$true] %s237
          %243 = dma.hbm_to_vmem [thread:$0]  %s1, 8192, %s238, [#allocation8], 512, 512, 32
        $region16: #{tpu_custom_call.1} parent=11 // pred_fallthru
          _
      $region12: #{tpu_custom_call.1} parent=5 // pred_fallthru
        _
      %p244 = scmp.lt.s32.totalorder %s23, 4
      // Predicated region
      $region17: #{tpu_custom_call.1} parent=5 // pred_check
        %p245 = pneg %p244
      $region18: #{tpu_custom_call.1} parent=5 // pred_check_branch
        %247 = sbr.rel (%p245) target = $region20
      $region19: #{tpu_custom_call.1} parent=5 // pred_region
        // Predicated region
        $region21: #{tpu_custom_call.1} parent=19 // pred_check
          %p248 = pneg %p57
        $region22: #{tpu_custom_call.1} parent=19 // pred_check_branch
          %250 = sbr.rel (%p248) target = $region24
        $region23: #{tpu_custom_call.1} parent=19 // pred_region
          %s251 = sand.u32 %s23, 1
          %s252 = scalar_lea.sflag [#allocation5], %s251
          %s253 = sand.u32 %s47, 1
          %s254 = smul.addr %s253, 256
          %s255 = scalar_lea.vmem [#allocation4], %s254
          %s256 = smul.u32 8, %s31
          %s258 = ssub.s32 4096, 4096
          %259 = vsyncadd %s252, %s258
          %s260 = smul.addr %s30, 4
          %s261 = smul.addr %s256, 8
          %s262 = sadd.s32 %s260, %s261
          %s263 = smul.addr %s262, 128
          %s264 = scalar_lea.hbm %s0, %s263
          %s265 = sshll.u32 %s255, 4
          %s266 = int_to_ptr.vmem [resolvable:$true] %s265
          %271 = dma.hbm_to_vmem [thread:$0]  %s264, 4096, %s266, %s252, 1024, 512, 32
        $region24: #{tpu_custom_call.1} parent=19 // pred_fallthru
          _
        // Predicated region
        $region25: #{tpu_custom_call.1} parent=19 // pred_check
          %p272 = pneg %p104
        $region26: #{tpu_custom_call.1} parent=19 // pred_check_branch
          %274 = sbr.rel (%p272) target = $region28
        $region27: #{tpu_custom_call.1} parent=19 // pred_region
          %s275 = sand.u32 %s23, 1
          %s276 = scalar_lea.sflag [#allocation5], %s275
          %s277 = sand.u32 %s94, 1
          %s278 = smul.addr %s277, 8
          %s279 = scalar_lea.vmem [#allocation9], %s278
          %s281 = ssub.s32 128, 128
          %282 = vsyncadd %s276, %s281
          %s283 = smul.addr %s30, 128
          %s284 = scalar_lea.hbm %s2, %s283
          %s286 = sshll.u32 %s279, 4
          %s287 = int_to_ptr.vmem [resolvable:$true] %s286
          %289 = dma.hbm_to_vmem [thread:$0]  %s284, 128, %s287, %s276
        $region28: #{tpu_custom_call.1} parent=19 // pred_fallthru
          _
        // Predicated region
        $region29: #{tpu_custom_call.1} parent=19 // pred_check
          %p290 = pneg %p130
        $region30: #{tpu_custom_call.1} parent=19 // pred_check_branch
          %292 = sbr.rel (%p290) target = $region32
        $region31: #{tpu_custom_call.1} parent=19 // pred_region
          %s293 = sand.u32 %s23, 1
          %s294 = scalar_lea.sflag [#allocation5], %s293
          %s295 = sand.u32 %s120, 1
          %s296 = smul.addr %s295, 8
          %s297 = scalar_lea.vmem [#allocation10], %s296
          %s299 = ssub.s32 128, 128
          %300 = vsyncadd %s294, %s299
          %s301 = smul.addr %s30, 128
          %s302 = scalar_lea.hbm %s3, %s301
          %s304 = sshll.u32 %s297, 4
          %s305 = int_to_ptr.vmem [resolvable:$true] %s304
          %307 = dma.hbm_to_vmem [thread:$0]  %s302, 128, %s305, %s294
        $region32: #{tpu_custom_call.1} parent=19 // pred_fallthru
          _
      $region20: #{tpu_custom_call.1} parent=5 // pred_fallthru
        _
      %p308 = scmp.le.s32.totalorder 1, %s23
      %p309 = scmp.lt.s32.totalorder %s23, 5
      %p310 = pnand %p308, %p309
      %p311 = pneg %p310
      // Predicated region
      $region33: #{tpu_custom_call.1} parent=5 // pred_check
        _
      $region34: #{tpu_custom_call.1} parent=5 // pred_check_branch
        %313 = sbr.rel (%p310) target = $region36
      $region35: #{tpu_custom_call.1} parent=5 // pred_region
        %s314 = ssub.s32 %s23, 1
        %s315 = sand.u32 %s28, 1
        %s316 = scalar_lea.sflag [#allocation5], %s315
        %s317 = sand.u32 %s50, 1
        %s318 = smul.addr %s317, 256
        %s319 = scalar_lea.vmem [#allocation4], %s318
        // Predicated region
        $region37: #{tpu_custom_call.1} parent=35 // pred_check
          %p320 = pneg %p63
        $region38: #{tpu_custom_call.1} parent=35 // pred_check_branch
          %322 = sbr.rel (%p320) target = $region40
        $region39: #{tpu_custom_call.1} parent=35 // pred_region
          %323 = dma.done %s316, 4096
        $region40: #{tpu_custom_call.1} parent=35 // pred_fallthru
          _
        // Predicated region
        $region41: #{tpu_custom_call.1} parent=35 // pred_check
          %p324 = pneg %p84
        $region42: #{tpu_custom_call.1} parent=35 // pred_check_branch
          %326 = sbr.rel (%p324) target = $region44
        $region43: #{tpu_custom_call.1} parent=35 // pred_region
          %327 = dma.done [#allocation8], 8192
        $region44: #{tpu_custom_call.1} parent=35 // pred_fallthru
          _
        %s328 = sand.u32 %s28, 1
        %s329 = scalar_lea.sflag [#allocation5], %s328
        %s330 = sand.u32 %s97, 1
        %s331 = smul.addr %s330, 8
        %s332 = scalar_lea.vmem [#allocation9], %s331
        // Predicated region
        $region45: #{tpu_custom_call.1} parent=35 // pred_check
          %p333 = pneg %p110
        $region46: #{tpu_custom_call.1} parent=35 // pred_check_branch
          %335 = sbr.rel (%p333) target = $region48
        $region47: #{tpu_custom_call.1} parent=35 // pred_region
          %336 = dma.done %s329, 128
        $region48: #{tpu_custom_call.1} parent=35 // pred_fallthru
          _
        %s337 = sand.u32 %s28, 1
        %s338 = scalar_lea.sflag [#allocation5], %s337
        %s339 = sand.u32 %s123, 1
        %s340 = smul.addr %s339, 8
        %s341 = scalar_lea.vmem [#allocation10], %s340
        // Predicated region
        $region49: #{tpu_custom_call.1} parent=35 // pred_check
          %p342 = pneg %p136
        $region50: #{tpu_custom_call.1} parent=35 // pred_check_branch
          %344 = sbr.rel (%p342) target = $region52
        $region51: #{tpu_custom_call.1} parent=35 // pred_region
          %345 = dma.done %s338, 128
        $region52: #{tpu_custom_call.1} parent=35 // pred_fallthru
          _
        %s346 = sand.u32 %s28, 1
        %s347 = scalar_lea.sflag [#allocation5], %s346
        %s348 = sand.u32 %s50, 1
        %s349 = smul.addr %s348, 256
        %s350 = scalar_lea.vmem [#allocation4], %s349
        %p351 = pneg %p63
        %p352 = pneg %p60
        %p353 = pneg %p84
        %p354 = pneg %p81
        %s355 = sand.u32 %s28, 1
        %s356 = scalar_lea.sflag [#allocation5], %s355
        %s357 = sand.u32 %s97, 1
        %s358 = smul.addr %s357, 8
        %s359 = scalar_lea.vmem [#allocation9], %s358
        %p360 = pneg %p110
        %p361 = pneg %p107
        %s362 = sand.u32 %s28, 1
        %s363 = scalar_lea.sflag [#allocation5], %s362
        %s364 = sand.u32 %s123, 1
        %s365 = smul.addr %s364, 8
        %s366 = scalar_lea.vmem [#allocation10], %s365
        %p367 = pneg %p136
        %p368 = pneg %p133
        %p369 = pneg %p164
        %p370 = pneg %p161
        %s371 = sand.u32 %s151, 1
        %s372 = scalar_lea.sflag [#allocation6], %s371
        %s373 = sand.u32 %s151, 1
        %s374 = smul.addr %s373, 64
        %s375 = scalar_lea.vmem [#allocation11], %s374
        %p376 = pneg %p190
        %p377 = pneg %p187
        %s378 = sand.u32 %s28, 1
        %s379 = scalar_lea.sflag [#allocation13], %s378
        %s380 = sand.u32 %s177, 1
        %s381 = smul.addr %s380, 8
        %s382 = scalar_lea.vmem [#allocation12], %s381
        %p383 = pneg %p216
        %p384 = pneg %p213
        %s385 = sand.u32 %s28, 1
        %s386 = scalar_lea.sflag [#allocation13], %s385
        %s387 = sand.u32 %s203, 1
        %s388 = smul.addr %s387, 8
        %s389 = scalar_lea.vmem [#allocation14], %s388
        %s390 = smul.u32 8, %s33
        %s391 = smul.u32 8, %s33
        %p392 = scmp.eq.s32.totalorder %s33, 0
        // Predicated region
        $region53: #{tpu_custom_call.1} parent=35 // pred_check
          %p393 = pneg %p392
        $region54: #{tpu_custom_call.1} parent=35 // pred_check_branch
          %395 = sbr.rel (%p393) target = $region56
        $region55: #{tpu_custom_call.1} parent=35 // pred_region
          %v396 = vld [vmem:[%s332] sm:$0xff]
          %397 = vst [vmem:[#allocation2] sm:$0xff] %v396
          %v398 = vld [vmem:[%s341] sm:$0xff]
          %399 = vst [vmem:[#allocation3] sm:$0xff] %v398
        $region56: #{tpu_custom_call.1} parent=35 // pred_fallthru
          _
        %v400 = vld [vmem:[#allocation2] sm:$0xff]
        %v401 = vld [vmem:[%s319] sm:$0xff]
        %v402 = vld [vmem:[%s319 + $0x8] sm:$0xff]
        %v403 = vld [vmem:[%s319 + $0x10] sm:$0xff]
        %v404 = vld [vmem:[%s319 + $0x18] sm:$0xff]
        %v405 = vld [vmem:[#allocation7] sm:$0xff]
        %v406 = vld [vmem:[#allocation7 + $0x8] sm:$0xff]
        %v407 = vld [vmem:[#allocation7 + $0x10] sm:$0xff]
        %v408 = vld [vmem:[#allocation7 + $0x18] sm:$0xff]
        %v409 = vld [vmem:[#allocation7 + $0x20] sm:$0xff]
        %v410 = vld [vmem:[#allocation7 + $0x28] sm:$0xff]
        %v411 = vld [vmem:[#allocation7 + $0x30] sm:$0xff]
        %v412 = vld [vmem:[#allocation7 + $0x38] sm:$0xff]
        %v413 = vld [vmem:[#allocation7 + $0x40] sm:$0xff]
        %v414 = vld [vmem:[#allocation7 + $0x48] sm:$0xff]
        %v415 = vld [vmem:[#allocation7 + $0x50] sm:$0xff]
        %v416 = vld [vmem:[#allocation7 + $0x58] sm:$0xff]
        %v417 = vld [vmem:[#allocation7 + $0x60] sm:$0xff]
        %v418 = vld [vmem:[#allocation7 + $0x68] sm:$0xff]
        %v419 = vld [vmem:[#allocation7 + $0x70] sm:$0xff]
        %v420 = vld [vmem:[#allocation7 + $0x78] sm:$0xff]
        %v421 = vld [vmem:[#allocation7 + $0x80] sm:$0xff]
        %v422 = vld [vmem:[#allocation7 + $0x88] sm:$0xff]
        %v423 = vld [vmem:[#allocation7 + $0x90] sm:$0xff]
        %v424 = vld [vmem:[#allocation7 + $0x98] sm:$0xff]
        %v425 = vld [vmem:[#allocation7 + $0xa0] sm:$0xff]
        %v426 = vld [vmem:[#allocation7 + $0xa8] sm:$0xff]
        %v427 = vld [vmem:[#allocation7 + $0xb0] sm:$0xff]
        %v428 = vld [vmem:[#allocation7 + $0xb8] sm:$0xff]
        %v429 = vld [vmem:[#allocation7 + $0xc0] sm:$0xff]
        %v430 = vld [vmem:[#allocation7 + $0xc8] sm:$0xff]
        %v431 = vld [vmem:[#allocation7 + $0xd0] sm:$0xff]
        %v432 = vld [vmem:[#allocation7 + $0xd8] sm:$0xff]
        %v433 = vld [vmem:[#allocation7 + $0xe0] sm:$0xff]
        %v434 = vld [vmem:[#allocation7 + $0xe8] sm:$0xff]
        %v435 = vld [vmem:[#allocation7 + $0xf0] sm:$0xff]
        %v436 = vld [vmem:[#allocation7 + $0xf8] sm:$0xff]
        %v437 = vld [vmem:[#allocation7 + $0x100] sm:$0xff]
        %v438 = vld [vmem:[#allocation7 + $0x108] sm:$0xff]
        %v439 = vld [vmem:[#allocation7 + $0x110] sm:$0xff]
        %v440 = vld [vmem:[#allocation7 + $0x118] sm:$0xff]
        %v441 = vld [vmem:[#allocation7 + $0x120] sm:$0xff]
        %v442 = vld [vmem:[#allocation7 + $0x128] sm:$0xff]
        %v443 = vld [vmem:[#allocation7 + $0x130] sm:$0xff]
        %v444 = vld [vmem:[#allocation7 + $0x138] sm:$0xff]
        %v445 = vld [vmem:[#allocation7 + $0x140] sm:$0xff]
        %v446 = vld [vmem:[#allocation7 + $0x148] sm:$0xff]
        %v447 = vld [vmem:[#allocation7 + $0x150] sm:$0xff]
        %v448 = vld [vmem:[#allocation7 + $0x158] sm:$0xff]
        %v449 = vld [vmem:[#allocation7 + $0x160] sm:$0xff]
        %v450 = vld [vmem:[#allocation7 + $0x168] sm:$0xff]
        %v451 = vld [vmem:[#allocation7 + $0x170] sm:$0xff]
        %v452 = vld [vmem:[#allocation7 + $0x178] sm:$0xff]
        %v453 = vld [vmem:[#allocation7 + $0x180] sm:$0xff]
        %v454 = vld [vmem:[#allocation7 + $0x188] sm:$0xff]
        %v455 = vld [vmem:[#allocation7 + $0x190] sm:$0xff]
        %v456 = vld [vmem:[#allocation7 + $0x198] sm:$0xff]
        %v457 = vld [vmem:[#allocation7 + $0x1a0] sm:$0xff]
        %v458 = vld [vmem:[#allocation7 + $0x1a8] sm:$0xff]
        %v459 = vld [vmem:[#allocation7 + $0x1b0] sm:$0xff]
        %v460 = vld [vmem:[#allocation7 + $0x1b8] sm:$0xff]
        %v461 = vld [vmem:[#allocation7 + $0x1c0] sm:$0xff]
        %v462 = vld [vmem:[#allocation7 + $0x1c8] sm:$0xff]
        %v463 = vld [vmem:[#allocation7 + $0x1d0] sm:$0xff]
        %v464 = vld [vmem:[#allocation7 + $0x1d8] sm:$0xff]
        %v465 = vld [vmem:[#allocation7 + $0x1e0] sm:$0xff]
        %v466 = vld [vmem:[#allocation7 + $0x1e8] sm:$0xff]
        %v467 = vld [vmem:[#allocation7 + $0x1f0] sm:$0xff]
        %v468 = vld [vmem:[#allocation7 + $0x1f8] sm:$0xff]
        %469 = vmatprep.subr.mxu0 %v406
        %470 = vmatpush1.msra.mxu0 %v405
        %471 = vmatprep.subr.mxu0 %v410
        %472 = vmatpush1.msra.mxu0 %v409
        %473 = vmatprep.subr.mxu0 %v414
        %474 = vmatpush1.msra.mxu0 %v413
        %475 = vmatprep.subr.mxu0 %v418
        %476 = vmatpush1.msra.mxu0 %v417
        %477 = vmatprep.subr.mxu0 %v422
        %478 = vmatpush1.msra.mxu0 %v421
        %479 = vmatprep.subr.mxu0 %v426
        %480 = vmatpush1.msra.mxu0 %v425
        %481 = vmatprep.subr.mxu0 %v430
        %482 = vmatpush1.msra.mxu0 %v429
        %483 = vmatprep.subr.mxu0 %v434
        %484 = vmatpush1.msra.mxu0 %v433
        %485 = vmatprep.subr.mxu0 %v438
        %486 = vmatpush1.msra.mxu0 %v437
        %487 = vmatprep.subr.mxu0 %v442
        %488 = vmatpush1.msra.mxu0 %v441
        %489 = vmatprep.subr.mxu0 %v446
        %490 = vmatpush1.msra.mxu0 %v445
        %491 = vmatprep.subr.mxu0 %v450
        %492 = vmatpush1.msra.mxu0 %v449
        %493 = vmatprep.subr.mxu0 %v454
        %494 = vmatpush1.msra.mxu0 %v453
        %495 = vmatprep.subr.mxu0 %v458
        %496 = vmatpush1.msra.mxu0 %v457
        %497 = vmatprep.subr.mxu0 %v462
        %498 = vmatpush1.msra.mxu0 %v461
        %499 = vmatprep.subr.mxu0 %v466
        %500 = vmatpush1.msra.mxu0 %v465
        %501 = vmatprep.subr.mxu0 0.0
        %502 = vmatpush1.msra.mxu0 0.0
        %503 = vmatprep.subr.mxu0 0.0
        %504 = vmatpush1.msra.mxu0 0.0
        %505 = vmatprep.subr.mxu0 0.0
        %506 = vmatpush1.msra.mxu0 0.0
        %507 = vmatprep.subr.mxu0 0.0
        %508 = vmatpush1.msra.mxu0 0.0
        %509 = vmatprep.subr.mxu0 0.0
        %510 = vmatpush1.msra.mxu0 0.0
        %511 = vmatprep.subr.mxu0 0.0
        %512 = vmatpush1.msra.mxu0 0.0
        %513 = vmatprep.subr.mxu0 0.0
        %514 = vmatpush1.msra.mxu0 0.0
        %515 = vmatprep.subr.mxu0 0.0
        %516 = vmatpush1.msra.mxu0 0.0
        %517 = vmatprep.subr.mxu0 0.0
        %518 = vmatpush1.msra.mxu0 0.0
        %519 = vmatprep.subr.mxu0 0.0
        %520 = vmatpush1.msra.mxu0 0.0
        %521 = vmatprep.subr.mxu0 0.0
        %522 = vmatpush1.msra.mxu0 0.0
        %523 = vmatprep.subr.mxu0 0.0
        %524 = vmatpush1.msra.mxu0 0.0
        %525 = vmatprep.subr.mxu0 0.0
        %526 = vmatpush1.msra.mxu0 0.0
        %527 = vmatprep.subr.mxu0 0.0
        %528 = vmatpush1.msra.mxu0 0.0
        %529 = vmatprep.subr.mxu0 0.0
        %530 = vmatpush1.msra.mxu0 0.0
        %531 = vmatprep.subr.mxu0 0.0
        %532 = vmatpush1.msra.mxu0 0.0
        %533 = vmatprep.mubr.f32.mxu0 0.0
        %534 = vmatmul.mubr.f32.gmra.mrb[0].mxu0 %v400
        %v535 = vpop.f32.mrb[0].mxu0
        %v536 = vadd.f32 0.0, %v535
        %v537 = vpop.f32.mrb[0].mxu0
        %v538 = vadd.f32 0.0, %v537
        %539 = vdwg.mxu0
        %540 = vmatprep.subr.mxu0 %v408
        %541 = vmatpush1.msra.mxu0 %v407
        %542 = vmatprep.subr.mxu0 %v412
        %543 = vmatpush1.msra.mxu0 %v411
        %544 = vmatprep.subr.mxu0 %v416
        %545 = vmatpush1.msra.mxu0 %v415
        %546 = vmatprep.subr.mxu0 %v420
        %547 = vmatpush1.msra.mxu0 %v419
        %548 = vmatprep.subr.mxu0 %v424
        %549 = vmatpush1.msra.mxu0 %v423
        %550 = vmatprep.subr.mxu0 %v428
        %551 = vmatpush1.msra.mxu0 %v427
        %552 = vmatprep.subr.mxu0 %v432
        %553 = vmatpush1.msra.mxu0 %v431
        %554 = vmatprep.subr.mxu0 %v436
        %555 = vmatpush1.msra.mxu0 %v435
        %556 = vmatprep.subr.mxu0 %v440
        %557 = vmatpush1.msra.mxu0 %v439
        %558 = vmatprep.subr.mxu0 %v444
        %559 = vmatpush1.msra.mxu0 %v443
        %560 = vmatprep.subr.mxu0 %v448
        %561 = vmatpush1.msra.mxu0 %v447
        %562 = vmatprep.subr.mxu0 %v452
        %563 = vmatpush1.msra.mxu0 %v451
        %564 = vmatprep.subr.mxu0 %v456
        %565 = vmatpush1.msra.mxu0 %v455
        %566 = vmatprep.subr.mxu0 %v460
        %567 = vmatpush1.msra.mxu0 %v459
        %568 = vmatprep.subr.mxu0 %v464
        %569 = vmatpush1.msra.mxu0 %v463
        %570 = vmatprep.subr.mxu0 %v468
        %571 = vmatpush1.msra.mxu0 %v467
        %572 = vmatprep.subr.mxu0 0.0
        %573 = vmatpush1.msra.mxu0 0.0
        %574 = vmatprep.subr.mxu0 0.0
        %575 = vmatpush1.msra.mxu0 0.0
        %576 = vmatprep.subr.mxu0 0.0
        %577 = vmatpush1.msra.mxu0 0.0
        %578 = vmatprep.subr.mxu0 0.0
        %579 = vmatpush1.msra.mxu0 0.0
        %580 = vmatprep.subr.mxu0 0.0
        %581 = vmatpush1.msra.mxu0 0.0
        %582 = vmatprep.subr.mxu0 0.0
        %583 = vmatpush1.msra.mxu0 0.0
        %584 = vmatprep.subr.mxu0 0.0
        %585 = vmatpush1.msra.mxu0 0.0
        %586 = vmatprep.subr.mxu0 0.0
        %587 = vmatpush1.msra.mxu0 0.0
        %588 = vmatprep.subr.mxu0 0.0
        %589 = vmatpush1.msra.mxu0 0.0
        %590 = vmatprep.subr.mxu0 0.0
        %591 = vmatpush1.msra.mxu0 0.0
        %592 = vmatprep.subr.mxu0 0.0
        %593 = vmatpush1.msra.mxu0 0.0
        %594 = vmatprep.subr.mxu0 0.0
        %595 = vmatpush1.msra.mxu0 0.0
        %596 = vmatprep.subr.mxu0 0.0
        %597 = vmatpush1.msra.mxu0 0.0
        %598 = vmatprep.subr.mxu0 0.0
        %599 = vmatpush1.msra.mxu0 0.0
        %600 = vmatprep.subr.mxu0 0.0
        %601 = vmatpush1.msra.mxu0 0.0
        %602 = vmatprep.subr.mxu0 0.0
        %603 = vmatpush1.msra.mxu0 0.0
        %604 = vmatprep.mubr.f32.mxu0 0.0
        %605 = vmatmul.mubr.f32.gmra.mrb[0].mxu0 %v400
        %v606 = vpop.f32.mrb[0].mxu0
        %v607 = vadd.f32 0.0, %v606
        %v608 = vpop.f32.mrb[0].mxu0
        %v609 = vadd.f32 0.0, %v608
        %610 = vdwg.mxu0
        %v611 = vadd.f32 %v401, %v536
        %v612 = vadd.f32 %v402, %v538
        %v613 = vadd.f32 %v403, %v607
        %v614 = vadd.f32 %v404, %v609
        %v615 = vxor.u32 %v611, 2147483648
        %v616 = vxor.u32 %v612, 2147483648
        %v617 = vxor.u32 %v613, 2147483648
        %v618 = vmul.f32 %v615, 1.442695
        %v619 = vpow.pop %v618
        %v620 = vmul.f32 %v616, 1.442695
        %v621 = vpow.pop %v620
        %v622 = vmul.f32 %v617, 1.442695
        %v623 = vpow.pop %v622
        %v624 = vadd.f32 %v619, 1.0
        %v625 = vadd.f32 %v621, 1.0
        %v626 = vadd.f32 %v623, 1.0
        %v627 = vrcp.pop %v624
        %v628 = vmul.f32 1.0, %v627
        %v629 = vrcp.pop %v625
        %v630 = vmul.f32 1.0, %v629
        %v631 = vrcp.pop %v626
        %v632 = vmul.f32 1.0, %v631
        %v633 = vtanh.pop %v614
        %v634 = vld [vmem:[#allocation3] sm:$0xff]
        %v635 = vmul.f32 %v630, %v634
        %v636 = vmul.f32 %v628, %v633
        %v637 = vadd.f32 %v635, %v636
        %v638 = vtanh.pop %v637
        %v639 = vmul.f32 %v632, %v638
        %640 = vst [vmem:[#allocation3] sm:$0xff] %v637
        %641 = vst [vmem:[#allocation2] sm:$0xff] %v639
        %642 = vst [vmem:[%s375] sm:$0xff] %v639
        %v643 = vld [vmem:[#allocation2] sm:$0xff]
        %s644 = scalar_lea.vmem %s319, 32 [#allocation4]
        %v645 = vld [vmem:[%s644] sm:$0xff]
        %v646 = vld [vmem:[%s644 + $0x8] sm:$0xff]
        %v647 = vld [vmem:[%s644 + $0x10] sm:$0xff]
        %v648 = vld [vmem:[%s644 + $0x18] sm:$0xff]
        %v649 = vld [vmem:[#allocation7] sm:$0xff]
        %v650 = vld [vmem:[#allocation7 + $0x8] sm:$0xff]
        %v651 = vld [vmem:[#allocation7 + $0x10] sm:$0xff]
        %v652 = vld [vmem:[#allocation7 + $0x18] sm:$0xff]
        %v653 = vld [vmem:[#allocation7 + $0x20] sm:$0xff]
        %v654 = vld [vmem:[#allocation7 + $0x28] sm:$0xff]
        %v655 = vld [vmem:[#allocation7 + $0x30] sm:$0xff]
        %v656 = vld [vmem:[#allocation7 + $0x38] sm:$0xff]
        %v657 = vld [vmem:[#allocation7 + $0x40] sm:$0xff]
        %v658 = vld [vmem:[#allocation7 + $0x48] sm:$0xff]
        %v659 = vld [vmem:[#allocation7 + $0x50] sm:$0xff]
        %v660 = vld [vmem:[#allocation7 + $0x58] sm:$0xff]
        %v661 = vld [vmem:[#allocation7 + $0x60] sm:$0xff]
        %v662 = vld [vmem:[#allocation7 + $0x68] sm:$0xff]
        %v663 = vld [vmem:[#allocation7 + $0x70] sm:$0xff]
        %v664 = vld [vmem:[#allocation7 + $0x78] sm:$0xff]
        %v665 = vld [vmem:[#allocation7 + $0x80] sm:$0xff]
        %v666 = vld [vmem:[#allocation7 + $0x88] sm:$0xff]
        %v667 = vld [vmem:[#allocation7 + $0x90] sm:$0xff]
        %v668 = vld [vmem:[#allocation7 + $0x98] sm:$0xff]
        %v669 = vld [vmem:[#allocation7 + $0xa0] sm:$0xff]
        %v670 = vld [vmem:[#allocation7 + $0xa8] sm:$0xff]
        %v671 = vld [vmem:[#allocation7 + $0xb0] sm:$0xff]
        %v672 = vld [vmem:[#allocation7 + $0xb8] sm:$0xff]
        %v673 = vld [vmem:[#allocation7 + $0xc0] sm:$0xff]
        %v674 = vld [vmem:[#allocation7 + $0xc8] sm:$0xff]
        %v675 = vld [vmem:[#allocation7 + $0xd0] sm:$0xff]
        %v676 = vld [vmem:[#allocation7 + $0xd8] sm:$0xff]
        %v677 = vld [vmem:[#allocation7 + $0xe0] sm:$0xff]
        %v678 = vld [vmem:[#allocation7 + $0xe8] sm:$0xff]
        %v679 = vld [vmem:[#allocation7 + $0xf0] sm:$0xff]
        %v680 = vld [vmem:[#allocation7 + $0xf8] sm:$0xff]
        %v681 = vld [vmem:[#allocation7 + $0x100] sm:$0xff]
        %v682 = vld [vmem:[#allocation7 + $0x108] sm:$0xff]
        %v683 = vld [vmem:[#allocation7 + $0x110] sm:$0xff]
        %v684 = vld [vmem:[#allocation7 + $0x118] sm:$0xff]
        %v685 = vld [vmem:[#allocation7 + $0x120] sm:$0xff]
        %v686 = vld [vmem:[#allocation7 + $0x128] sm:$0xff]
        %v687 = vld [vmem:[#allocation7 + $0x130] sm:$0xff]
        %v688 = vld [vmem:[#allocation7 + $0x138] sm:$0xff]
        %v689 = vld [vmem:[#allocation7 + $0x140] sm:$0xff]
        %v690 = vld [vmem:[#allocation7 + $0x148] sm:$0xff]
        %v691 = vld [vmem:[#allocation7 + $0x150] sm:$0xff]
        %v692 = vld [vmem:[#allocation7 + $0x158] sm:$0xff]
        %v693 = vld [vmem:[#allocation7 + $0x160] sm:$0xff]
        %v694 = vld [vmem:[#allocation7 + $0x168] sm:$0xff]
        %v695 = vld [vmem:[#allocation7 + $0x170] sm:$0xff]
        %v696 = vld [vmem:[#allocation7 + $0x178] sm:$0xff]
        %v697 = vld [vmem:[#allocation7 + $0x180] sm:$0xff]
        %v698 = vld [vmem:[#allocation7 + $0x188] sm:$0xff]
        %v699 = vld [vmem:[#allocation7 + $0x190] sm:$0xff]
        %v700 = vld [vmem:[#allocation7 + $0x198] sm:$0xff]
        %v701 = vld [vmem:[#allocation7 + $0x1a0] sm:$0xff]
        %v702 = vld [vmem:[#allocation7 + $0x1a8] sm:$0xff]
        %v703 = vld [vmem:[#allocation7 + $0x1b0] sm:$0xff]
        %v704 = vld [vmem:[#allocation7 + $0x1b8] sm:$0xff]
        %v705 = vld [vmem:[#allocation7 + $0x1c0] sm:$0xff]
        %v706 = vld [vmem:[#allocation7 + $0x1c8] sm:$0xff]
        %v707 = vld [vmem:[#allocation7 + $0x1d0] sm:$0xff]
        %v708 = vld [vmem:[#allocation7 + $0x1d8] sm:$0xff]
        %v709 = vld [vmem:[#allocation7 + $0x1e0] sm:$0xff]
        %v710 = vld [vmem:[#allocation7 + $0x1e8] sm:$0xff]
        %v711 = vld [vmem:[#allocation7 + $0x1f0] sm:$0xff]
        %v712 = vld [vmem:[#allocation7 + $0x1f8] sm:$0xff]
        %713 = vmatprep.subr.mxu0 %v650
        %714 = vmatpush1.msra.mxu0 %v649
        %715 = vmatprep.subr.mxu0 %v654
        %716 = vmatpush1.msra.mxu0 %v653
        %717 = vmatprep.subr.mxu0 %v658
        %718 = vmatpush1.msra.mxu0 %v657
        %719 = vmatprep.subr.mxu0 %v662
        %720 = vmatpush1.msra.mxu0 %v661
        %721 = vmatprep.subr.mxu0 %v666
        %722 = vmatpush1.msra.mxu0 %v665
        %723 = vmatprep.subr.mxu0 %v670
        %724 = vmatpush1.msra.mxu0 %v669
        %725 = vmatprep.subr.mxu0 %v674
        %726 = vmatpush1.msra.mxu0 %v673
        %727 = vmatprep.subr.mxu0 %v678
        %728 = vmatpush1.msra.mxu0 %v677
        %729 = vmatprep.subr.mxu0 %v682
        %730 = vmatpush1.msra.mxu0 %v681
        %731 = vmatprep.subr.mxu0 %v686
        %732 = vmatpush1.msra.mxu0 %v685
        %733 = vmatprep.subr.mxu0 %v690
        %734 = vmatpush1.msra.mxu0 %v689
        %735 = vmatprep.subr.mxu0 %v694
        %736 = vmatpush1.msra.mxu0 %v693
        %737 = vmatprep.subr.mxu0 %v698
        %738 = vmatpush1.msra.mxu0 %v697
        %739 = vmatprep.subr.mxu0 %v702
        %740 = vmatpush1.msra.mxu0 %v701
        %741 = vmatprep.subr.mxu0 %v706
        %742 = vmatpush1.msra.mxu0 %v705
        %743 = vmatprep.subr.mxu0 %v710
        %744 = vmatpush1.msra.mxu0 %v709
        %745 = vmatprep.subr.mxu0 0.0
        %746 = vmatpush1.msra.mxu0 0.0
        %747 = vmatprep.subr.mxu0 0.0
        %748 = vmatpush1.msra.mxu0 0.0
        %749 = vmatprep.subr.mxu0 0.0
        %750 = vmatpush1.msra.mxu0 0.0
        %751 = vmatprep.subr.mxu0 0.0
        %752 = vmatpush1.msra.mxu0 0.0
        %753 = vmatprep.subr.mxu0 0.0
        %754 = vmatpush1.msra.mxu0 0.0
        %755 = vmatprep.subr.mxu0 0.0
        %756 = vmatpush1.msra.mxu0 0.0
        %757 = vmatprep.subr.mxu0 0.0
        %758 = vmatpush1.msra.mxu0 0.0
        %759 = vmatprep.subr.mxu0 0.0
        %760 = vmatpush1.msra.mxu0 0.0
        %761 = vmatprep.subr.mxu0 0.0
        %762 = vmatpush1.msra.mxu0 0.0
        %763 = vmatprep.subr.mxu0 0.0
        %764 = vmatpush1.msra.mxu0 0.0
        %765 = vmatprep.subr.mxu0 0.0
        %766 = vmatpush1.msra.mxu0 0.0
        %767 = vmatprep.subr.mxu0 0.0
        %768 = vmatpush1.msra.mxu0 0.0
        %769 = vmatprep.subr.mxu0 0.0
        %770 = vmatpush1.msra.mxu0 0.0
        %771 = vmatprep.subr.mxu0 0.0
        %772 = vmatpush1.msra.mxu0 0.0
        %773 = vmatprep.subr.mxu0 0.0
        %774 = vmatpush1.msra.mxu0 0.0
        %775 = vmatprep.subr.mxu0 0.0
        %776 = vmatpush1.msra.mxu0 0.0
        %777 = vmatprep.mubr.f32.mxu0 0.0
        %778 = vmatmul.mubr.f32.gmra.mrb[0].mxu0 %v643
        %v779 = vpop.f32.mrb[0].mxu0
        %v780 = vadd.f32 0.0, %v779
        %v781 = vpop.f32.mrb[0].mxu0
        %v782 = vadd.f32 0.0, %v781
        %783 = vdwg.mxu0
        %784 = vmatprep.subr.mxu0 %v652
        %785 = vmatpush1.msra.mxu0 %v651
        %786 = vmatprep.subr.mxu0 %v656
        %787 = vmatpush1.msra.mxu0 %v655
        %788 = vmatprep.subr.mxu0 %v660
        %789 = vmatpush1.msra.mxu0 %v659
        %790 = vmatprep.subr.mxu0 %v664
        %791 = vmatpush1.msra.mxu0 %v663
        %792 = vmatprep.subr.mxu0 %v668
        %793 = vmatpush1.msra.mxu0 %v667
        %794 = vmatprep.subr.mxu0 %v672
        %795 = vmatpush1.msra.mxu0 %v671
        %796 = vmatprep.subr.mxu0 %v676
        %797 = vmatpush1.msra.mxu0 %v675
        %798 = vmatprep.subr.mxu0 %v680
        %799 = vmatpush1.msra.mxu0 %v679
        %800 = vmatprep.subr.mxu0 %v684
        %801 = vmatpush1.msra.mxu0 %v683
        %802 = vmatprep.subr.mxu0 %v688
        %803 = vmatpush1.msra.mxu0 %v687
        %804 = vmatprep.subr.mxu0 %v692
        %805 = vmatpush1.msra.mxu0 %v691
        %806 = vmatprep.subr.mxu0 %v696
        %807 = vmatpush1.msra.mxu0 %v695
        %808 = vmatprep.subr.mxu0 %v700
        %809 = vmatpush1.msra.mxu0 %v699
        %810 = vmatprep.subr.mxu0 %v704
        %811 = vmatpush1.msra.mxu0 %v703
        %812 = vmatprep.subr.mxu0 %v708
        %813 = vmatpush1.msra.mxu0 %v707
        %814 = vmatprep.subr.mxu0 %v712
        %815 = vmatpush1.msra.mxu0 %v711
        %816 = vmatprep.subr.mxu0 0.0
        %817 = vmatpush1.msra.mxu0 0.0
        %818 = vmatprep.subr.mxu0 0.0
        %819 = vmatpush1.msra.mxu0 0.0
        %820 = vmatprep.subr.mxu0 0.0
        %821 = vmatpush1.msra.mxu0 0.0
        %822 = vmatprep.subr.mxu0 0.0
        %823 = vmatpush1.msra.mxu0 0.0
        %824 = vmatprep.subr.mxu0 0.0
        %825 = vmatpush1.msra.mxu0 0.0
        %826 = vmatprep.subr.mxu0 0.0
        %827 = vmatpush1.msra.mxu0 0.0
        %828 = vmatprep.subr.mxu0 0.0
        %829 = vmatpush1.msra.mxu0 0.0
        %830 = vmatprep.subr.mxu0 0.0
        %831 = vmatpush1.msra.mxu0 0.0
        %832 = vmatprep.subr.mxu0 0.0
        %833 = vmatpush1.msra.mxu0 0.0
        %834 = vmatprep.subr.mxu0 0.0
        %835 = vmatpush1.msra.mxu0 0.0
        %836 = vmatprep.subr.mxu0 0.0
        %837 = vmatpush1.msra.mxu0 0.0
        %838 = vmatprep.subr.mxu0 0.0
        %839 = vmatpush1.msra.mxu0 0.0
        %840 = vmatprep.subr.mxu0 0.0
        %841 = vmatpush1.msra.mxu0 0.0
        %842 = vmatprep.subr.mxu0 0.0
        %843 = vmatpush1.msra.mxu0 0.0
        %844 = vmatprep.subr.mxu0 0.0
        %845 = vmatpush1.msra.mxu0 0.0
        %846 = vmatprep.subr.mxu0 0.0
        %847 = vmatpush1.msra.mxu0 0.0
        %848 = vmatprep.mubr.f32.mxu0 0.0
        %849 = vmatmul.mubr.f32.gmra.mrb[0].mxu0 %v643
        %v850 = vpop.f32.mrb[0].mxu0
        %v851 = vadd.f32 0.0, %v850
        %v852 = vpop.f32.mrb[0].mxu0
        %v853 = vadd.f32 0.0, %v852
        %854 = vdwg.mxu0
        %v855 = vadd.f32 %v645, %v780
        %v856 = vadd.f32 %v646, %v782
        %v857 = vadd.f32 %v647, %v851
        %v858 = vadd.f32 %v648, %v853
        %v859 = vxor.u32 %v855, 2147483648
        %v860 = vxor.u32 %v856, 2147483648
        %v861 = vxor.u32 %v857, 2147483648
        %v862 = vmul.f32 %v859, 1.442695
        %v863 = vpow.pop %v862
        %v864 = vmul.f32 %v860, 1.442695
        %v865 = vpow.pop %v864
        %v866 = vmul.f32 %v861, 1.442695
        %v867 = vpow.pop %v866
        %v868 = vadd.f32 %v863, 1.0
        %v869 = vadd.f32 %v865, 1.0
        %v870 = vadd.f32 %v867, 1.0
        %v871 = vrcp.pop %v868
        %v872 = vmul.f32 1.0, %v871
        %v873 = vrcp.pop %v869
        %v874 = vmul.f32 1.0, %v873
        %v875 = vrcp.pop %v870
        %v876 = vmul.f32 1.0, %v875
        %v877 = vtanh.pop %v858
        %v878 = vld [vmem:[#allocation3] sm:$0xff]
        %v879 = vmul.f32 %v874, %v878
        %v880 = vmul.f32 %v872, %v877
        %v881 = vadd.f32 %v879, %v880
        %v882 = vtanh.pop %v881
        %v883 = vmul.f32 %v876, %v882
        %884 = vst [vmem:[#allocation3] sm:$0xff] %v881
        %885 = vst [vmem:[#allocation2] sm:$0xff] %v883
        %s886 = scalar_lea.vmem %s375, 8 [#allocation11]
        %887 = vst [vmem:[%s886] sm:$0xff] %v883
        %v888 = vld [vmem:[#allocation2] sm:$0xff]
        %s889 = scalar_lea.vmem %s319, 64 [#allocation4]
        %v890 = vld [vmem:[%s889] sm:$0xff]
        %v891 = vld [vmem:[%s889 + $0x8] sm:$0xff]
        %v892 = vld [vmem:[%s889 + $0x10] sm:$0xff]
        %v893 = vld [vmem:[%s889 + $0x18] sm:$0xff]
        %v894 = vld [vmem:[#allocation7] sm:$0xff]
        %v895 = vld [vmem:[#allocation7 + $0x8] sm:$0xff]
        %v896 = vld [vmem:[#allocation7 + $0x10] sm:$0xff]
        %v897 = vld [vmem:[#allocation7 + $0x18] sm:$0xff]
        %v898 = vld [vmem:[#allocation7 + $0x20] sm:$0xff]
        %v899 = vld [vmem:[#allocation7 + $0x28] sm:$0xff]
        %v900 = vld [vmem:[#allocation7 + $0x30] sm:$0xff]
        %v901 = vld [vmem:[#allocation7 + $0x38] sm:$0xff]
        %v902 = vld [vmem:[#allocation7 + $0x40] sm:$0xff]
        %v903 = vld [vmem:[#allocation7 + $0x48] sm:$0xff]
        %v904 = vld [vmem:[#allocation7 + $0x50] sm:$0xff]
        %v905 = vld [vmem:[#allocation7 + $0x58] sm:$0xff]
        %v906 = vld [vmem:[#allocation7 + $0x60] sm:$0xff]
        %v907 = vld [vmem:[#allocation7 + $0x68] sm:$0xff]
        %v908 = vld [vmem:[#allocation7 + $0x70] sm:$0xff]
        %v909 = vld [vmem:[#allocation7 + $0x78] sm:$0xff]
        %v910 = vld [vmem:[#allocation7 + $0x80] sm:$0xff]
        %v911 = vld [vmem:[#allocation7 + $0x88] sm:$0xff]
        %v912 = vld [vmem:[#allocation7 + $0x90] sm:$0xff]
        %v913 = vld [vmem:[#allocation7 + $0x98] sm:$0xff]
        %v914 = vld [vmem:[#allocation7 + $0xa0] sm:$0xff]
        %v915 = vld [vmem:[#allocation7 + $0xa8] sm:$0xff]
        %v916 = vld [vmem:[#allocation7 + $0xb0] sm:$0xff]
        %v917 = vld [vmem:[#allocation7 + $0xb8] sm:$0xff]
        %v918 = vld [vmem:[#allocation7 + $0xc0] sm:$0xff]
        %v919 = vld [vmem:[#allocation7 + $0xc8] sm:$0xff]
        %v920 = vld [vmem:[#allocation7 + $0xd0] sm:$0xff]
        %v921 = vld [vmem:[#allocation7 + $0xd8] sm:$0xff]
        %v922 = vld [vmem:[#allocation7 + $0xe0] sm:$0xff]
        %v923 = vld [vmem:[#allocation7 + $0xe8] sm:$0xff]
        %v924 = vld [vmem:[#allocation7 + $0xf0] sm:$0xff]
        %v925 = vld [vmem:[#allocation7 + $0xf8] sm:$0xff]
        %v926 = vld [vmem:[#allocation7 + $0x100] sm:$0xff]
        %v927 = vld [vmem:[#allocation7 + $0x108] sm:$0xff]
        %v928 = vld [vmem:[#allocation7 + $0x110] sm:$0xff]
        %v929 = vld [vmem:[#allocation7 + $0x118] sm:$0xff]
        %v930 = vld [vmem:[#allocation7 + $0x120] sm:$0xff]
        %v931 = vld [vmem:[#allocation7 + $0x128] sm:$0xff]
        %v932 = vld [vmem:[#allocation7 + $0x130] sm:$0xff]
        %v933 = vld [vmem:[#allocation7 + $0x138] sm:$0xff]
        %v934 = vld [vmem:[#allocation7 + $0x140] sm:$0xff]
        %v935 = vld [vmem:[#allocation7 + $0x148] sm:$0xff]
        %v936 = vld [vmem:[#allocation7 + $0x150] sm:$0xff]
        %v937 = vld [vmem:[#allocation7 + $0x158] sm:$0xff]
        %v938 = vld [vmem:[#allocation7 + $0x160] sm:$0xff]
        %v939 = vld [vmem:[#allocation7 + $0x168] sm:$0xff]
        %v940 = vld [vmem:[#allocation7 + $0x170] sm:$0xff]
        %v941 = vld [vmem:[#allocation7 + $0x178] sm:$0xff]
        %v942 = vld [vmem:[#allocation7 + $0x180] sm:$0xff]
        %v943 = vld [vmem:[#allocation7 + $0x188] sm:$0xff]
        %v944 = vld [vmem:[#allocation7 + $0x190] sm:$0xff]
        %v945 = vld [vmem:[#allocation7 + $0x198] sm:$0xff]
        %v946 = vld [vmem:[#allocation7 + $0x1a0] sm:$0xff]
        %v947 = vld [vmem:[#allocation7 + $0x1a8] sm:$0xff]
        %v948 = vld [vmem:[#allocation7 + $0x1b0] sm:$0xff]
        %v949 = vld [vmem:[#allocation7 + $0x1b8] sm:$0xff]
        %v950 = vld [vmem:[#allocation7 + $0x1c0] sm:$0xff]
        %v951 = vld [vmem:[#allocation7 + $0x1c8] sm:$0xff]
        %v952 = vld [vmem:[#allocation7 + $0x1d0] sm:$0xff]
        %v953 = vld [vmem:[#allocation7 + $0x1d8] sm:$0xff]
        %v954 = vld [vmem:[#allocation7 + $0x1e0] sm:$0xff]
        %v955 = vld [vmem:[#allocation7 + $0x1e8] sm:$0xff]
        %v956 = vld [vmem:[#allocation7 + $0x1f0] sm:$0xff]
        %v957 = vld [vmem:[#allocation7 + $0x1f8] sm:$0xff]
        %958 = vmatprep.subr.mxu0 %v895
        %959 = vmatpush1.msra.mxu0 %v894
        %960 = vmatprep.subr.mxu0 %v899
        %961 = vmatpush1.msra.mxu0 %v898
        %962 = vmatprep.subr.mxu0 %v903
        %963 = vmatpush1.msra.mxu0 %v902
        %964 = vmatprep.subr.mxu0 %v907
        %965 = vmatpush1.msra.mxu0 %v906
        %966 = vmatprep.subr.mxu0 %v911
        %967 = vmatpush1.msra.mxu0 %v910
        %968 = vmatprep.subr.mxu0 %v915
        %969 = vmatpush1.msra.mxu0 %v914
        %970 = vmatprep.subr.mxu0 %v919
        %971 = vmatpush1.msra.mxu0 %v918
        %972 = vmatprep.subr.mxu0 %v923
        %973 = vmatpush1.msra.mxu0 %v922
        %974 = vmatprep.subr.mxu0 %v927
        %975 = vmatpush1.msra.mxu0 %v926
        %976 = vmatprep.subr.mxu0 %v931
        %977 = vmatpush1.msra.mxu0 %v930
        %978 = vmatprep.subr.mxu0 %v935
        %979 = vmatpush1.msra.mxu0 %v934
        %980 = vmatprep.subr.mxu0 %v939
        %981 = vmatpush1.msra.mxu0 %v938
        %982 = vmatprep.subr.mxu0 %v943
        %983 = vmatpush1.msra.mxu0 %v942
        %984 = vmatprep.subr.mxu0 %v947
        %985 = vmatpush1.msra.mxu0 %v946
        %986 = vmatprep.subr.mxu0 %v951
        %987 = vmatpush1.msra.mxu0 %v950
        %988 = vmatprep.subr.mxu0 %v955
        %989 = vmatpush1.msra.mxu0 %v954
        %990 = vmatprep.subr.mxu0 0.0
        %991 = vmatpush1.msra.mxu0 0.0
        %992 = vmatprep.subr.mxu0 0.0
        %993 = vmatpush1.msra.mxu0 0.0
        %994 = vmatprep.subr.mxu0 0.0
        %995 = vmatpush1.msra.mxu0 0.0
        %996 = vmatprep.subr.mxu0 0.0
        %997 = vmatpush1.msra.mxu0 0.0
        %998 = vmatprep.subr.mxu0 0.0
        %999 = vmatpush1.msra.mxu0 0.0
        %1000 = vmatprep.subr.mxu0 0.0
        %1001 = vmatpush1.msra.mxu0 0.0
        %1002 = vmatprep.subr.mxu0 0.0
        %1003 = vmatpush1.msra.mxu0 0.0
        %1004 = vmatprep.subr.mxu0 0.0
        %1005 = vmatpush1.msra.mxu0 0.0
        %1006 = vmatprep.subr.mxu0 0.0
        %1007 = vmatpush1.msra.mxu0 0.0
        %1008 = vmatprep.subr.mxu0 0.0
        %1009 = vmatpush1.msra.mxu0 0.0
        %1010 = vmatprep.subr.mxu0 0.0
        %1011 = vmatpush1.msra.mxu0 0.0
        %1012 = vmatprep.subr.mxu0 0.0
        %1013 = vmatpush1.msra.mxu0 0.0
        %1014 = vmatprep.subr.mxu0 0.0
        %1015 = vmatpush1.msra.mxu0 0.0
        %1016 = vmatprep.subr.mxu0 0.0
        %1017 = vmatpush1.msra.mxu0 0.0
        %1018 = vmatprep.subr.mxu0 0.0
        %1019 = vmatpush1.msra.mxu0 0.0
        %1020 = vmatprep.subr.mxu0 0.0
        %1021 = vmatpush1.msra.mxu0 0.0
        %1022 = vmatprep.mubr.f32.mxu0 0.0
        %1023 = vmatmul.mubr.f32.gmra.mrb[0].mxu0 %v888
        %v1024 = vpop.f32.mrb[0].mxu0
        %v1025 = vadd.f32 0.0, %v1024
        %v1026 = vpop.f32.mrb[0].mxu0
        %v1027 = vadd.f32 0.0, %v1026
        %1028 = vdwg.mxu0
        %1029 = vmatprep.subr.mxu0 %v897
        %1030 = vmatpush1.msra.mxu0 %v896
        %1031 = vmatprep.subr.mxu0 %v901
        %1032 = vmatpush1.msra.mxu0 %v900
        %1033 = vmatprep.subr.mxu0 %v905
        %1034 = vmatpush1.msra.mxu0 %v904
        %1035 = vmatprep.subr.mxu0 %v909
        %1036 = vmatpush1.msra.mxu0 %v908
        %1037 = vmatprep.subr.mxu0 %v913
        %1038 = vmatpush1.msra.mxu0 %v912
        %1039 = vmatprep.subr.mxu0 %v917
        %1040 = vmatpush1.msra.mxu0 %v916
        %1041 = vmatprep.subr.mxu0 %v921
        %1042 = vmatpush1.msra.mxu0 %v920
        %1043 = vmatprep.subr.mxu0 %v925
        %1044 = vmatpush1.msra.mxu0 %v924
        %1045 = vmatprep.subr.mxu0 %v929
        %1046 = vmatpush1.msra.mxu0 %v928
        %1047 = vmatprep.subr.mxu0 %v933
        %1048 = vmatpush1.msra.mxu0 %v932
        %1049 = vmatprep.subr.mxu0 %v937
        %1050 = vmatpush1.msra.mxu0 %v936
        %1051 = vmatprep.subr.mxu0 %v941
        %1052 = vmatpush1.msra.mxu0 %v940
        %1053 = vmatprep.subr.mxu0 %v945
        %1054 = vmatpush1.msra.mxu0 %v944
        %1055 = vmatprep.subr.mxu0 %v949
        %1056 = vmatpush1.msra.mxu0 %v948
        %1057 = vmatprep.subr.mxu0 %v953
        %1058 = vmatpush1.msra.mxu0 %v952
        %1059 = vmatprep.subr.mxu0 %v957
        %1060 = vmatpush1.msra.mxu0 %v956
        %1061 = vmatprep.subr.mxu0 0.0
        %1062 = vmatpush1.msra.mxu0 0.0
        %1063 = vmatprep.subr.mxu0 0.0
        %1064 = vmatpush1.msra.mxu0 0.0
        %1065 = vmatprep.subr.mxu0 0.0
        %1066 = vmatpush1.msra.mxu0 0.0
        %1067 = vmatprep.subr.mxu0 0.0
        %1068 = vmatpush1.msra.mxu0 0.0
        %1069 = vmatprep.subr.mxu0 0.0
        %1070 = vmatpush1.msra.mxu0 0.0
        %1071 = vmatprep.subr.mxu0 0.0
        %1072 = vmatpush1.msra.mxu0 0.0
        %1073 = vmatprep.subr.mxu0 0.0
        %1074 = vmatpush1.msra.mxu0 0.0
        %1075 = vmatprep.subr.mxu0 0.0
        %1076 = vmatpush1.msra.mxu0 0.0
        %1077 = vmatprep.subr.mxu0 0.0
        %1078 = vmatpush1.msra.mxu0 0.0
        %1079 = vmatprep.subr.mxu0 0.0
        %1080 = vmatpush1.msra.mxu0 0.0
        %1081 = vmatprep.subr.mxu0 0.0
        %1082 = vmatpush1.msra.mxu0 0.0
        %1083 = vmatprep.subr.mxu0 0.0
        %1084 = vmatpush1.msra.mxu0 0.0
        %1085 = vmatprep.subr.mxu0 0.0
        %1086 = vmatpush1.msra.mxu0 0.0
        %1087 = vmatprep.subr.mxu0 0.0
        %1088 = vmatpush1.msra.mxu0 0.0
        %1089 = vmatprep.subr.mxu0 0.0
        %1090 = vmatpush1.msra.mxu0 0.0
        %1091 = vmatprep.subr.mxu0 0.0
        %1092 = vmatpush1.msra.mxu0 0.0
        %1093 = vmatprep.mubr.f32.mxu0 0.0
        %1094 = vmatmul.mubr.f32.gmra.mrb[0].mxu0 %v888
        %v1095 = vpop.f32.mrb[0].mxu0
        %v1096 = vadd.f32 0.0, %v1095
        %v1097 = vpop.f32.mrb[0].mxu0
        %v1098 = vadd.f32 0.0, %v1097
        %1099 = vdwg.mxu0
        %v1100 = vadd.f32 %v890, %v1025
        %v1101 = vadd.f32 %v891, %v1027
        %v1102 = vadd.f32 %v892, %v1096
        %v1103 = vadd.f32 %v893, %v1098
        %v1104 = vxor.u32 %v1100, 2147483648
        %v1105 = vxor.u32 %v1101, 2147483648
        %v1106 = vxor.u32 %v1102, 2147483648
        %v1107 = vmul.f32 %v1104, 1.442695
        %v1108 = vpow.pop %v1107
        %v1109 = vmul.f32 %v1105, 1.442695
        %v1110 = vpow.pop %v1109
        %v1111 = vmul.f32 %v1106, 1.442695
        %v1112 = vpow.pop %v1111
        %v1113 = vadd.f32 %v1108, 1.0
        %v1114 = vadd.f32 %v1110, 1.0
        %v1115 = vadd.f32 %v1112, 1.0
        %v1116 = vrcp.pop %v1113
        %v1117 = vmul.f32 1.0, %v1116
        %v1118 = vrcp.pop %v1114
        %v1119 = vmul.f32 1.0, %v1118
        %v1120 = vrcp.pop %v1115
        %v1121 = vmul.f32 1.0, %v1120
        %v1122 = vtanh.pop %v1103
        %v1123 = vld [vmem:[#allocation3] sm:$0xff]
        %v1124 = vmul.f32 %v1119, %v1123
        %v1125 = vmul.f32 %v1117, %v1122
        %v1126 = vadd.f32 %v1124, %v1125
        %v1127 = vtanh.pop %v1126
        %v1128 = vmul.f32 %v1121, %v1127
        %1129 = vst [vmem:[#allocation3] sm:$0xff] %v1126
        %1130 = vst [vmem:[#allocation2] sm:$0xff] %v1128
        %s1131 = scalar_lea.vmem %s375, 16 [#allocation11]
        %1132 = vst [vmem:[%s1131] sm:$0xff] %v1128
        %v1133 = vld [vmem:[#allocation2] sm:$0xff]
        %s1134 = scalar_lea.vmem %s319, 96 [#allocation4]
        %v1135 = vld [vmem:[%s1134] sm:$0xff]
        %v1136 = vld [vmem:[%s1134 + $0x8] sm:$0xff]
        %v1137 = vld [vmem:[%s1134 + $0x10] sm:$0xff]
        %v1138 = vld [vmem:[%s1134 + $0x18] sm:$0xff]
        %v1139 = vld [vmem:[#allocation7] sm:$0xff]
        %v1140 = vld [vmem:[#allocation7 + $0x8] sm:$0xff]
        %v1141 = vld [vmem:[#allocation7 + $0x10] sm:$0xff]
        %v1142 = vld [vmem:[#allocation7 + $0x18] sm:$0xff]
        %v1143 = vld [vmem:[#allocation7 + $0x20] sm:$0xff]
        %v1144 = vld [vmem:[#allocation7 + $0x28] sm:$0xff]
        %v1145 = vld [vmem:[#allocation7 + $0x30] sm:$0xff]
        %v1146 = vld [vmem:[#allocation7 + $0x38] sm:$0xff]
        %v1147 = vld [vmem:[#allocation7 + $0x40] sm:$0xff]
        %v1148 = vld [vmem:[#allocation7 + $0x48] sm:$0xff]
        %v1149 = vld [vmem:[#allocation7 + $0x50] sm:$0xff]
        %v1150 = vld [vmem:[#allocation7 + $0x58] sm:$0xff]
        %v1151 = vld [vmem:[#allocation7 + $0x60] sm:$0xff]
        %v1152 = vld [vmem:[#allocation7 + $0x68] sm:$0xff]
        %v1153 = vld [vmem:[#allocation7 + $0x70] sm:$0xff]
        %v1154 = vld [vmem:[#allocation7 + $0x78] sm:$0xff]
        %v1155 = vld [vmem:[#allocation7 + $0x80] sm:$0xff]
        %v1156 = vld [vmem:[#allocation7 + $0x88] sm:$0xff]
        %v1157 = vld [vmem:[#allocation7 + $0x90] sm:$0xff]
        %v1158 = vld [vmem:[#allocation7 + $0x98] sm:$0xff]
        %v1159 = vld [vmem:[#allocation7 + $0xa0] sm:$0xff]
        %v1160 = vld [vmem:[#allocation7 + $0xa8] sm:$0xff]
        %v1161 = vld [vmem:[#allocation7 + $0xb0] sm:$0xff]
        %v1162 = vld [vmem:[#allocation7 + $0xb8] sm:$0xff]
        %v1163 = vld [vmem:[#allocation7 + $0xc0] sm:$0xff]
        %v1164 = vld [vmem:[#allocation7 + $0xc8] sm:$0xff]
        %v1165 = vld [vmem:[#allocation7 + $0xd0] sm:$0xff]
        %v1166 = vld [vmem:[#allocation7 + $0xd8] sm:$0xff]
        %v1167 = vld [vmem:[#allocation7 + $0xe0] sm:$0xff]
        %v1168 = vld [vmem:[#allocation7 + $0xe8] sm:$0xff]
        %v1169 = vld [vmem:[#allocation7 + $0xf0] sm:$0xff]
        %v1170 = vld [vmem:[#allocation7 + $0xf8] sm:$0xff]
        %v1171 = vld [vmem:[#allocation7 + $0x100] sm:$0xff]
        %v1172 = vld [vmem:[#allocation7 + $0x108] sm:$0xff]
        %v1173 = vld [vmem:[#allocation7 + $0x110] sm:$0xff]
        %v1174 = vld [vmem:[#allocation7 + $0x118] sm:$0xff]
        %v1175 = vld [vmem:[#allocation7 + $0x120] sm:$0xff]
        %v1176 = vld [vmem:[#allocation7 + $0x128] sm:$0xff]
        %v1177 = vld [vmem:[#allocation7 + $0x130] sm:$0xff]
        %v1178 = vld [vmem:[#allocation7 + $0x138] sm:$0xff]
        %v1179 = vld [vmem:[#allocation7 + $0x140] sm:$0xff]
        %v1180 = vld [vmem:[#allocation7 + $0x148] sm:$0xff]
        %v1181 = vld [vmem:[#allocation7 + $0x150] sm:$0xff]
        %v1182 = vld [vmem:[#allocation7 + $0x158] sm:$0xff]
        %v1183 = vld [vmem:[#allocation7 + $0x160] sm:$0xff]
        %v1184 = vld [vmem:[#allocation7 + $0x168] sm:$0xff]
        %v1185 = vld [vmem:[#allocation7 + $0x170] sm:$0xff]
        %v1186 = vld [vmem:[#allocation7 + $0x178] sm:$0xff]
        %v1187 = vld [vmem:[#allocation7 + $0x180] sm:$0xff]
        %v1188 = vld [vmem:[#allocation7 + $0x188] sm:$0xff]
        %v1189 = vld [vmem:[#allocation7 + $0x190] sm:$0xff]
        %v1190 = vld [vmem:[#allocation7 + $0x198] sm:$0xff]
        %v1191 = vld [vmem:[#allocation7 + $0x1a0] sm:$0xff]
        %v1192 = vld [vmem:[#allocation7 + $0x1a8] sm:$0xff]
        %v1193 = vld [vmem:[#allocation7 + $0x1b0] sm:$0xff]
        %v1194 = vld [vmem:[#allocation7 + $0x1b8] sm:$0xff]
        %v1195 = vld [vmem:[#allocation7 + $0x1c0] sm:$0xff]
        %v1196 = vld [vmem:[#allocation7 + $0x1c8] sm:$0xff]
        %v1197 = vld [vmem:[#allocation7 + $0x1d0] sm:$0xff]
        %v1198 = vld [vmem:[#allocation7 + $0x1d8] sm:$0xff]
        %v1199 = vld [vmem:[#allocation7 + $0x1e0] sm:$0xff]
        %v1200 = vld [vmem:[#allocation7 + $0x1e8] sm:$0xff]
        %v1201 = vld [vmem:[#allocation7 + $0x1f0] sm:$0xff]
        %v1202 = vld [vmem:[#allocation7 + $0x1f8] sm:$0xff]
        %1203 = vmatprep.subr.mxu0 %v1140
        %1204 = vmatpush1.msra.mxu0 %v1139
        %1205 = vmatprep.subr.mxu0 %v1144
        %1206 = vmatpush1.msra.mxu0 %v1143
        %1207 = vmatprep.subr.mxu0 %v1148
        %1208 = vmatpush1.msra.mxu0 %v1147
        %1209 = vmatprep.subr.mxu0 %v1152
        %1210 = vmatpush1.msra.mxu0 %v1151
        %1211 = vmatprep.subr.mxu0 %v1156
        %1212 = vmatpush1.msra.mxu0 %v1155
        %1213 = vmatprep.subr.mxu0 %v1160
        %1214 = vmatpush1.msra.mxu0 %v1159
        %1215 = vmatprep.subr.mxu0 %v1164
        %1216 = vmatpush1.msra.mxu0 %v1163
        %1217 = vmatprep.subr.mxu0 %v1168
        %1218 = vmatpush1.msra.mxu0 %v1167
        %1219 = vmatprep.subr.mxu0 %v1172
        %1220 = vmatpush1.msra.mxu0 %v1171
        %1221 = vmatprep.subr.mxu0 %v1176
        %1222 = vmatpush1.msra.mxu0 %v1175
        %1223 = vmatprep.subr.mxu0 %v1180
        %1224 = vmatpush1.msra.mxu0 %v1179
        %1225 = vmatprep.subr.mxu0 %v1184
        %1226 = vmatpush1.msra.mxu0 %v1183
        %1227 = vmatprep.subr.mxu0 %v1188
        %1228 = vmatpush1.msra.mxu0 %v1187
        %1229 = vmatprep.subr.mxu0 %v1192
        %1230 = vmatpush1.msra.mxu0 %v1191
        %1231 = vmatprep.subr.mxu0 %v1196
        %1232 = vmatpush1.msra.mxu0 %v1195
        %1233 = vmatprep.subr.mxu0 %v1200
        %1234 = vmatpush1.msra.mxu0 %v1199
        %1235 = vmatprep.subr.mxu0 0.0
        %1236 = vmatpush1.msra.mxu0 0.0
        %1237 = vmatprep.subr.mxu0 0.0
        %1238 = vmatpush1.msra.mxu0 0.0
        %1239 = vmatprep.subr.mxu0 0.0
        %1240 = vmatpush1.msra.mxu0 0.0
        %1241 = vmatprep.subr.mxu0 0.0
        %1242 = vmatpush1.msra.mxu0 0.0
        %1243 = vmatprep.subr.mxu0 0.0
        %1244 = vmatpush1.msra.mxu0 0.0
        %1245 = vmatprep.subr.mxu0 0.0
        %1246 = vmatpush1.msra.mxu0 0.0
        %1247 = vmatprep.subr.mxu0 0.0
        %1248 = vmatpush1.msra.mxu0 0.0
        %1249 = vmatprep.subr.mxu0 0.0
        %1250 = vmatpush1.msra.mxu0 0.0
        %1251 = vmatprep.subr.mxu0 0.0
        %1252 = vmatpush1.msra.mxu0 0.0
        %1253 = vmatprep.subr.mxu0 0.0
        %1254 = vmatpush1.msra.mxu0 0.0
        %1255 = vmatprep.subr.mxu0 0.0
        %1256 = vmatpush1.msra.mxu0 0.0
        %1257 = vmatprep.subr.mxu0 0.0
        %1258 = vmatpush1.msra.mxu0 0.0
        %1259 = vmatprep.subr.mxu0 0.0
        %1260 = vmatpush1.msra.mxu0 0.0
        %1261 = vmatprep.subr.mxu0 0.0
        %1262 = vmatpush1.msra.mxu0 0.0
        %1263 = vmatprep.subr.mxu0 0.0
        %1264 = vmatpush1.msra.mxu0 0.0
        %1265 = vmatprep.subr.mxu0 0.0
        %1266 = vmatpush1.msra.mxu0 0.0
        %1267 = vmatprep.mubr.f32.mxu0 0.0
        %1268 = vmatmul.mubr.f32.gmra.mrb[0].mxu0 %v1133
        %v1269 = vpop.f32.mrb[0].mxu0
        %v1270 = vadd.f32 0.0, %v1269
        %v1271 = vpop.f32.mrb[0].mxu0
        %v1272 = vadd.f32 0.0, %v1271
        %1273 = vdwg.mxu0
        %1274 = vmatprep.subr.mxu0 %v1142
        %1275 = vmatpush1.msra.mxu0 %v1141
        %1276 = vmatprep.subr.mxu0 %v1146
        %1277 = vmatpush1.msra.mxu0 %v1145
        %1278 = vmatprep.subr.mxu0 %v1150
        %1279 = vmatpush1.msra.mxu0 %v1149
        %1280 = vmatprep.subr.mxu0 %v1154
        %1281 = vmatpush1.msra.mxu0 %v1153
        %1282 = vmatprep.subr.mxu0 %v1158
        %1283 = vmatpush1.msra.mxu0 %v1157
        %1284 = vmatprep.subr.mxu0 %v1162
        %1285 = vmatpush1.msra.mxu0 %v1161
        %1286 = vmatprep.subr.mxu0 %v1166
        %1287 = vmatpush1.msra.mxu0 %v1165
        %1288 = vmatprep.subr.mxu0 %v1170
        %1289 = vmatpush1.msra.mxu0 %v1169
        %1290 = vmatprep.subr.mxu0 %v1174
        %1291 = vmatpush1.msra.mxu0 %v1173
        %1292 = vmatprep.subr.mxu0 %v1178
        %1293 = vmatpush1.msra.mxu0 %v1177
        %1294 = vmatprep.subr.mxu0 %v1182
        %1295 = vmatpush1.msra.mxu0 %v1181
        %1296 = vmatprep.subr.mxu0 %v1186
        %1297 = vmatpush1.msra.mxu0 %v1185
        %1298 = vmatprep.subr.mxu0 %v1190
        %1299 = vmatpush1.msra.mxu0 %v1189
        %1300 = vmatprep.subr.mxu0 %v1194
        %1301 = vmatpush1.msra.mxu0 %v1193
        %1302 = vmatprep.subr.mxu0 %v1198
        %1303 = vmatpush1.msra.mxu0 %v1197
        %1304 = vmatprep.subr.mxu0 %v1202
        %1305 = vmatpush1.msra.mxu0 %v1201
        %1306 = vmatprep.subr.mxu0 0.0
        %1307 = vmatpush1.msra.mxu0 0.0
        %1308 = vmatprep.subr.mxu0 0.0
        %1309 = vmatpush1.msra.mxu0 0.0
        %1310 = vmatprep.subr.mxu0 0.0
        %1311 = vmatpush1.msra.mxu0 0.0
        %1312 = vmatprep.subr.mxu0 0.0
        %1313 = vmatpush1.msra.mxu0 0.0
        %1314 = vmatprep.subr.mxu0 0.0
        %1315 = vmatpush1.msra.mxu0 0.0
        %1316 = vmatprep.subr.mxu0 0.0
        %1317 = vmatpush1.msra.mxu0 0.0
        %1318 = vmatprep.subr.mxu0 0.0
        %1319 = vmatpush1.msra.mxu0 0.0
        %1320 = vmatprep.subr.mxu0 0.0
        %1321 = vmatpush1.msra.mxu0 0.0
        %1322 = vmatprep.subr.mxu0 0.0
        %1323 = vmatpush1.msra.mxu0 0.0
        %1324 = vmatprep.subr.mxu0 0.0
        %1325 = vmatpush1.msra.mxu0 0.0
        %1326 = vmatprep.subr.mxu0 0.0
        %1327 = vmatpush1.msra.mxu0 0.0
        %1328 = vmatprep.subr.mxu0 0.0
        %1329 = vmatpush1.msra.mxu0 0.0
        %1330 = vmatprep.subr.mxu0 0.0
        %1331 = vmatpush1.msra.mxu0 0.0
        %1332 = vmatprep.subr.mxu0 0.0
        %1333 = vmatpush1.msra.mxu0 0.0
        %1334 = vmatprep.subr.mxu0 0.0
        %1335 = vmatpush1.msra.mxu0 0.0
        %1336 = vmatprep.subr.mxu0 0.0
        %1337 = vmatpush1.msra.mxu0 0.0
        %1338 = vmatprep.mubr.f32.mxu0 0.0
        %1339 = vmatmul.mubr.f32.gmra.mrb[0].mxu0 %v1133
        %v1340 = vpop.f32.mrb[0].mxu0
        %v1341 = vadd.f32 0.0, %v1340
        %v1342 = vpop.f32.mrb[0].mxu0
        %v1343 = vadd.f32 0.0, %v1342
        %1344 = vdwg.mxu0
        %v1345 = vadd.f32 %v1135, %v1270
        %v1346 = vadd.f32 %v1136, %v1272
        %v1347 = vadd.f32 %v1137, %v1341
        %v1348 = vadd.f32 %v1138, %v1343
        %v1349 = vxor.u32 %v1345, 2147483648
        %v1350 = vxor.u32 %v1346, 2147483648
        %v1351 = vxor.u32 %v1347, 2147483648
        %v1352 = vmul.f32 %v1349, 1.442695
        %v1353 = vpow.pop %v1352
        %v1354 = vmul.f32 %v1350, 1.442695
        %v1355 = vpow.pop %v1354
        %v1356 = vmul.f32 %v1351, 1.442695
        %v1357 = vpow.pop %v1356
        %v1358 = vadd.f32 %v1353, 1.0
        %v1359 = vadd.f32 %v1355, 1.0
        %v1360 = vadd.f32 %v1357, 1.0
        %v1361 = vrcp.pop %v1358
        %v1362 = vmul.f32 1.0, %v1361
        %v1363 = vrcp.pop %v1359
        %v1364 = vmul.f32 1.0, %v1363
        %v1365 = vrcp.pop %v1360
        %v1366 = vmul.f32 1.0, %v1365
        %v1367 = vtanh.pop %v1348
        %v1368 = vld [vmem:[#allocation3] sm:$0xff]
        %v1369 = vmul.f32 %v1364, %v1368
        %v1370 = vmul.f32 %v1362, %v1367
        %v1371 = vadd.f32 %v1369, %v1370
        %v1372 = vtanh.pop %v1371
        %v1373 = vmul.f32 %v1366, %v1372
        %1374 = vst [vmem:[#allocation3] sm:$0xff] %v1371
        %1375 = vst [vmem:[#allocation2] sm:$0xff] %v1373
        %s1376 = scalar_lea.vmem %s375, 24 [#allocation11]
        %1377 = vst [vmem:[%s1376] sm:$0xff] %v1373
        %v1378 = vld [vmem:[#allocation2] sm:$0xff]
        %s1379 = scalar_lea.vmem %s319, 128 [#allocation4]
        %v1380 = vld [vmem:[%s1379] sm:$0xff]
        %v1381 = vld [vmem:[%s1379 + $0x8] sm:$0xff]
        %v1382 = vld [vmem:[%s1379 + $0x10] sm:$0xff]
        %v1383 = vld [vmem:[%s1379 + $0x18] sm:$0xff]
        %v1384 = vld [vmem:[#allocation7] sm:$0xff]
        %v1385 = vld [vmem:[#allocation7 + $0x8] sm:$0xff]
        %v1386 = vld [vmem:[#allocation7 + $0x10] sm:$0xff]
        %v1387 = vld [vmem:[#allocation7 + $0x18] sm:$0xff]
        %v1388 = vld [vmem:[#allocation7 + $0x20] sm:$0xff]
        %v1389 = vld [vmem:[#allocation7 + $0x28] sm:$0xff]
        %v1390 = vld [vmem:[#allocation7 + $0x30] sm:$0xff]
        %v1391 = vld [vmem:[#allocation7 + $0x38] sm:$0xff]
        %v1392 = vld [vmem:[#allocation7 + $0x40] sm:$0xff]
        %v1393 = vld [vmem:[#allocation7 + $0x48] sm:$0xff]
        %v1394 = vld [vmem:[#allocation7 + $0x50] sm:$0xff]
        %v1395 = vld [vmem:[#allocation7 + $0x58] sm:$0xff]
        %v1396 = vld [vmem:[#allocation7 + $0x60] sm:$0xff]
        %v1397 = vld [vmem:[#allocation7 + $0x68] sm:$0xff]
        %v1398 = vld [vmem:[#allocation7 + $0x70] sm:$0xff]
        %v1399 = vld [vmem:[#allocation7 + $0x78] sm:$0xff]
        %v1400 = vld [vmem:[#allocation7 + $0x80] sm:$0xff]
        %v1401 = vld [vmem:[#allocation7 + $0x88] sm:$0xff]
        %v1402 = vld [vmem:[#allocation7 + $0x90] sm:$0xff]
        %v1403 = vld [vmem:[#allocation7 + $0x98] sm:$0xff]
        %v1404 = vld [vmem:[#allocation7 + $0xa0] sm:$0xff]
        %v1405 = vld [vmem:[#allocation7 + $0xa8] sm:$0xff]
        %v1406 = vld [vmem:[#allocation7 + $0xb0] sm:$0xff]
        %v1407 = vld [vmem:[#allocation7 + $0xb8] sm:$0xff]
        %v1408 = vld [vmem:[#allocation7 + $0xc0] sm:$0xff]
        %v1409 = vld [vmem:[#allocation7 + $0xc8] sm:$0xff]
        %v1410 = vld [vmem:[#allocation7 + $0xd0] sm:$0xff]
        %v1411 = vld [vmem:[#allocation7 + $0xd8] sm:$0xff]
        %v1412 = vld [vmem:[#allocation7 + $0xe0] sm:$0xff]
        %v1413 = vld [vmem:[#allocation7 + $0xe8] sm:$0xff]
        %v1414 = vld [vmem:[#allocation7 + $0xf0] sm:$0xff]
        %v1415 = vld [vmem:[#allocation7 + $0xf8] sm:$0xff]
        %v1416 = vld [vmem:[#allocation7 + $0x100] sm:$0xff]
        %v1417 = vld [vmem:[#allocation7 + $0x108] sm:$0xff]
        %v1418 = vld [vmem:[#allocation7 + $0x110] sm:$0xff]
        %v1419 = vld [vmem:[#allocation7 + $0x118] sm:$0xff]
        %v1420 = vld [vmem:[#allocation7 + $0x120] sm:$0xff]
        %v1421 = vld [vmem:[#allocation7 + $0x128] sm:$0xff]
        %v1422 = vld [vmem:[#allocation7 + $0x130] sm:$0xff]
        %v1423 = vld [vmem:[#allocation7 + $0x138] sm:$0xff]
        %v1424 = vld [vmem:[#allocation7 + $0x140] sm:$0xff]
        %v1425 = vld [vmem:[#allocation7 + $0x148] sm:$0xff]
        %v1426 = vld [vmem:[#allocation7 + $0x150] sm:$0xff]
        %v1427 = vld [vmem:[#allocation7 + $0x158] sm:$0xff]
        %v1428 = vld [vmem:[#allocation7 + $0x160] sm:$0xff]
        %v1429 = vld [vmem:[#allocation7 + $0x168] sm:$0xff]
        %v1430 = vld [vmem:[#allocation7 + $0x170] sm:$0xff]
        %v1431 = vld [vmem:[#allocation7 + $0x178] sm:$0xff]
        %v1432 = vld [vmem:[#allocation7 + $0x180] sm:$0xff]
        %v1433 = vld [vmem:[#allocation7 + $0x188] sm:$0xff]
        %v1434 = vld [vmem:[#allocation7 + $0x190] sm:$0xff]
        %v1435 = vld [vmem:[#allocation7 + $0x198] sm:$0xff]
        %v1436 = vld [vmem:[#allocation7 + $0x1a0] sm:$0xff]
        %v1437 = vld [vmem:[#allocation7 + $0x1a8] sm:$0xff]
        %v1438 = vld [vmem:[#allocation7 + $0x1b0] sm:$0xff]
        %v1439 = vld [vmem:[#allocation7 + $0x1b8] sm:$0xff]
        %v1440 = vld [vmem:[#allocation7 + $0x1c0] sm:$0xff]
        %v1441 = vld [vmem:[#allocation7 + $0x1c8] sm:$0xff]
        %v1442 = vld [vmem:[#allocation7 + $0x1d0] sm:$0xff]
        %v1443 = vld [vmem:[#allocation7 + $0x1d8] sm:$0xff]
        %v1444 = vld [vmem:[#allocation7 + $0x1e0] sm:$0xff]
        %v1445 = vld [vmem:[#allocation7 + $0x1e8] sm:$0xff]
        %v1446 = vld [vmem:[#allocation7 + $0x1f0] sm:$0xff]
        %v1447 = vld [vmem:[#allocation7 + $0x1f8] sm:$0xff]
        %1448 = vmatprep.subr.mxu0 %v1385
        %1449 = vmatpush1.msra.mxu0 %v1384
        %1450 = vmatprep.subr.mxu0 %v1389
        %1451 = vmatpush1.msra.mxu0 %v1388
        %1452 = vmatprep.subr.mxu0 %v1393
        %1453 = vmatpush1.msra.mxu0 %v1392
        %1454 = vmatprep.subr.mxu0 %v1397
        %1455 = vmatpush1.msra.mxu0 %v1396
        %1456 = vmatprep.subr.mxu0 %v1401
        %1457 = vmatpush1.msra.mxu0 %v1400
        %1458 = vmatprep.subr.mxu0 %v1405
        %1459 = vmatpush1.msra.mxu0 %v1404
        %1460 = vmatprep.subr.mxu0 %v1409
        %1461 = vmatpush1.msra.mxu0 %v1408
        %1462 = vmatprep.subr.mxu0 %v1413
        %1463 = vmatpush1.msra.mxu0 %v1412
        %1464 = vmatprep.subr.mxu0 %v1417
        %1465 = vmatpush1.msra.mxu0 %v1416
        %1466 = vmatprep.subr.mxu0 %v1421
        %1467 = vmatpush1.msra.mxu0 %v1420
        %1468 = vmatprep.subr.mxu0 %v1425
        %1469 = vmatpush1.msra.mxu0 %v1424
        %1470 = vmatprep.subr.mxu0 %v1429
        %1471 = vmatpush1.msra.mxu0 %v1428
        %1472 = vmatprep.subr.mxu0 %v1433
        %1473 = vmatpush1.msra.mxu0 %v1432
        %1474 = vmatprep.subr.mxu0 %v1437
        %1475 = vmatpush1.msra.mxu0 %v1436
        %1476 = vmatprep.subr.mxu0 %v1441
        %1477 = vmatpush1.msra.mxu0 %v1440
        %1478 = vmatprep.subr.mxu0 %v1445
        %1479 = vmatpush1.msra.mxu0 %v1444
        %1480 = vmatprep.subr.mxu0 0.0
        %1481 = vmatpush1.msra.mxu0 0.0
        %1482 = vmatprep.subr.mxu0 0.0
        %1483 = vmatpush1.msra.mxu0 0.0
        %1484 = vmatprep.subr.mxu0 0.0
        %1485 = vmatpush1.msra.mxu0 0.0
        %1486 = vmatprep.subr.mxu0 0.0
        %1487 = vmatpush1.msra.mxu0 0.0
        %1488 = vmatprep.subr.mxu0 0.0
        %1489 = vmatpush1.msra.mxu0 0.0
        %1490 = vmatprep.subr.mxu0 0.0
        %1491 = vmatpush1.msra.mxu0 0.0
        %1492 = vmatprep.subr.mxu0 0.0
        %1493 = vmatpush1.msra.mxu0 0.0
        %1494 = vmatprep.subr.mxu0 0.0
        %1495 = vmatpush1.msra.mxu0 0.0
        %1496 = vmatprep.subr.mxu0 0.0
        %1497 = vmatpush1.msra.mxu0 0.0
        %1498 = vmatprep.subr.mxu0 0.0
        %1499 = vmatpush1.msra.mxu0 0.0
        %1500 = vmatprep.subr.mxu0 0.0
        %1501 = vmatpush1.msra.mxu0 0.0
        %1502 = vmatprep.subr.mxu0 0.0
        %1503 = vmatpush1.msra.mxu0 0.0
        %1504 = vmatprep.subr.mxu0 0.0
        %1505 = vmatpush1.msra.mxu0 0.0
        %1506 = vmatprep.subr.mxu0 0.0
        %1507 = vmatpush1.msra.mxu0 0.0
        %1508 = vmatprep.subr.mxu0 0.0
        %1509 = vmatpush1.msra.mxu0 0.0
        %1510 = vmatprep.subr.mxu0 0.0
        %1511 = vmatpush1.msra.mxu0 0.0
        %1512 = vmatprep.mubr.f32.mxu0 0.0
        %1513 = vmatmul.mubr.f32.gmra.mrb[0].mxu0 %v1378
        %v1514 = vpop.f32.mrb[0].mxu0
        %v1515 = vadd.f32 0.0, %v1514
        %v1516 = vpop.f32.mrb[0].mxu0
        %v1517 = vadd.f32 0.0, %v1516
        %1518 = vdwg.mxu0
        %1519 = vmatprep.subr.mxu0 %v1387
        %1520 = vmatpush1.msra.mxu0 %v1386
        %1521 = vmatprep.subr.mxu0 %v1391
        %1522 = vmatpush1.msra.mxu0 %v1390
        %1523 = vmatprep.subr.mxu0 %v1395
        %1524 = vmatpush1.msra.mxu0 %v1394
        %1525 = vmatprep.subr.mxu0 %v1399
        %1526 = vmatpush1.msra.mxu0 %v1398
        %1527 = vmatprep.subr.mxu0 %v1403
        %1528 = vmatpush1.msra.mxu0 %v1402
        %1529 = vmatprep.subr.mxu0 %v1407
        %1530 = vmatpush1.msra.mxu0 %v1406
        %1531 = vmatprep.subr.mxu0 %v1411
        %1532 = vmatpush1.msra.mxu0 %v1410
        %1533 = vmatprep.subr.mxu0 %v1415
        %1534 = vmatpush1.msra.mxu0 %v1414
        %1535 = vmatprep.subr.mxu0 %v1419
        %1536 = vmatpush1.msra.mxu0 %v1418
        %1537 = vmatprep.subr.mxu0 %v1423
        %1538 = vmatpush1.msra.mxu0 %v1422
        %1539 = vmatprep.subr.mxu0 %v1427
        %1540 = vmatpush1.msra.mxu0 %v1426
        %1541 = vmatprep.subr.mxu0 %v1431
        %1542 = vmatpush1.msra.mxu0 %v1430
        %1543 = vmatprep.subr.mxu0 %v1435
        %1544 = vmatpush1.msra.mxu0 %v1434
        %1545 = vmatprep.subr.mxu0 %v1439
        %1546 = vmatpush1.msra.mxu0 %v1438
        %1547 = vmatprep.subr.mxu0 %v1443
        %1548 = vmatpush1.msra.mxu0 %v1442
        %1549 = vmatprep.subr.mxu0 %v1447
        %1550 = vmatpush1.msra.mxu0 %v1446
        %1551 = vmatprep.subr.mxu0 0.0
        %1552 = vmatpush1.msra.mxu0 0.0
        %1553 = vmatprep.subr.mxu0 0.0
        %1554 = vmatpush1.msra.mxu0 0.0
        %1555 = vmatprep.subr.mxu0 0.0
        %1556 = vmatpush1.msra.mxu0 0.0
        %1557 = vmatprep.subr.mxu0 0.0
        %1558 = vmatpush1.msra.mxu0 0.0
        %1559 = vmatprep.subr.mxu0 0.0
        %1560 = vmatpush1.msra.mxu0 0.0
        %1561 = vmatprep.subr.mxu0 0.0
        %1562 = vmatpush1.msra.mxu0 0.0
        %1563 = vmatprep.subr.mxu0 0.0
        %1564 = vmatpush1.msra.mxu0 0.0
        %1565 = vmatprep.subr.mxu0 0.0
        %1566 = vmatpush1.msra.mxu0 0.0
        %1567 = vmatprep.subr.mxu0 0.0
        %1568 = vmatpush1.msra.mxu0 0.0
        %1569 = vmatprep.subr.mxu0 0.0
        %1570 = vmatpush1.msra.mxu0 0.0
        %1571 = vmatprep.subr.mxu0 0.0
        %1572 = vmatpush1.msra.mxu0 0.0
        %1573 = vmatprep.subr.mxu0 0.0
        %1574 = vmatpush1.msra.mxu0 0.0
        %1575 = vmatprep.subr.mxu0 0.0
        %1576 = vmatpush1.msra.mxu0 0.0
        %1577 = vmatprep.subr.mxu0 0.0
        %1578 = vmatpush1.msra.mxu0 0.0
        %1579 = vmatprep.subr.mxu0 0.0
        %1580 = vmatpush1.msra.mxu0 0.0
        %1581 = vmatprep.subr.mxu0 0.0
        %1582 = vmatpush1.msra.mxu0 0.0
        %1583 = vmatprep.mubr.f32.mxu0 0.0
        %1584 = vmatmul.mubr.f32.gmra.mrb[0].mxu0 %v1378
        %v1585 = vpop.f32.mrb[0].mxu0
        %v1586 = vadd.f32 0.0, %v1585
        %v1587 = vpop.f32.mrb[0].mxu0
        %v1588 = vadd.f32 0.0, %v1587
        %1589 = vdwg.mxu0
        %v1590 = vadd.f32 %v1380, %v1515
        %v1591 = vadd.f32 %v1381, %v1517
        %v1592 = vadd.f32 %v1382, %v1586
        %v1593 = vadd.f32 %v1383, %v1588
        %v1594 = vxor.u32 %v1590, 2147483648
        %v1595 = vxor.u32 %v1591, 2147483648
        %v1596 = vxor.u32 %v1592, 2147483648
        %v1597 = vmul.f32 %v1594, 1.442695
        %v1598 = vpow.pop %v1597
        %v1599 = vmul.f32 %v1595, 1.442695
        %v1600 = vpow.pop %v1599
        %v1601 = vmul.f32 %v1596, 1.442695
        %v1602 = vpow.pop %v1601
        %v1603 = vadd.f32 %v1598, 1.0
        %v1604 = vadd.f32 %v1600, 1.0
        %v1605 = vadd.f32 %v1602, 1.0
        %v1606 = vrcp.pop %v1603
        %v1607 = vmul.f32 1.0, %v1606
        %v1608 = vrcp.pop %v1604
        %v1609 = vmul.f32 1.0, %v1608
        %v1610 = vrcp.pop %v1605
        %v1611 = vmul.f32 1.0, %v1610
        %v1612 = vtanh.pop %v1593
        %v1613 = vld [vmem:[#allocation3] sm:$0xff]
        %v1614 = vmul.f32 %v1609, %v1613
        %v1615 = vmul.f32 %v1607, %v1612
        %v1616 = vadd.f32 %v1614, %v1615
        %v1617 = vtanh.pop %v1616
        %v1618 = vmul.f32 %v1611, %v1617
        %1619 = vst [vmem:[#allocation3] sm:$0xff] %v1616
        %1620 = vst [vmem:[#allocation2] sm:$0xff] %v1618
        %s1621 = scalar_lea.vmem %s375, 32 [#allocation11]
        %1622 = vst [vmem:[%s1621] sm:$0xff] %v1618
        %v1623 = vld [vmem:[#allocation2] sm:$0xff]
        %s1624 = scalar_lea.vmem %s319, 160 [#allocation4]
        %v1625 = vld [vmem:[%s1624] sm:$0xff]
        %v1626 = vld [vmem:[%s1624 + $0x8] sm:$0xff]
        %v1627 = vld [vmem:[%s1624 + $0x10] sm:$0xff]
        %v1628 = vld [vmem:[%s1624 + $0x18] sm:$0xff]
        %v1629 = vld [vmem:[#allocation7] sm:$0xff]
        %v1630 = vld [vmem:[#allocation7 + $0x8] sm:$0xff]
        %v1631 = vld [vmem:[#allocation7 + $0x10] sm:$0xff]
        %v1632 = vld [vmem:[#allocation7 + $0x18] sm:$0xff]
        %v1633 = vld [vmem:[#allocation7 + $0x20] sm:$0xff]
        %v1634 = vld [vmem:[#allocation7 + $0x28] sm:$0xff]
        %v1635 = vld [vmem:[#allocation7 + $0x30] sm:$0xff]
        %v1636 = vld [vmem:[#allocation7 + $0x38] sm:$0xff]
        %v1637 = vld [vmem:[#allocation7 + $0x40] sm:$0xff]
        %v1638 = vld [vmem:[#allocation7 + $0x48] sm:$0xff]
        %v1639 = vld [vmem:[#allocation7 + $0x50] sm:$0xff]
        %v1640 = vld [vmem:[#allocation7 + $0x58] sm:$0xff]
        %v1641 = vld [vmem:[#allocation7 + $0x60] sm:$0xff]
        %v1642 = vld [vmem:[#allocation7 + $0x68] sm:$0xff]
        %v1643 = vld [vmem:[#allocation7 + $0x70] sm:$0xff]
        %v1644 = vld [vmem:[#allocation7 + $0x78] sm:$0xff]
        %v1645 = vld [vmem:[#allocation7 + $0x80] sm:$0xff]
        %v1646 = vld [vmem:[#allocation7 + $0x88] sm:$0xff]
        %v1647 = vld [vmem:[#allocation7 + $0x90] sm:$0xff]
        %v1648 = vld [vmem:[#allocation7 + $0x98] sm:$0xff]
        %v1649 = vld [vmem:[#allocation7 + $0xa0] sm:$0xff]
        %v1650 = vld [vmem:[#allocation7 + $0xa8] sm:$0xff]
        %v1651 = vld [vmem:[#allocation7 + $0xb0] sm:$0xff]
        %v1652 = vld [vmem:[#allocation7 + $0xb8] sm:$0xff]
        %v1653 = vld [vmem:[#allocation7 + $0xc0] sm:$0xff]
        %v1654 = vld [vmem:[#allocation7 + $0xc8] sm:$0xff]
        %v1655 = vld [vmem:[#allocation7 + $0xd0] sm:$0xff]
        %v1656 = vld [vmem:[#allocation7 + $0xd8] sm:$0xff]
        %v1657 = vld [vmem:[#allocation7 + $0xe0] sm:$0xff]
        %v1658 = vld [vmem:[#allocation7 + $0xe8] sm:$0xff]
        %v1659 = vld [vmem:[#allocation7 + $0xf0] sm:$0xff]
        %v1660 = vld [vmem:[#allocation7 + $0xf8] sm:$0xff]
        %v1661 = vld [vmem:[#allocation7 + $0x100] sm:$0xff]
        %v1662 = vld [vmem:[#allocation7 + $0x108] sm:$0xff]
        %v1663 = vld [vmem:[#allocation7 + $0x110] sm:$0xff]
        %v1664 = vld [vmem:[#allocation7 + $0x118] sm:$0xff]
        %v1665 = vld [vmem:[#allocation7 + $0x120] sm:$0xff]
        %v1666 = vld [vmem:[#allocation7 + $0x128] sm:$0xff]
        %v1667 = vld [vmem:[#allocation7 + $0x130] sm:$0xff]
        %v1668 = vld [vmem:[#allocation7 + $0x138] sm:$0xff]
        %v1669 = vld [vmem:[#allocation7 + $0x140] sm:$0xff]
        %v1670 = vld [vmem:[#allocation7 + $0x148] sm:$0xff]
        %v1671 = vld [vmem:[#allocation7 + $0x150] sm:$0xff]
        %v1672 = vld [vmem:[#allocation7 + $0x158] sm:$0xff]
        %v1673 = vld [vmem:[#allocation7 + $0x160] sm:$0xff]
        %v1674 = vld [vmem:[#allocation7 + $0x168] sm:$0xff]
        %v1675 = vld [vmem:[#allocation7 + $0x170] sm:$0xff]
        %v1676 = vld [vmem:[#allocation7 + $0x178] sm:$0xff]
        %v1677 = vld [vmem:[#allocation7 + $0x180] sm:$0xff]
        %v1678 = vld [vmem:[#allocation7 + $0x188] sm:$0xff]
        %v1679 = vld [vmem:[#allocation7 + $0x190] sm:$0xff]
        %v1680 = vld [vmem:[#allocation7 + $0x198] sm:$0xff]
        %v1681 = vld [vmem:[#allocation7 + $0x1a0] sm:$0xff]
        %v1682 = vld [vmem:[#allocation7 + $0x1a8] sm:$0xff]
        %v1683 = vld [vmem:[#allocation7 + $0x1b0] sm:$0xff]
        %v1684 = vld [vmem:[#allocation7 + $0x1b8] sm:$0xff]
        %v1685 = vld [vmem:[#allocation7 + $0x1c0] sm:$0xff]
        %v1686 = vld [vmem:[#allocation7 + $0x1c8] sm:$0xff]
        %v1687 = vld [vmem:[#allocation7 + $0x1d0] sm:$0xff]
        %v1688 = vld [vmem:[#allocation7 + $0x1d8] sm:$0xff]
        %v1689 = vld [vmem:[#allocation7 + $0x1e0] sm:$0xff]
        %v1690 = vld [vmem:[#allocation7 + $0x1e8] sm:$0xff]
        %v1691 = vld [vmem:[#allocation7 + $0x1f0] sm:$0xff]
        %v1692 = vld [vmem:[#allocation7 + $0x1f8] sm:$0xff]
        %1693 = vmatprep.subr.mxu0 %v1630
        %1694 = vmatpush1.msra.mxu0 %v1629
        %1695 = vmatprep.subr.mxu0 %v1634
        %1696 = vmatpush1.msra.mxu0 %v1633
        %1697 = vmatprep.subr.mxu0 %v1638
        %1698 = vmatpush1.msra.mxu0 %v1637
        %1699 = vmatprep.subr.mxu0 %v1642
        %1700 = vmatpush1.msra.mxu0 %v1641
        %1701 = vmatprep.subr.mxu0 %v1646
        %1702 = vmatpush1.msra.mxu0 %v1645
        %1703 = vmatprep.subr.mxu0 %v1650
        %1704 = vmatpush1.msra.mxu0 %v1649
        %1705 = vmatprep.subr.mxu0 %v1654
        %1706 = vmatpush1.msra.mxu0 %v1653
        %1707 = vmatprep.subr.mxu0 %v1658
        %1708 = vmatpush1.msra.mxu0 %v1657
        %1709 = vmatprep.subr.mxu0 %v1662
        %1710 = vmatpush1.msra.mxu0 %v1661
        %1711 = vmatprep.subr.mxu0 %v1666
        %1712 = vmatpush1.msra.mxu0 %v1665
        %1713 = vmatprep.subr.mxu0 %v1670
        %1714 = vmatpush1.msra.mxu0 %v1669
        %1715 = vmatprep.subr.mxu0 %v1674
        %1716 = vmatpush1.msra.mxu0 %v1673
        %1717 = vmatprep.subr.mxu0 %v1678
        %1718 = vmatpush1.msra.mxu0 %v1677
        %1719 = vmatprep.subr.mxu0 %v1682
        %1720 = vmatpush1.msra.mxu0 %v1681
        %1721 = vmatprep.subr.mxu0 %v1686
        %1722 = vmatpush1.msra.mxu0 %v1685
        %1723 = vmatprep.subr.mxu0 %v1690
        %1724 = vmatpush1.msra.mxu0 %v1689
        %1725 = vmatprep.subr.mxu0 0.0
        %1726 = vmatpush1.msra.mxu0 0.0
        %1727 = vmatprep.subr.mxu0 0.0
        %1728 = vmatpush1.msra.mxu0 0.0
        %1729 = vmatprep.subr.mxu0 0.0
        %1730 = vmatpush1.msra.mxu0 0.0
        %1731 = vmatprep.subr.mxu0 0.0
        %1732 = vmatpush1.msra.mxu0 0.0
        %1733 = vmatprep.subr.mxu0 0.0
        %1734 = vmatpush1.msra.mxu0 0.0
        %1735 = vmatprep.subr.mxu0 0.0
        %1736 = vmatpush1.msra.mxu0 0.0
        %1737 = vmatprep.subr.mxu0 0.0
        %1738 = vmatpush1.msra.mxu0 0.0
        %1739 = vmatprep.subr.mxu0 0.0
        %1740 = vmatpush1.msra.mxu0 0.0
        %1741 = vmatprep.subr.mxu0 0.0
        %1742 = vmatpush1.msra.mxu0 0.0
        %1743 = vmatprep.subr.mxu0 0.0
        %1744 = vmatpush1.msra.mxu0 0.0
        %1745 = vmatprep.subr.mxu0 0.0
        %1746 = vmatpush1.msra.mxu0 0.0
        %1747 = vmatprep.subr.mxu0 0.0
        %1748 = vmatpush1.msra.mxu0 0.0
        %1749 = vmatprep.subr.mxu0 0.0
        %1750 = vmatpush1.msra.mxu0 0.0
        %1751 = vmatprep.subr.mxu0 0.0
        %1752 = vmatpush1.msra.mxu0 0.0
        %1753 = vmatprep.subr.mxu0 0.0
        %1754 = vmatpush1.msra.mxu0 0.0
        %1755 = vmatprep.subr.mxu0 0.0
        %1756 = vmatpush1.msra.mxu0 0.0
        %1757 = vmatprep.mubr.f32.mxu0 0.0
        %1758 = vmatmul.mubr.f32.gmra.mrb[0].mxu0 %v1623
        %v1759 = vpop.f32.mrb[0].mxu0
        %v1760 = vadd.f32 0.0, %v1759
        %v1761 = vpop.f32.mrb[0].mxu0
        %v1762 = vadd.f32 0.0, %v1761
        %1763 = vdwg.mxu0
        %1764 = vmatprep.subr.mxu0 %v1632
        %1765 = vmatpush1.msra.mxu0 %v1631
        %1766 = vmatprep.subr.mxu0 %v1636
        %1767 = vmatpush1.msra.mxu0 %v1635
        %1768 = vmatprep.subr.mxu0 %v1640
        %1769 = vmatpush1.msra.mxu0 %v1639
        %1770 = vmatprep.subr.mxu0 %v1644
        %1771 = vmatpush1.msra.mxu0 %v1643
        %1772 = vmatprep.subr.mxu0 %v1648
        %1773 = vmatpush1.msra.mxu0 %v1647
        %1774 = vmatprep.subr.mxu0 %v1652
        %1775 = vmatpush1.msra.mxu0 %v1651
        %1776 = vmatprep.subr.mxu0 %v1656
        %1777 = vmatpush1.msra.mxu0 %v1655
        %1778 = vmatprep.subr.mxu0 %v1660
        %1779 = vmatpush1.msra.mxu0 %v1659
        %1780 = vmatprep.subr.mxu0 %v1664
        %1781 = vmatpush1.msra.mxu0 %v1663
        %1782 = vmatprep.subr.mxu0 %v1668
        %1783 = vmatpush1.msra.mxu0 %v1667
        %1784 = vmatprep.subr.mxu0 %v1672
        %1785 = vmatpush1.msra.mxu0 %v1671
        %1786 = vmatprep.subr.mxu0 %v1676
        %1787 = vmatpush1.msra.mxu0 %v1675
        %1788 = vmatprep.subr.mxu0 %v1680
        %1789 = vmatpush1.msra.mxu0 %v1679
        %1790 = vmatprep.subr.mxu0 %v1684
        %1791 = vmatpush1.msra.mxu0 %v1683
        %1792 = vmatprep.subr.mxu0 %v1688
        %1793 = vmatpush1.msra.mxu0 %v1687
        %1794 = vmatprep.subr.mxu0 %v1692
        %1795 = vmatpush1.msra.mxu0 %v1691
        %1796 = vmatprep.subr.mxu0 0.0
        %1797 = vmatpush1.msra.mxu0 0.0
        %1798 = vmatprep.subr.mxu0 0.0
        %1799 = vmatpush1.msra.mxu0 0.0
        %1800 = vmatprep.subr.mxu0 0.0
        %1801 = vmatpush1.msra.mxu0 0.0
        %1802 = vmatprep.subr.mxu0 0.0
        %1803 = vmatpush1.msra.mxu0 0.0
        %1804 = vmatprep.subr.mxu0 0.0
        %1805 = vmatpush1.msra.mxu0 0.0
        %1806 = vmatprep.subr.mxu0 0.0
        %1807 = vmatpush1.msra.mxu0 0.0
        %1808 = vmatprep.subr.mxu0 0.0
        %1809 = vmatpush1.msra.mxu0 0.0
        %1810 = vmatprep.subr.mxu0 0.0
        %1811 = vmatpush1.msra.mxu0 0.0
        %1812 = vmatprep.subr.mxu0 0.0
        %1813 = vmatpush1.msra.mxu0 0.0
        %1814 = vmatprep.subr.mxu0 0.0
        %1815 = vmatpush1.msra.mxu0 0.0
        %1816 = vmatprep.subr.mxu0 0.0
        %1817 = vmatpush1.msra.mxu0 0.0
        %1818 = vmatprep.subr.mxu0 0.0
        %1819 = vmatpush1.msra.mxu0 0.0
        %1820 = vmatprep.subr.mxu0 0.0
        %1821 = vmatpush1.msra.mxu0 0.0
        %1822 = vmatprep.subr.mxu0 0.0
        %1823 = vmatpush1.msra.mxu0 0.0
        %1824 = vmatprep.subr.mxu0 0.0
        %1825 = vmatpush1.msra.mxu0 0.0
        %1826 = vmatprep.subr.mxu0 0.0
        %1827 = vmatpush1.msra.mxu0 0.0
        %1828 = vmatprep.mubr.f32.mxu0 0.0
        %1829 = vmatmul.mubr.f32.gmra.mrb[0].mxu0 %v1623
        %v1830 = vpop.f32.mrb[0].mxu0
        %v1831 = vadd.f32 0.0, %v1830
        %v1832 = vpop.f32.mrb[0].mxu0
        %v1833 = vadd.f32 0.0, %v1832
        %1834 = vdwg.mxu0
        %v1835 = vadd.f32 %v1625, %v1760
        %v1836 = vadd.f32 %v1626, %v1762
        %v1837 = vadd.f32 %v1627, %v1831
        %v1838 = vadd.f32 %v1628, %v1833
        %v1839 = vxor.u32 %v1835, 2147483648
        %v1840 = vxor.u32 %v1836, 2147483648
        %v1841 = vxor.u32 %v1837, 2147483648
        %v1842 = vmul.f32 %v1839, 1.442695
        %v1843 = vpow.pop %v1842
        %v1844 = vmul.f32 %v1840, 1.442695
        %v1845 = vpow.pop %v1844
        %v1846 = vmul.f32 %v1841, 1.442695
        %v1847 = vpow.pop %v1846
        %v1848 = vadd.f32 %v1843, 1.0
        %v1849 = vadd.f32 %v1845, 1.0
        %v1850 = vadd.f32 %v1847, 1.0
        %v1851 = vrcp.pop %v1848
        %v1852 = vmul.f32 1.0, %v1851
        %v1853 = vrcp.pop %v1849
        %v1854 = vmul.f32 1.0, %v1853
        %v1855 = vrcp.pop %v1850
        %v1856 = vmul.f32 1.0, %v1855
        %v1857 = vtanh.pop %v1838
        %v1858 = vld [vmem:[#allocation3] sm:$0xff]
        %v1859 = vmul.f32 %v1854, %v1858
        %v1860 = vmul.f32 %v1852, %v1857
        %v1861 = vadd.f32 %v1859, %v1860
        %v1862 = vtanh.pop %v1861
        %v1863 = vmul.f32 %v1856, %v1862
        %1864 = vst [vmem:[#allocation3] sm:$0xff] %v1861
        %1865 = vst [vmem:[#allocation2] sm:$0xff] %v1863
        %s1866 = scalar_lea.vmem %s375, 40 [#allocation11]
        %1867 = vst [vmem:[%s1866] sm:$0xff] %v1863
        %v1868 = vld [vmem:[#allocation2] sm:$0xff]
        %s1869 = scalar_lea.vmem %s319, 192 [#allocation4]
        %v1870 = vld [vmem:[%s1869] sm:$0xff]
        %v1871 = vld [vmem:[%s1869 + $0x8] sm:$0xff]
        %v1872 = vld [vmem:[%s1869 + $0x10] sm:$0xff]
        %v1873 = vld [vmem:[%s1869 + $0x18] sm:$0xff]
        %v1874 = vld [vmem:[#allocation7] sm:$0xff]
        %v1875 = vld [vmem:[#allocation7 + $0x8] sm:$0xff]
        %v1876 = vld [vmem:[#allocation7 + $0x10] sm:$0xff]
        %v1877 = vld [vmem:[#allocation7 + $0x18] sm:$0xff]
        %v1878 = vld [vmem:[#allocation7 + $0x20] sm:$0xff]
        %v1879 = vld [vmem:[#allocation7 + $0x28] sm:$0xff]
        %v1880 = vld [vmem:[#allocation7 + $0x30] sm:$0xff]
        %v1881 = vld [vmem:[#allocation7 + $0x38] sm:$0xff]
        %v1882 = vld [vmem:[#allocation7 + $0x40] sm:$0xff]
        %v1883 = vld [vmem:[#allocation7 + $0x48] sm:$0xff]
        %v1884 = vld [vmem:[#allocation7 + $0x50] sm:$0xff]
        %v1885 = vld [vmem:[#allocation7 + $0x58] sm:$0xff]
        %v1886 = vld [vmem:[#allocation7 + $0x60] sm:$0xff]
        %v1887 = vld [vmem:[#allocation7 + $0x68] sm:$0xff]
        %v1888 = vld [vmem:[#allocation7 + $0x70] sm:$0xff]
        %v1889 = vld [vmem:[#allocation7 + $0x78] sm:$0xff]
        %v1890 = vld [vmem:[#allocation7 + $0x80] sm:$0xff]
        %v1891 = vld [vmem:[#allocation7 + $0x88] sm:$0xff]
        %v1892 = vld [vmem:[#allocation7 + $0x90] sm:$0xff]
        %v1893 = vld [vmem:[#allocation7 + $0x98] sm:$0xff]
        %v1894 = vld [vmem:[#allocation7 + $0xa0] sm:$0xff]
        %v1895 = vld [vmem:[#allocation7 + $0xa8] sm:$0xff]
        %v1896 = vld [vmem:[#allocation7 + $0xb0] sm:$0xff]
        %v1897 = vld [vmem:[#allocation7 + $0xb8] sm:$0xff]
        %v1898 = vld [vmem:[#allocation7 + $0xc0] sm:$0xff]
        %v1899 = vld [vmem:[#allocation7 + $0xc8] sm:$0xff]
        %v1900 = vld [vmem:[#allocation7 + $0xd0] sm:$0xff]
        %v1901 = vld [vmem:[#allocation7 + $0xd8] sm:$0xff]
        %v1902 = vld [vmem:[#allocation7 + $0xe0] sm:$0xff]
        %v1903 = vld [vmem:[#allocation7 + $0xe8] sm:$0xff]
        %v1904 = vld [vmem:[#allocation7 + $0xf0] sm:$0xff]
        %v1905 = vld [vmem:[#allocation7 + $0xf8] sm:$0xff]
        %v1906 = vld [vmem:[#allocation7 + $0x100] sm:$0xff]
        %v1907 = vld [vmem:[#allocation7 + $0x108] sm:$0xff]
        %v1908 = vld [vmem:[#allocation7 + $0x110] sm:$0xff]
        %v1909 = vld [vmem:[#allocation7 + $0x118] sm:$0xff]
        %v1910 = vld [vmem:[#allocation7 + $0x120] sm:$0xff]
        %v1911 = vld [vmem:[#allocation7 + $0x128] sm:$0xff]
        %v1912 = vld [vmem:[#allocation7 + $0x130] sm:$0xff]
        %v1913 = vld [vmem:[#allocation7 + $0x138] sm:$0xff]
        %v1914 = vld [vmem:[#allocation7 + $0x140] sm:$0xff]
        %v1915 = vld [vmem:[#allocation7 + $0x148] sm:$0xff]
        %v1916 = vld [vmem:[#allocation7 + $0x150] sm:$0xff]
        %v1917 = vld [vmem:[#allocation7 + $0x158] sm:$0xff]
        %v1918 = vld [vmem:[#allocation7 + $0x160] sm:$0xff]
        %v1919 = vld [vmem:[#allocation7 + $0x168] sm:$0xff]
        %v1920 = vld [vmem:[#allocation7 + $0x170] sm:$0xff]
        %v1921 = vld [vmem:[#allocation7 + $0x178] sm:$0xff]
        %v1922 = vld [vmem:[#allocation7 + $0x180] sm:$0xff]
        %v1923 = vld [vmem:[#allocation7 + $0x188] sm:$0xff]
        %v1924 = vld [vmem:[#allocation7 + $0x190] sm:$0xff]
        %v1925 = vld [vmem:[#allocation7 + $0x198] sm:$0xff]
        %v1926 = vld [vmem:[#allocation7 + $0x1a0] sm:$0xff]
        %v1927 = vld [vmem:[#allocation7 + $0x1a8] sm:$0xff]
        %v1928 = vld [vmem:[#allocation7 + $0x1b0] sm:$0xff]
        %v1929 = vld [vmem:[#allocation7 + $0x1b8] sm:$0xff]
        %v1930 = vld [vmem:[#allocation7 + $0x1c0] sm:$0xff]
        %v1931 = vld [vmem:[#allocation7 + $0x1c8] sm:$0xff]
        %v1932 = vld [vmem:[#allocation7 + $0x1d0] sm:$0xff]
        %v1933 = vld [vmem:[#allocation7 + $0x1d8] sm:$0xff]
        %v1934 = vld [vmem:[#allocation7 + $0x1e0] sm:$0xff]
        %v1935 = vld [vmem:[#allocation7 + $0x1e8] sm:$0xff]
        %v1936 = vld [vmem:[#allocation7 + $0x1f0] sm:$0xff]
        %v1937 = vld [vmem:[#allocation7 + $0x1f8] sm:$0xff]
        %1938 = vmatprep.subr.mxu0 %v1875
        %1939 = vmatpush1.msra.mxu0 %v1874
        %1940 = vmatprep.subr.mxu0 %v1879
        %1941 = vmatpush1.msra.mxu0 %v1878
        %1942 = vmatprep.subr.mxu0 %v1883
        %1943 = vmatpush1.msra.mxu0 %v1882
        %1944 = vmatprep.subr.mxu0 %v1887
        %1945 = vmatpush1.msra.mxu0 %v1886
        %1946 = vmatprep.subr.mxu0 %v1891
        %1947 = vmatpush1.msra.mxu0 %v1890
        %1948 = vmatprep.subr.mxu0 %v1895
        %1949 = vmatpush1.msra.mxu0 %v1894
        %1950 = vmatprep.subr.mxu0 %v1899
        %1951 = vmatpush1.msra.mxu0 %v1898
        %1952 = vmatprep.subr.mxu0 %v1903
        %1953 = vmatpush1.msra.mxu0 %v1902
        %1954 = vmatprep.subr.mxu0 %v1907
        %1955 = vmatpush1.msra.mxu0 %v1906
        %1956 = vmatprep.subr.mxu0 %v1911
        %1957 = vmatpush1.msra.mxu0 %v1910
        %1958 = vmatprep.subr.mxu0 %v1915
        %1959 = vmatpush1.msra.mxu0 %v1914
        %1960 = vmatprep.subr.mxu0 %v1919
        %1961 = vmatpush1.msra.mxu0 %v1918
        %1962 = vmatprep.subr.mxu0 %v1923
        %1963 = vmatpush1.msra.mxu0 %v1922
        %1964 = vmatprep.subr.mxu0 %v1927
        %1965 = vmatpush1.msra.mxu0 %v1926
        %1966 = vmatprep.subr.mxu0 %v1931
        %1967 = vmatpush1.msra.mxu0 %v1930
        %1968 = vmatprep.subr.mxu0 %v1935
        %1969 = vmatpush1.msra.mxu0 %v1934
        %1970 = vmatprep.subr.mxu0 0.0
        %1971 = vmatpush1.msra.mxu0 0.0
        %1972 = vmatprep.subr.mxu0 0.0
        %1973 = vmatpush1.msra.mxu0 0.0
        %1974 = vmatprep.subr.mxu0 0.0
        %1975 = vmatpush1.msra.mxu0 0.0
        %1976 = vmatprep.subr.mxu0 0.0
        %1977 = vmatpush1.msra.mxu0 0.0
        %1978 = vmatprep.subr.mxu0 0.0
        %1979 = vmatpush1.msra.mxu0 0.0
        %1980 = vmatprep.subr.mxu0 0.0
        %1981 = vmatpush1.msra.mxu0 0.0
        %1982 = vmatprep.subr.mxu0 0.0
        %1983 = vmatpush1.msra.mxu0 0.0
        %1984 = vmatprep.subr.mxu0 0.0
        %1985 = vmatpush1.msra.mxu0 0.0
        %1986 = vmatprep.subr.mxu0 0.0
        %1987 = vmatpush1.msra.mxu0 0.0
        %1988 = vmatprep.subr.mxu0 0.0
        %1989 = vmatpush1.msra.mxu0 0.0
        %1990 = vmatprep.subr.mxu0 0.0
        %1991 = vmatpush1.msra.mxu0 0.0
        %1992 = vmatprep.subr.mxu0 0.0
        %1993 = vmatpush1.msra.mxu0 0.0
        %1994 = vmatprep.subr.mxu0 0.0
        %1995 = vmatpush1.msra.mxu0 0.0
        %1996 = vmatprep.subr.mxu0 0.0
        %1997 = vmatpush1.msra.mxu0 0.0
        %1998 = vmatprep.subr.mxu0 0.0
        %1999 = vmatpush1.msra.mxu0 0.0
        %2000 = vmatprep.subr.mxu0 0.0
        %2001 = vmatpush1.msra.mxu0 0.0
        %2002 = vmatprep.mubr.f32.mxu0 0.0
        %2003 = vmatmul.mubr.f32.gmra.mrb[0].mxu0 %v1868
        %v2004 = vpop.f32.mrb[0].mxu0
        %v2005 = vadd.f32 0.0, %v2004
        %v2006 = vpop.f32.mrb[0].mxu0
        %v2007 = vadd.f32 0.0, %v2006
        %2008 = vdwg.mxu0
        %2009 = vmatprep.subr.mxu0 %v1877
        %2010 = vmatpush1.msra.mxu0 %v1876
        %2011 = vmatprep.subr.mxu0 %v1881
        %2012 = vmatpush1.msra.mxu0 %v1880
        %2013 = vmatprep.subr.mxu0 %v1885
        %2014 = vmatpush1.msra.mxu0 %v1884
        %2015 = vmatprep.subr.mxu0 %v1889
        %2016 = vmatpush1.msra.mxu0 %v1888
        %2017 = vmatprep.subr.mxu0 %v1893
        %2018 = vmatpush1.msra.mxu0 %v1892
        %2019 = vmatprep.subr.mxu0 %v1897
        %2020 = vmatpush1.msra.mxu0 %v1896
        %2021 = vmatprep.subr.mxu0 %v1901
        %2022 = vmatpush1.msra.mxu0 %v1900
        %2023 = vmatprep.subr.mxu0 %v1905
        %2024 = vmatpush1.msra.mxu0 %v1904
        %2025 = vmatprep.subr.mxu0 %v1909
        %2026 = vmatpush1.msra.mxu0 %v1908
        %2027 = vmatprep.subr.mxu0 %v1913
        %2028 = vmatpush1.msra.mxu0 %v1912
        %2029 = vmatprep.subr.mxu0 %v1917
        %2030 = vmatpush1.msra.mxu0 %v1916
        %2031 = vmatprep.subr.mxu0 %v1921
        %2032 = vmatpush1.msra.mxu0 %v1920
        %2033 = vmatprep.subr.mxu0 %v1925
        %2034 = vmatpush1.msra.mxu0 %v1924
        %2035 = vmatprep.subr.mxu0 %v1929
        %2036 = vmatpush1.msra.mxu0 %v1928
        %2037 = vmatprep.subr.mxu0 %v1933
        %2038 = vmatpush1.msra.mxu0 %v1932
        %2039 = vmatprep.subr.mxu0 %v1937
        %2040 = vmatpush1.msra.mxu0 %v1936
        %2041 = vmatprep.subr.mxu0 0.0
        %2042 = vmatpush1.msra.mxu0 0.0
        %2043 = vmatprep.subr.mxu0 0.0
        %2044 = vmatpush1.msra.mxu0 0.0
        %2045 = vmatprep.subr.mxu0 0.0
        %2046 = vmatpush1.msra.mxu0 0.0
        %2047 = vmatprep.subr.mxu0 0.0
        %2048 = vmatpush1.msra.mxu0 0.0
        %2049 = vmatprep.subr.mxu0 0.0
        %2050 = vmatpush1.msra.mxu0 0.0
        %2051 = vmatprep.subr.mxu0 0.0
        %2052 = vmatpush1.msra.mxu0 0.0
        %2053 = vmatprep.subr.mxu0 0.0
        %2054 = vmatpush1.msra.mxu0 0.0
        %2055 = vmatprep.subr.mxu0 0.0
        %2056 = vmatpush1.msra.mxu0 0.0
        %2057 = vmatprep.subr.mxu0 0.0
        %2058 = vmatpush1.msra.mxu0 0.0
        %2059 = vmatprep.subr.mxu0 0.0
        %2060 = vmatpush1.msra.mxu0 0.0
        %2061 = vmatprep.subr.mxu0 0.0
        %2062 = vmatpush1.msra.mxu0 0.0
        %2063 = vmatprep.subr.mxu0 0.0
        %2064 = vmatpush1.msra.mxu0 0.0
        %2065 = vmatprep.subr.mxu0 0.0
        %2066 = vmatpush1.msra.mxu0 0.0
        %2067 = vmatprep.subr.mxu0 0.0
        %2068 = vmatpush1.msra.mxu0 0.0
        %2069 = vmatprep.subr.mxu0 0.0
        %2070 = vmatpush1.msra.mxu0 0.0
        %2071 = vmatprep.subr.mxu0 0.0
        %2072 = vmatpush1.msra.mxu0 0.0
        %2073 = vmatprep.mubr.f32.mxu0 0.0
        %2074 = vmatmul.mubr.f32.gmra.mrb[0].mxu0 %v1868
        %v2075 = vpop.f32.mrb[0].mxu0
        %v2076 = vadd.f32 0.0, %v2075
        %v2077 = vpop.f32.mrb[0].mxu0
        %v2078 = vadd.f32 0.0, %v2077
        %2079 = vdwg.mxu0
        %v2080 = vadd.f32 %v1870, %v2005
        %v2081 = vadd.f32 %v1871, %v2007
        %v2082 = vadd.f32 %v1872, %v2076
        %v2083 = vadd.f32 %v1873, %v2078
        %v2084 = vxor.u32 %v2080, 2147483648
        %v2085 = vxor.u32 %v2081, 2147483648
        %v2086 = vxor.u32 %v2082, 2147483648
        %v2087 = vmul.f32 %v2084, 1.442695
        %v2088 = vpow.pop %v2087
        %v2089 = vmul.f32 %v2085, 1.442695
        %v2090 = vpow.pop %v2089
        %v2091 = vmul.f32 %v2086, 1.442695
        %v2092 = vpow.pop %v2091
        %v2093 = vadd.f32 %v2088, 1.0
        %v2094 = vadd.f32 %v2090, 1.0
        %v2095 = vadd.f32 %v2092, 1.0
        %v2096 = vrcp.pop %v2093
        %v2097 = vmul.f32 1.0, %v2096
        %v2098 = vrcp.pop %v2094
        %v2099 = vmul.f32 1.0, %v2098
        %v2100 = vrcp.pop %v2095
        %v2101 = vmul.f32 1.0, %v2100
        %v2102 = vtanh.pop %v2083
        %v2103 = vld [vmem:[#allocation3] sm:$0xff]
        %v2104 = vmul.f32 %v2099, %v2103
        %v2105 = vmul.f32 %v2097, %v2102
        %v2106 = vadd.f32 %v2104, %v2105
        %v2107 = vtanh.pop %v2106
        %v2108 = vmul.f32 %v2101, %v2107
        %2109 = vst [vmem:[#allocation3] sm:$0xff] %v2106
        %2110 = vst [vmem:[#allocation2] sm:$0xff] %v2108
        %s2111 = scalar_lea.vmem %s375, 48 [#allocation11]
        %2112 = vst [vmem:[%s2111] sm:$0xff] %v2108
        %v2113 = vld [vmem:[#allocation2] sm:$0xff]
        %s2114 = scalar_lea.vmem %s319, 224 [#allocation4]
        %v2115 = vld [vmem:[%s2114] sm:$0xff]
        %v2116 = vld [vmem:[%s2114 + $0x8] sm:$0xff]
        %v2117 = vld [vmem:[%s2114 + $0x10] sm:$0xff]
        %v2118 = vld [vmem:[%s2114 + $0x18] sm:$0xff]
        %v2119 = vld [vmem:[#allocation7] sm:$0xff]
        %v2120 = vld [vmem:[#allocation7 + $0x8] sm:$0xff]
        %v2121 = vld [vmem:[#allocation7 + $0x10] sm:$0xff]
        %v2122 = vld [vmem:[#allocation7 + $0x18] sm:$0xff]
        %v2123 = vld [vmem:[#allocation7 + $0x20] sm:$0xff]
        %v2124 = vld [vmem:[#allocation7 + $0x28] sm:$0xff]
        %v2125 = vld [vmem:[#allocation7 + $0x30] sm:$0xff]
        %v2126 = vld [vmem:[#allocation7 + $0x38] sm:$0xff]
        %v2127 = vld [vmem:[#allocation7 + $0x40] sm:$0xff]
        %v2128 = vld [vmem:[#allocation7 + $0x48] sm:$0xff]
        %v2129 = vld [vmem:[#allocation7 + $0x50] sm:$0xff]
        %v2130 = vld [vmem:[#allocation7 + $0x58] sm:$0xff]
        %v2131 = vld [vmem:[#allocation7 + $0x60] sm:$0xff]
        %v2132 = vld [vmem:[#allocation7 + $0x68] sm:$0xff]
        %v2133 = vld [vmem:[#allocation7 + $0x70] sm:$0xff]
        %v2134 = vld [vmem:[#allocation7 + $0x78] sm:$0xff]
        %v2135 = vld [vmem:[#allocation7 + $0x80] sm:$0xff]
        %v2136 = vld [vmem:[#allocation7 + $0x88] sm:$0xff]
        %v2137 = vld [vmem:[#allocation7 + $0x90] sm:$0xff]
        %v2138 = vld [vmem:[#allocation7 + $0x98] sm:$0xff]
        %v2139 = vld [vmem:[#allocation7 + $0xa0] sm:$0xff]
        %v2140 = vld [vmem:[#allocation7 + $0xa8] sm:$0xff]
        %v2141 = vld [vmem:[#allocation7 + $0xb0] sm:$0xff]
        %v2142 = vld [vmem:[#allocation7 + $0xb8] sm:$0xff]
        %v2143 = vld [vmem:[#allocation7 + $0xc0] sm:$0xff]
        %v2144 = vld [vmem:[#allocation7 + $0xc8] sm:$0xff]
        %v2145 = vld [vmem:[#allocation7 + $0xd0] sm:$0xff]
        %v2146 = vld [vmem:[#allocation7 + $0xd8] sm:$0xff]
        %v2147 = vld [vmem:[#allocation7 + $0xe0] sm:$0xff]
        %v2148 = vld [vmem:[#allocation7 + $0xe8] sm:$0xff]
        %v2149 = vld [vmem:[#allocation7 + $0xf0] sm:$0xff]
        %v2150 = vld [vmem:[#allocation7 + $0xf8] sm:$0xff]
        %v2151 = vld [vmem:[#allocation7 + $0x100] sm:$0xff]
        %v2152 = vld [vmem:[#allocation7 + $0x108] sm:$0xff]
        %v2153 = vld [vmem:[#allocation7 + $0x110] sm:$0xff]
        %v2154 = vld [vmem:[#allocation7 + $0x118] sm:$0xff]
        %v2155 = vld [vmem:[#allocation7 + $0x120] sm:$0xff]
        %v2156 = vld [vmem:[#allocation7 + $0x128] sm:$0xff]
        %v2157 = vld [vmem:[#allocation7 + $0x130] sm:$0xff]
        %v2158 = vld [vmem:[#allocation7 + $0x138] sm:$0xff]
        %v2159 = vld [vmem:[#allocation7 + $0x140] sm:$0xff]
        %v2160 = vld [vmem:[#allocation7 + $0x148] sm:$0xff]
        %v2161 = vld [vmem:[#allocation7 + $0x150] sm:$0xff]
        %v2162 = vld [vmem:[#allocation7 + $0x158] sm:$0xff]
        %v2163 = vld [vmem:[#allocation7 + $0x160] sm:$0xff]
        %v2164 = vld [vmem:[#allocation7 + $0x168] sm:$0xff]
        %v2165 = vld [vmem:[#allocation7 + $0x170] sm:$0xff]
        %v2166 = vld [vmem:[#allocation7 + $0x178] sm:$0xff]
        %v2167 = vld [vmem:[#allocation7 + $0x180] sm:$0xff]
        %v2168 = vld [vmem:[#allocation7 + $0x188] sm:$0xff]
        %v2169 = vld [vmem:[#allocation7 + $0x190] sm:$0xff]
        %v2170 = vld [vmem:[#allocation7 + $0x198] sm:$0xff]
        %v2171 = vld [vmem:[#allocation7 + $0x1a0] sm:$0xff]
        %v2172 = vld [vmem:[#allocation7 + $0x1a8] sm:$0xff]
        %v2173 = vld [vmem:[#allocation7 + $0x1b0] sm:$0xff]
        %v2174 = vld [vmem:[#allocation7 + $0x1b8] sm:$0xff]
        %v2175 = vld [vmem:[#allocation7 + $0x1c0] sm:$0xff]
        %v2176 = vld [vmem:[#allocation7 + $0x1c8] sm:$0xff]
        %v2177 = vld [vmem:[#allocation7 + $0x1d0] sm:$0xff]
        %v2178 = vld [vmem:[#allocation7 + $0x1d8] sm:$0xff]
        %v2179 = vld [vmem:[#allocation7 + $0x1e0] sm:$0xff]
        %v2180 = vld [vmem:[#allocation7 + $0x1e8] sm:$0xff]
        %v2181 = vld [vmem:[#allocation7 + $0x1f0] sm:$0xff]
        %v2182 = vld [vmem:[#allocation7 + $0x1f8] sm:$0xff]
        %2183 = vmatprep.subr.mxu0 %v2120
        %2184 = vmatpush1.msra.mxu0 %v2119
        %2185 = vmatprep.subr.mxu0 %v2124
        %2186 = vmatpush1.msra.mxu0 %v2123
        %2187 = vmatprep.subr.mxu0 %v2128
        %2188 = vmatpush1.msra.mxu0 %v2127
        %2189 = vmatprep.subr.mxu0 %v2132
        %2190 = vmatpush1.msra.mxu0 %v2131
        %2191 = vmatprep.subr.mxu0 %v2136
        %2192 = vmatpush1.msra.mxu0 %v2135
        %2193 = vmatprep.subr.mxu0 %v2140
        %2194 = vmatpush1.msra.mxu0 %v2139
        %2195 = vmatprep.subr.mxu0 %v2144
        %2196 = vmatpush1.msra.mxu0 %v2143
        %2197 = vmatprep.subr.mxu0 %v2148
        %2198 = vmatpush1.msra.mxu0 %v2147
        %2199 = vmatprep.subr.mxu0 %v2152
        %2200 = vmatpush1.msra.mxu0 %v2151
        %2201 = vmatprep.subr.mxu0 %v2156
        %2202 = vmatpush1.msra.mxu0 %v2155
        %2203 = vmatprep.subr.mxu0 %v2160
        %2204 = vmatpush1.msra.mxu0 %v2159
        %2205 = vmatprep.subr.mxu0 %v2164
        %2206 = vmatpush1.msra.mxu0 %v2163
        %2207 = vmatprep.subr.mxu0 %v2168
        %2208 = vmatpush1.msra.mxu0 %v2167
        %2209 = vmatprep.subr.mxu0 %v2172
        %2210 = vmatpush1.msra.mxu0 %v2171
        %2211 = vmatprep.subr.mxu0 %v2176
        %2212 = vmatpush1.msra.mxu0 %v2175
        %2213 = vmatprep.subr.mxu0 %v2180
        %2214 = vmatpush1.msra.mxu0 %v2179
        %2215 = vmatprep.subr.mxu0 0.0
        %2216 = vmatpush1.msra.mxu0 0.0
        %2217 = vmatprep.subr.mxu0 0.0
        %2218 = vmatpush1.msra.mxu0 0.0
        %2219 = vmatprep.subr.mxu0 0.0
        %2220 = vmatpush1.msra.mxu0 0.0
        %2221 = vmatprep.subr.mxu0 0.0
        %2222 = vmatpush1.msra.mxu0 0.0
        %2223 = vmatprep.subr.mxu0 0.0
        %2224 = vmatpush1.msra.mxu0 0.0
        %2225 = vmatprep.subr.mxu0 0.0
        %2226 = vmatpush1.msra.mxu0 0.0
        %2227 = vmatprep.subr.mxu0 0.0
        %2228 = vmatpush1.msra.mxu0 0.0
        %2229 = vmatprep.subr.mxu0 0.0
        %2230 = vmatpush1.msra.mxu0 0.0
        %2231 = vmatprep.subr.mxu0 0.0
        %2232 = vmatpush1.msra.mxu0 0.0
        %2233 = vmatprep.subr.mxu0 0.0
        %2234 = vmatpush1.msra.mxu0 0.0
        %2235 = vmatprep.subr.mxu0 0.0
        %2236 = vmatpush1.msra.mxu0 0.0
        %2237 = vmatprep.subr.mxu0 0.0
        %2238 = vmatpush1.msra.mxu0 0.0
        %2239 = vmatprep.subr.mxu0 0.0
        %2240 = vmatpush1.msra.mxu0 0.0
        %2241 = vmatprep.subr.mxu0 0.0
        %2242 = vmatpush1.msra.mxu0 0.0
        %2243 = vmatprep.subr.mxu0 0.0
        %2244 = vmatpush1.msra.mxu0 0.0
        %2245 = vmatprep.subr.mxu0 0.0
        %2246 = vmatpush1.msra.mxu0 0.0
        %2247 = vmatprep.mubr.f32.mxu0 0.0
        %2248 = vmatmul.mubr.f32.gmra.mrb[0].mxu0 %v2113
        %v2249 = vpop.f32.mrb[0].mxu0
        %v2250 = vadd.f32 0.0, %v2249
        %v2251 = vpop.f32.mrb[0].mxu0
        %v2252 = vadd.f32 0.0, %v2251
        %2253 = vdwg.mxu0
        %2254 = vmatprep.subr.mxu0 %v2122
        %2255 = vmatpush1.msra.mxu0 %v2121
        %2256 = vmatprep.subr.mxu0 %v2126
        %2257 = vmatpush1.msra.mxu0 %v2125
        %2258 = vmatprep.subr.mxu0 %v2130
        %2259 = vmatpush1.msra.mxu0 %v2129
        %2260 = vmatprep.subr.mxu0 %v2134
        %2261 = vmatpush1.msra.mxu0 %v2133
        %2262 = vmatprep.subr.mxu0 %v2138
        %2263 = vmatpush1.msra.mxu0 %v2137
        %2264 = vmatprep.subr.mxu0 %v2142
        %2265 = vmatpush1.msra.mxu0 %v2141
        %2266 = vmatprep.subr.mxu0 %v2146
        %2267 = vmatpush1.msra.mxu0 %v2145
        %2268 = vmatprep.subr.mxu0 %v2150
        %2269 = vmatpush1.msra.mxu0 %v2149
        %2270 = vmatprep.subr.mxu0 %v2154
        %2271 = vmatpush1.msra.mxu0 %v2153
        %2272 = vmatprep.subr.mxu0 %v2158
        %2273 = vmatpush1.msra.mxu0 %v2157
        %2274 = vmatprep.subr.mxu0 %v2162
        %2275 = vmatpush1.msra.mxu0 %v2161
        %2276 = vmatprep.subr.mxu0 %v2166
        %2277 = vmatpush1.msra.mxu0 %v2165
        %2278 = vmatprep.subr.mxu0 %v2170
        %2279 = vmatpush1.msra.mxu0 %v2169
        %2280 = vmatprep.subr.mxu0 %v2174
        %2281 = vmatpush1.msra.mxu0 %v2173
        %2282 = vmatprep.subr.mxu0 %v2178
        %2283 = vmatpush1.msra.mxu0 %v2177
        %2284 = vmatprep.subr.mxu0 %v2182
        %2285 = vmatpush1.msra.mxu0 %v2181
        %2286 = vmatprep.subr.mxu0 0.0
        %2287 = vmatpush1.msra.mxu0 0.0
        %2288 = vmatprep.subr.mxu0 0.0
        %2289 = vmatpush1.msra.mxu0 0.0
        %2290 = vmatprep.subr.mxu0 0.0
        %2291 = vmatpush1.msra.mxu0 0.0
        %2292 = vmatprep.subr.mxu0 0.0
        %2293 = vmatpush1.msra.mxu0 0.0
        %2294 = vmatprep.subr.mxu0 0.0
        %2295 = vmatpush1.msra.mxu0 0.0
        %2296 = vmatprep.subr.mxu0 0.0
        %2297 = vmatpush1.msra.mxu0 0.0
        %2298 = vmatprep.subr.mxu0 0.0
        %2299 = vmatpush1.msra.mxu0 0.0
        %2300 = vmatprep.subr.mxu0 0.0
        %2301 = vmatpush1.msra.mxu0 0.0
        %2302 = vmatprep.subr.mxu0 0.0
        %2303 = vmatpush1.msra.mxu0 0.0
        %2304 = vmatprep.subr.mxu0 0.0
        %2305 = vmatpush1.msra.mxu0 0.0
        %2306 = vmatprep.subr.mxu0 0.0
        %2307 = vmatpush1.msra.mxu0 0.0
        %2308 = vmatprep.subr.mxu0 0.0
        %2309 = vmatpush1.msra.mxu0 0.0
        %2310 = vmatprep.subr.mxu0 0.0
        %2311 = vmatpush1.msra.mxu0 0.0
        %2312 = vmatprep.subr.mxu0 0.0
        %2313 = vmatpush1.msra.mxu0 0.0
        %2314 = vmatprep.subr.mxu0 0.0
        %2315 = vmatpush1.msra.mxu0 0.0
        %2316 = vmatprep.subr.mxu0 0.0
        %2317 = vmatpush1.msra.mxu0 0.0
        %2318 = vmatprep.mubr.f32.mxu0 0.0
        %2319 = vmatmul.mubr.f32.gmra.mrb[0].mxu0 %v2113
        %v2320 = vpop.f32.mrb[0].mxu0
        %v2321 = vadd.f32 0.0, %v2320
        %v2322 = vpop.f32.mrb[0].mxu0
        %v2323 = vadd.f32 0.0, %v2322
        %2324 = vdwg.mxu0
        %v2325 = vadd.f32 %v2115, %v2250
        %v2326 = vadd.f32 %v2116, %v2252
        %v2327 = vadd.f32 %v2117, %v2321
        %v2328 = vadd.f32 %v2118, %v2323
        %v2329 = vxor.u32 %v2325, 2147483648
        %v2330 = vxor.u32 %v2326, 2147483648
        %v2331 = vxor.u32 %v2327, 2147483648
        %v2332 = vmul.f32 %v2329, 1.442695
        %v2333 = vpow.pop %v2332
        %v2334 = vmul.f32 %v2330, 1.442695
        %v2335 = vpow.pop %v2334
        %v2336 = vmul.f32 %v2331, 1.442695
        %v2337 = vpow.pop %v2336
        %v2338 = vadd.f32 %v2333, 1.0
        %v2339 = vadd.f32 %v2335, 1.0
        %v2340 = vadd.f32 %v2337, 1.0
        %v2341 = vrcp.pop %v2338
        %v2342 = vmul.f32 1.0, %v2341
        %v2343 = vrcp.pop %v2339
        %v2344 = vmul.f32 1.0, %v2343
        %v2345 = vrcp.pop %v2340
        %v2346 = vmul.f32 1.0, %v2345
        %v2347 = vtanh.pop %v2328
        %v2348 = vld [vmem:[#allocation3] sm:$0xff]
        %v2349 = vmul.f32 %v2344, %v2348
        %v2350 = vmul.f32 %v2342, %v2347
        %v2351 = vadd.f32 %v2349, %v2350
        %v2352 = vtanh.pop %v2351
        %v2353 = vmul.f32 %v2346, %v2352
        %2354 = vst [vmem:[#allocation3] sm:$0xff] %v2351
        %2355 = vst [vmem:[#allocation2] sm:$0xff] %v2353
        %s2356 = scalar_lea.vmem %s375, 56 [#allocation11]
        %2357 = vst [vmem:[%s2356] sm:$0xff] %v2353
        %p2358 = scmp.eq.s32.totalorder %s33, 1
        // Predicated region
        $region57: #{tpu_custom_call.1} parent=35 // pred_check
          %p2359 = pneg %p2358
        $region58: #{tpu_custom_call.1} parent=35 // pred_check_branch
          %2361 = sbr.rel (%p2359) target = $region60
        $region59: #{tpu_custom_call.1} parent=35 // pred_region
          %v2362 = vld [vmem:[#allocation2] sm:$0xff]
          %2363 = vst [vmem:[%s382] sm:$0xff] %v2362
          %v2364 = vld [vmem:[#allocation3] sm:$0xff]
          %2365 = vst [vmem:[%s389] sm:$0xff] %v2364
        $region60: #{tpu_custom_call.1} parent=35 // pred_fallthru
          _
        %s2366 = sand.u32 %s151, 1
        %s2367 = scalar_lea.sflag [#allocation6], %s2366
        %s2368 = sand.u32 %s151, 1
        %s2369 = smul.addr %s2368, 64
        %s2370 = scalar_lea.vmem [#allocation11], %s2369
        %s2371 = sand.u32 %s28, 1
        %s2372 = scalar_lea.sflag [#allocation13], %s2371
        %s2373 = sand.u32 %s177, 1
        %s2374 = smul.addr %s2373, 8
        %s2375 = scalar_lea.vmem [#allocation12], %s2374
        %s2376 = sand.u32 %s28, 1
        %s2377 = scalar_lea.sflag [#allocation13], %s2376
        %s2378 = sand.u32 %s203, 1
        %s2379 = smul.addr %s2378, 8
        %s2380 = scalar_lea.vmem [#allocation14], %s2379
        // Predicated region
        $region61: #{tpu_custom_call.1} parent=35 // pred_check
          %p2381 = pneg %p161
        $region62: #{tpu_custom_call.1} parent=35 // pred_check_branch
          %2383 = sbr.rel (%p2381) target = $region64
        $region63: #{tpu_custom_call.1} parent=35 // pred_region
          %s2384 = smul.u32 8, %s33
          %s2386 = ssub.s32 1024, 1024
          %2387 = vsyncadd %s2367, %s2386
          %s2388 = smul.addr %s2384, 2
          %s2389 = sadd.s32 %s32, %s2388
          %s2390 = smul.addr %s2389, 128
          %s2391 = scalar_lea.hbm %s4, %s2390
          %s2392 = sshll.u32 %s2370, 4
          %s2393 = int_to_ptr.vmem [resolvable:$true] %s2392
          %2398 = dma.vmem_to_hbm [thread:$0]  %s2393, 1024, %s2391, %s2367, 128, 256, 8
        $region64: #{tpu_custom_call.1} parent=35 // pred_fallthru
          _
        // Predicated region
        $region65: #{tpu_custom_call.1} parent=35 // pred_check
          %p2399 = pneg %p187
        $region66: #{tpu_custom_call.1} parent=35 // pred_check_branch
          %2401 = sbr.rel (%p2399) target = $region68
        $region67: #{tpu_custom_call.1} parent=35 // pred_region
          %s2403 = ssub.s32 128, 128
          %2404 = vsyncadd %s2372, %s2403
          %s2405 = smul.addr %s32, 128
          %s2406 = scalar_lea.hbm %s5, %s2405
          %s2408 = sshll.u32 %s2375, 4
          %s2409 = int_to_ptr.vmem [resolvable:$true] %s2408
          %2411 = dma.vmem_to_hbm [thread:$0]  %s2409, 128, %s2406, %s2372
        $region68: #{tpu_custom_call.1} parent=35 // pred_fallthru
          _
        // Predicated region
        $region69: #{tpu_custom_call.1} parent=35 // pred_check
          %p2412 = pneg %p213
        $region70: #{tpu_custom_call.1} parent=35 // pred_check_branch
          %2414 = sbr.rel (%p2412) target = $region72
        $region71: #{tpu_custom_call.1} parent=35 // pred_region
          %s2416 = ssub.s32 128, 128
          %2417 = vsyncadd %s2377, %s2416
          %s2418 = smul.addr %s32, 128
          %s2419 = scalar_lea.hbm %s6, %s2418
          %s2421 = sshll.u32 %s2380, 4
          %s2422 = int_to_ptr.vmem [resolvable:$true] %s2421
          %2424 = dma.vmem_to_hbm [thread:$0]  %s2422, 128, %s2419, %s2377
        $region72: #{tpu_custom_call.1} parent=35 // pred_fallthru
          _
      $region36: #{tpu_custom_call.1} parent=5 // pred_fallthru
        _
      %p2425 = scmp.le.s32.totalorder 2, %s23
      // Predicated region
      $region73: #{tpu_custom_call.1} parent=5 // pred_check
        %p2426 = pneg %p2425
      $region74: #{tpu_custom_call.1} parent=5 // pred_check_branch
        %2428 = sbr.rel (%p2426) target = $region76
      $region75: #{tpu_custom_call.1} parent=5 // pred_region
        %s2429 = ssub.s32 %s23, 2
        // Predicated region
        $region77: #{tpu_custom_call.1} parent=75 // pred_check
          %p2430 = pneg %p167
        $region78: #{tpu_custom_call.1} parent=75 // pred_check_branch
          %2432 = sbr.rel (%p2430) target = $region80
        $region79: #{tpu_custom_call.1} parent=75 // pred_region
          %s2433 = sand.u32 %s152, 1
          %s2434 = scalar_lea.sflag [#allocation6], %s2433
          %s2435 = sand.u32 %s152, 1
          %s2436 = smul.addr %s2435, 64
          %s2437 = scalar_lea.vmem [#allocation11], %s2436
          %2438 = dma.done %s2434, 1024
        $region80: #{tpu_custom_call.1} parent=75 // pred_fallthru
          _
        // Predicated region
        $region81: #{tpu_custom_call.1} parent=75 // pred_check
          %p2439 = pneg %p193
        $region82: #{tpu_custom_call.1} parent=75 // pred_check_branch
          %2441 = sbr.rel (%p2439) target = $region84
        $region83: #{tpu_custom_call.1} parent=75 // pred_region
          %s2442 = sand.u32 %s29, 1
          %s2443 = scalar_lea.sflag [#allocation13], %s2442
          %s2444 = sand.u32 %s178, 1
          %s2445 = smul.addr %s2444, 8
          %s2446 = scalar_lea.vmem [#allocation12], %s2445
          %2447 = dma.done %s2443, 128
        $region84: #{tpu_custom_call.1} parent=75 // pred_fallthru
          _
        // Predicated region
        $region85: #{tpu_custom_call.1} parent=75 // pred_check
          %p2448 = pneg %p219
        $region86: #{tpu_custom_call.1} parent=75 // pred_check_branch
          %2450 = sbr.rel (%p2448) target = $region88
        $region87: #{tpu_custom_call.1} parent=75 // pred_region
          %s2451 = sand.u32 %s29, 1
          %s2452 = scalar_lea.sflag [#allocation13], %s2451
          %s2453 = sand.u32 %s204, 1
          %s2454 = smul.addr %s2453, 8
          %s2455 = scalar_lea.vmem [#allocation14], %s2454
          %2456 = dma.done %s2452, 128
        $region88: #{tpu_custom_call.1} parent=75 // pred_fallthru
          _
      $region76: #{tpu_custom_call.1} parent=5 // pred_fallthru
        _
    $region6: #{tpu_custom_call.1} parent=1 // loop_footer
      %s27 = sadd.s32 1, %s23
    $region7: #{tpu_custom_call.1} parent=1 // loop_footer_branch
      %22 = sbr.rel target = $region3
    $region8: #{tpu_custom_call.1} parent=1 // loop_exit
      _
    %2457 = vsyncpa [#allocation5], 1
    %s2458 = scalar_lea.sflag [#allocation5], 1
    %2459 = vsyncpa %s2458, 1
    %2460 = vsyncpa [#allocation8], 1
    %2461 = vsyncpa [#allocation6], 1
    %s2462 = scalar_lea.sflag [#allocation6], 1
    %2463 = vsyncpa %s2462, 1
    %2464 = vsyncpa [#allocation13], 1
    %s2465 = scalar_lea.sflag [#allocation13], 1
    %2466 = vsyncpa %s2465, 1

</llo_original>
